<compile_context>
chip_gen: v5e
topology: v5e:2x2
jax: 0.10.0
libtpu: 0.0.40
codegen_flags: <defaults>
</compile_context>

<pallas_src>
import functools
import math

import numpy as np

import jax
import jax.numpy as jnp
from jax.experimental import pallas as pl
from jax.experimental.pallas import tpu as pltpu

TWO_PI = 2.0 * math.pi


# ----------------------------------------------------------------------------
# Parameter construction (deterministic, mirrors the PyTorch __init__).
# ----------------------------------------------------------------------------
def make_logpolar_filterbank(tau_min=1.0, tau_max=4.0, ntau=8, num_angles=12,
                             c=None):
    """Returns (W, R, K): W is (num_angles*ntau, K, K) float32 bilinear filters
    with angle-major rows (channel = angle*ntau + tau), matching the PyTorch
    coords = stack((y.flatten(), x.flatten())) ordering."""
    if c is None:
        c = (tau_max / tau_min) ** (1.0 / (ntau - 1)) - 1.0
    dtheta = TWO_PI / num_angles
    theta = np.arange(num_angles, dtype=np.float64) * dtheta - np.pi      # (A,)
    tau_star = tau_min * (1.0 + c) ** np.arange(ntau, dtype=np.float64)   # (T,)
    x = tau_star[None, :] * np.cos(theta)[:, None]                        # (A,T)
    y = tau_star[None, :] * np.sin(theta)[:, None]                        # (A,T)
    coords = np.stack([y.ravel(), x.ravel()], axis=-1)                    # (A*T,2)

    R = int(np.ceil(np.max(np.abs(coords))))
    K = 2 * R + 1
    N = coords.shape[0]
    W = np.zeros((N, K, K), dtype=np.float64)
    for i in range(N):
        yy, xx = coords[i]
        y0 = int(np.floor(yy))
        x0 = int(np.floor(xx))
        wy = yy - y0
        wx = xx - x0
        for dy, py in ((0, 1.0 - wy), (1, wy)):
            for dx, px in ((0, 1.0 - wx), (1, wx)):
                wgt = py * px
                if wgt != 0.0:
                    W[i, R + y0 + dy, R + x0 + dx] += wgt
    return W.astype(np.float32), R, K


def reorder_taumajor(w_angle_major, num_angles, ntau, K):
    """(A*T, K, K) angle-major -> (T*A, K*K) tau-major weight matrix, so the
    kernel writes output channels already in (tau, angle) order and the final
    permute((0,1,3,2,4,5)) becomes a free reshape."""
    return (w_angle_major.reshape(num_angles, ntau, K, K)
            .transpose(1, 0, 2, 3)
            .reshape(ntau * num_angles, K * K))


# ----------------------------------------------------------------------------
# Pallas kernel: one image per grid step, one MXU matmul for all channels.
# ----------------------------------------------------------------------------
def _lp_kernel(w_ref, flat_ref, out_ref, patch_ref, *, K, stride, Ho, Wo, Wph):
    # w_ref    : (C_out, K*K)       f32 VMEM  tau-major filter bank (resident)
    # flat_ref : (1, P, Hph*Wph)    f32 VMEM  flattened padded phase images
    # out_ref  : (1, C_out, Ho*Wo)  f32 VMEM  lane-dense output block
    # patch_ref: (K*K, Ncols)       f32 VMEM  im2col scratch
    s = stride
    ncols = (Ho - 1) * Wph + Wo

    # im2col: each tap (ky, kx) is one *contiguous* window of a flattened phase
    # image, so filling the patch matrix needs only static-offset slices
    # (lane rotates) -- no in-kernel reshapes.
    for ky in range(K):
        qy, ry = divmod(ky, s)
        for kx in range(K):
            qx, rx = divmod(kx, s)
            pidx = ry * s + rx
            off = qy * Wph + qx
            patch_ref[pl.ds(ky * K + kx, 1), :] = (
                flat_ref[0, pl.ds(pidx, 1), pl.ds(off, ncols)])

    # One MXU matmul: all output channels x all output pixels of this image.
    res = jnp.dot(w_ref[...], patch_ref[...],
                  preferred_element_type=jnp.float32)

    # Drop the horizontal-padding "wrap" columns row by row; the HBM-side
    # output stays a single lane-dense (C_out, Ho*Wo) slab.
    for y in range(Ho):
        out_ref[0, :, pl.ds(y * Wo, Wo)] = (
            res[:, y * Wph:y * Wph + Wo].astype(out_ref.dtype))


# ----------------------------------------------------------------------------
# Wrapper (the module's forward).
# ----------------------------------------------------------------------------
def interpolated_logpolar_transform(x, w2d, *, num_angles, ntau, R, K,
                                    stride=1):
    """x: (B, F, H, W) f32;  w2d: (ntau*num_angles, K*K) tau-major filters.
    Returns (B, F, ntau, num_angles, H', W') with H' = ceil(H/stride)."""
    assert x.ndim == 4
    B, F, H, W = x.shape
    s = int(stride)
    BF = B * F
    C_out = num_angles * ntau
    KK = K * K
    Ho = (H - 1) // s + 1
    Wo = (W - 1) // s + 1
    qmax = (K - 1) // s
    Hph, Wph = Ho + qmax, Wo + qmax
    Lph = Hph * Wph
    P = s * s
    Ncols = (Ho - 1) * Wph + Wo

    # TODO(synk): smooth=True (3x3 Gaussian pre-filter) not implemented; this
    # reproduces the default smooth=False (identity) path.

    # "same" zero padding + stride**2 phase decomposition + row flattening,
    # all on the (small, input-sized) tensor.  This lets the kernel use only
    # unit-stride contiguous slices regardless of `stride`.
    xp = jnp.pad(x.reshape(BF, H, W), ((0, 0), (R, R), (R, R)))
    phases = []
    for ry in range(s):
        for rx in range(s):
            ph = xp[:, ry::s, rx::s][:, :Hph, :Wph]
            ph = jnp.pad(ph, ((0, 0), (0, Hph - ph.shape[1]),
                              (0, Wph - ph.shape[2])))
            phases.append(ph.reshape(BF, Lph))
    flat = jnp.stack(phases, axis=1)                       # (BF, P, Lph)

    kernel = functools.partial(_lp_kernel, K=K, stride=s, Ho=Ho, Wo=Wo,
                               Wph=Wph)
    out = pl.pallas_call(
        kernel,
        out_shape=jax.ShapeDtypeStruct((BF, C_out, Ho * Wo), x.dtype),
        grid_spec=pltpu.PrefetchScalarGridSpec(
            num_scalar_prefetch=0,
            grid=(BF,),
            in_specs=[
                # weights: same block every step -> loaded into VMEM once
                pl.BlockSpec((C_out, KK), lambda i: (0, 0)),
                # one flattened (phase-decomposed) padded image per step
                pl.BlockSpec((1, P, Lph), lambda i: (i, 0, 0)),
            ],
            out_specs=pl.BlockSpec((1, C_out, Ho * Wo), lambda i: (i, 0, 0)),
            scratch_shapes=[pltpu.VMEM((KK, Ncols), jnp.float32)],
        ),
        compiler_params=pltpu.CompilerParams(
            dimension_semantics=("parallel",)),
    )(w2d, flat)

    # Channel rows are tau-major, so this is a pure metadata reshape:
    # (B*F, T*A, Ho*Wo) -> (B, F, T, A, Ho, Wo).  No post-kernel transpose.
    return out.reshape(B, F, ntau, num_angles, Ho, Wo)


# ----------------------------------------------------------------------------
# Demo / self-check.
# ----------------------------------------------------------------------------
if __name__ == "__main__":
    B, F, H, W = 2, 4, 16, 16
    tau_min, tau_max, ntau, num_angles = 1.0, 4.0, 8, 12
    C_out = num_angles * ntau

    w_np, R, K = make_logpolar_filterbank(tau_min, tau_max, ntau, num_angles)
    w2d = jnp.asarray(reorder_taumajor(w_np, num_angles, ntau, K))  # (96, 81)

    key = jax.random.PRNGKey(0)
    x = jax.random.normal(key, (B, F, H, W), dtype=jnp.float32)

    # float64 reference of the "same"-padded bilinear conv, permuted like the
    # PyTorch module: (B, F, T, A, H, W).
    x_np = np.asarray(x, dtype=np.float64).reshape(B * F, H, W)
    xp_np = np.pad(x_np, ((0, 0), (R, R), (R, R)))
    patches = np.stack(
        [xp_np[:, ky:ky + H, kx:kx + W] for ky in range(K) for kx in range(K)],
        axis=1)                                            # (BF, K*K, H, W)
    ref = np.einsum("ck,bkhw->bchw",
                    w_np.reshape(C_out, K * K).astype(np.float64), patches)
    ref = ref.reshape(B, F, num_angles, ntau, H, W).transpose(0, 1, 3, 2, 4, 5)

    for stride in (1, 2):
        out = interpolated_logpolar_transform(
            x, w2d, num_angles=num_angles, ntau=ntau, R=R, K=K, stride=stride)
        out = jax.block_until_ready(out)
        Ho = (H - 1) // stride + 1
        Wo = (W - 1) // stride + 1
        assert out.shape == (B, F, ntau, num_angles, Ho, Wo), out.shape
        np.testing.assert_allclose(np.asarray(out),
                                   ref[..., ::stride, ::stride],
                                   atol=5e-4, rtol=5e-4)

    print("KERNEL_OK")
</pallas_src>

<mosaic_0001>
module attributes {stable_mosaic.version = 11 : i64} {
  func.func @_lp_kernel(%arg0: i32, %arg1: memref<96x81xf32, #tpu.memory_space<vmem>>, %arg2: memref<1x1x576xf32, #tpu.memory_space<vmem>>, %arg3: memref<1x96x256xf32, #tpu.memory_space<vmem>>, %arg4: memref<81x376xf32, #tpu.memory_space<vmem>>) attributes {dimension_semantics = [#tpu.dimension_semantics<parallel>], iteration_bounds = array<i64: 8>, scalar_prefetch = 0 : i64, scratch_operands = 1 : i64, tpu.core_type = #tpu.core_type<tc>, window_params = [{pipeline_mode = #tpu.pipeline_mode<synchronous>, transform_indices = @transform_0, window_bounds = array<i64: 96, 81>}, {transform_indices = @transform_1, window_bounds = array<i64: 1, 1, 576>}, {transform_indices = @transform_2, window_bounds = array<i64: 1, 96, 256>}]} {
    %c0 = arith.constant 0 : index
    %c0_0 = arith.constant 0 : index
    %c0_1 = arith.constant 0 : index
    %0 = vector.load %arg2[%c0, %c0_0, %c0_1] : memref<1x1x576xf32, #tpu.memory_space<vmem>>, vector<1x1x376xf32>
    %1 = vector.shape_cast %0 : vector<1x1x376xf32> to vector<1x376xf32>
    %c0_2 = arith.constant 0 : index
    %c0_3 = arith.constant 0 : index
    %2 = vector.load %arg4[%c0_2, %c0_3] : memref<81x376xf32, #tpu.memory_space<vmem>>, vector<1x376xf32>
    tpu.vector_store %arg4[%c0_2, %c0_3], %1 {strides = array<i32>} : memref<81x376xf32, #tpu.memory_space<vmem>>, vector<1x376xf32>,
    %c0_4 = arith.constant 0 : index
    %c0_5 = arith.constant 0 : index
    %c1 = arith.constant 1 : index
    %3 = vector.load %arg2[%c0_4, %c0_5, %c1] : memref<1x1x576xf32, #tpu.memory_space<vmem>>, vector<1x1x376xf32>
    %4 = vector.shape_cast %3 : vector<1x1x376xf32> to vector<1x376xf32>
    %c1_6 = arith.constant 1 : index
    %c0_7 = arith.constant 0 : index
    %5 = vector.load %arg4[%c1_6, %c0_7] : memref<81x376xf32, #tpu.memory_space<vmem>>, vector<1x376xf32>
    tpu.vector_store %arg4[%c1_6, %c0_7], %4 {strides = array<i32>} : memref<81x376xf32, #tpu.memory_space<vmem>>, vector<1x376xf32>,
    %c0_8 = arith.constant 0 : index
    %c0_9 = arith.constant 0 : index
    %c2 = arith.constant 2 : index
    %6 = vector.load %arg2[%c0_8, %c0_9, %c2] : memref<1x1x576xf32, #tpu.memory_space<vmem>>, vector<1x1x376xf32>
    %7 = vector.shape_cast %6 : vector<1x1x376xf32> to vector<1x376xf32>
    %c2_10 = arith.constant 2 : index
    %c0_11 = arith.constant 0 : index
    %8 = vector.load %arg4[%c2_10, %c0_11] : memref<81x376xf32, #tpu.memory_space<vmem>>, vector<1x376xf32>
    tpu.vector_store %arg4[%c2_10, %c0_11], %7 {strides = array<i32>} : memref<81x376xf32, #tpu.memory_space<vmem>>, vector<1x376xf32>,
    %c0_12 = arith.constant 0 : index
    %c0_13 = arith.constant 0 : index
    %c3 = arith.constant 3 : index
    %9 = vector.load %arg2[%c0_12, %c0_13, %c3] : memref<1x1x576xf32, #tpu.memory_space<vmem>>, vector<1x1x376xf32>
    %10 = vector.shape_cast %9 : vector<1x1x376xf32> to vector<1x376xf32>
    %c3_14 = arith.constant 3 : index
    %c0_15 = arith.constant 0 : index
    %11 = vector.load %arg4[%c3_14, %c0_15] : memref<81x376xf32, #tpu.memory_space<vmem>>, vector<1x376xf32>
    tpu.vector_store %arg4[%c3_14, %c0_15], %10 {strides = array<i32>} : memref<81x376xf32, #tpu.memory_space<vmem>>, vector<1x376xf32>,
    %c0_16 = arith.constant 0 : index
    %c0_17 = arith.constant 0 : index
    %c4 = arith.constant 4 : index
    %12 = vector.load %arg2[%c0_16, %c0_17, %c4] : memref<1x1x576xf32, #tpu.memory_space<vmem>>, vector<1x1x376xf32>
    %13 = vector.shape_cast %12 : vector<1x1x376xf32> to vector<1x376xf32>
    %c4_18 = arith.constant 4 : index
    %c0_19 = arith.constant 0 : index
    %14 = vector.load %arg4[%c4_18, %c0_19] : memref<81x376xf32, #tpu.memory_space<vmem>>, vector<1x376xf32>
    tpu.vector_store %arg4[%c4_18, %c0_19], %13 {strides = array<i32>} : memref<81x376xf32, #tpu.memory_space<vmem>>, vector<1x376xf32>,
    %c0_20 = arith.constant 0 : index
    %c0_21 = arith.constant 0 : index
    %c5 = arith.constant 5 : index
    %15 = vector.load %arg2[%c0_20, %c0_21, %c5] : memref<1x1x576xf32, #tpu.memory_space<vmem>>, vector<1x1x376xf32>
    %16 = vector.shape_cast %15 : vector<1x1x376xf32> to vector<1x376xf32>
    %c5_22 = arith.constant 5 : index
    %c0_23 = arith.constant 0 : index
    %17 = vector.load %arg4[%c5_22, %c0_23] : memref<81x376xf32, #tpu.memory_space<vmem>>, vector<1x376xf32>
    tpu.vector_store %arg4[%c5_22, %c0_23], %16 {strides = array<i32>} : memref<81x376xf32, #tpu.memory_space<vmem>>, vector<1x376xf32>,
    %c0_24 = arith.constant 0 : index
    %c0_25 = arith.constant 0 : index
    %c6 = arith.constant 6 : index
    %18 = vector.load %arg2[%c0_24, %c0_25, %c6] : memref<1x1x576xf32, #tpu.memory_space<vmem>>, vector<1x1x376xf32>
    %19 = vector.shape_cast %18 : vector<1x1x376xf32> to vector<1x376xf32>
    %c6_26 = arith.constant 6 : index
    %c0_27 = arith.constant 0 : index
    %20 = vector.load %arg4[%c6_26, %c0_27] : memref<81x376xf32, #tpu.memory_space<vmem>>, vector<1x376xf32>
    tpu.vector_store %arg4[%c6_26, %c0_27], %19 {strides = array<i32>} : memref<81x376xf32, #tpu.memory_space<vmem>>, vector<1x376xf32>,
    %c0_28 = arith.constant 0 : index
    %c0_29 = arith.constant 0 : index
    %c7 = arith.constant 7 : index
    %21 = vector.load %arg2[%c0_28, %c0_29, %c7] : memref<1x1x576xf32, #tpu.memory_space<vmem>>, vector<1x1x376xf32>
    %22 = vector.shape_cast %21 : vector<1x1x376xf32> to vector<1x376xf32>
    %c7_30 = arith.constant 7 : index
    %c0_31 = arith.constant 0 : index
    %23 = vector.load %arg4[%c7_30, %c0_31] : memref<81x376xf32, #tpu.memory_space<vmem>>, vector<1x376xf32>
    tpu.vector_store %arg4[%c7_30, %c0_31], %22 {strides = array<i32>} : memref<81x376xf32, #tpu.memory_space<vmem>>, vector<1x376xf32>,
    %c0_32 = arith.constant 0 : index
    %c0_33 = arith.constant 0 : index
    %c8 = arith.constant 8 : index
    %24 = vector.load %arg2[%c0_32, %c0_33, %c8] : memref<1x1x576xf32, #tpu.memory_space<vmem>>, vector<1x1x376xf32>
    %25 = vector.shape_cast %24 : vector<1x1x376xf32> to vector<1x376xf32>
    %c8_34 = arith.constant 8 : index
    %c0_35 = arith.constant 0 : index
    %26 = vector.load %arg4[%c8_34, %c0_35] : memref<81x376xf32, #tpu.memory_space<vmem>>, vector<1x376xf32>
    tpu.vector_store %arg4[%c8_34, %c0_35], %25 {strides = array<i32>} : memref<81x376xf32, #tpu.memory_space<vmem>>, vector<1x376xf32>,
    %c0_36 = arith.constant 0 : index
    %c0_37 = arith.constant 0 : index
    %c24 = arith.constant 24 : index
    %27 = vector.load %arg2[%c0_36, %c0_37, %c24] : memref<1x1x576xf32, #tpu.memory_space<vmem>>, vector<1x1x376xf32>
    %28 = vector.shape_cast %27 : vector<1x1x376xf32> to vector<1x376xf32>
    %c9 = arith.constant 9 : index
    %c0_38 = arith.constant 0 : index
    %29 = vector.load %arg4[%c9, %c0_38] : memref<81x376xf32, #tpu.memory_space<vmem>>, vector<1x376xf32>
    tpu.vector_store %arg4[%c9, %c0_38], %28 {strides = array<i32>} : memref<81x376xf32, #tpu.memory_space<vmem>>, vector<1x376xf32>,
    %c0_39 = arith.constant 0 : index
    %c0_40 = arith.constant 0 : index
    %c25 = arith.constant 25 : index
    %30 = vector.load %arg2[%c0_39, %c0_40, %c25] : memref<1x1x576xf32, #tpu.memory_space<vmem>>, vector<1x1x376xf32>
    %31 = vector.shape_cast %30 : vector<1x1x376xf32> to vector<1x376xf32>
    %c10 = arith.constant 10 : index
    %c0_41 = arith.constant 0 : index
    %32 = vector.load %arg4[%c10, %c0_41] : memref<81x376xf32, #tpu.memory_space<vmem>>, vector<1x376xf32>
    tpu.vector_store %arg4[%c10, %c0_41], %31 {strides = array<i32>} : memref<81x376xf32, #tpu.memory_space<vmem>>, vector<1x376xf32>,
    %c0_42 = arith.constant 0 : index
    %c0_43 = arith.constant 0 : index
    %c26 = arith.constant 26 : index
    %33 = vector.load %arg2[%c0_42, %c0_43, %c26] : memref<1x1x576xf32, #tpu.memory_space<vmem>>, vector<1x1x376xf32>
    %34 = vector.shape_cast %33 : vector<1x1x376xf32> to vector<1x376xf32>
    %c11 = arith.constant 11 : index
    %c0_44 = arith.constant 0 : index
    %35 = vector.load %arg4[%c11, %c0_44] : memref<81x376xf32, #tpu.memory_space<vmem>>, vector<1x376xf32>
    tpu.vector_store %arg4[%c11, %c0_44], %34 {strides = array<i32>} : memref<81x376xf32, #tpu.memory_space<vmem>>, vector<1x376xf32>,
    %c0_45 = arith.constant 0 : index
    %c0_46 = arith.constant 0 : index
    %c27 = arith.constant 27 : index
    %36 = vector.load %arg2[%c0_45, %c0_46, %c27] : memref<1x1x576xf32, #tpu.memory_space<vmem>>, vector<1x1x376xf32>
    %37 = vector.shape_cast %36 : vector<1x1x376xf32> to vector<1x376xf32>
    %c12 = arith.constant 12 : index
    %c0_47 = arith.constant 0 : index
    %38 = vector.load %arg4[%c12, %c0_47] : memref<81x376xf32, #tpu.memory_space<vmem>>, vector<1x376xf32>
    tpu.vector_store %arg4[%c12, %c0_47], %37 {strides = array<i32>} : memref<81x376xf32, #tpu.memory_space<vmem>>, vector<1x376xf32>,
    %c0_48 = arith.constant 0 : index
    %c0_49 = arith.constant 0 : index
    %c28 = arith.constant 28 : index
    %39 = vector.load %arg2[%c0_48, %c0_49, %c28] : memref<1x1x576xf32, #tpu.memory_space<vmem>>, vector<1x1x376xf32>
    %40 = vector.shape_cast %39 : vector<1x1x376xf32> to vector<1x376xf32>
    %c13 = arith.constant 13 : index
    %c0_50 = arith.constant 0 : index
    %41 = vector.load %arg4[%c13, %c0_50] : memref<81x376xf32, #tpu.memory_space<vmem>>, vector<1x376xf32>
    tpu.vector_store %arg4[%c13, %c0_50], %40 {strides = array<i32>} : memref<81x376xf32, #tpu.memory_space<vmem>>, vector<1x376xf32>,
    %c0_51 = arith.constant 0 : index
    %c0_52 = arith.constant 0 : index
    %c29 = arith.constant 29 : index
    %42 = vector.load %arg2[%c0_51, %c0_52, %c29] : memref<1x1x576xf32, #tpu.memory_space<vmem>>, vector<1x1x376xf32>
    %43 = vector.shape_cast %42 : vector<1x1x376xf32> to vector<1x376xf32>
    %c14 = arith.constant 14 : index
    %c0_53 = arith.constant 0 : index
    %44 = vector.load %arg4[%c14, %c0_53] : memref<81x376xf32, #tpu.memory_space<vmem>>, vector<1x376xf32>
    tpu.vector_store %arg4[%c14, %c0_53], %43 {strides = array<i32>} : memref<81x376xf32, #tpu.memory_space<vmem>>, vector<1x376xf32>,
    %c0_54 = arith.constant 0 : index
    %c0_55 = arith.constant 0 : index
    %c30 = arith.constant 30 : index
    %45 = vector.load %arg2[%c0_54, %c0_55, %c30] : memref<1x1x576xf32, #tpu.memory_space<vmem>>, vector<1x1x376xf32>
    %46 = vector.shape_cast %45 : vector<1x1x376xf32> to vector<1x376xf32>
    %c15 = arith.constant 15 : index
    %c0_56 = arith.constant 0 : index
    %47 = vector.load %arg4[%c15, %c0_56] : memref<81x376xf32, #tpu.memory_space<vmem>>, vector<1x376xf32>
    tpu.vector_store %arg4[%c15, %c0_56], %46 {strides = array<i32>} : memref<81x376xf32, #tpu.memory_space<vmem>>, vector<1x376xf32>,
    %c0_57 = arith.constant 0 : index
    %c0_58 = arith.constant 0 : index
    %c31 = arith.constant 31 : index
    %48 = vector.load %arg2[%c0_57, %c0_58, %c31] : memref<1x1x576xf32, #tpu.memory_space<vmem>>, vector<1x1x376xf32>
    %49 = vector.shape_cast %48 : vector<1x1x376xf32> to vector<1x376xf32>
    %c16 = arith.constant 16 : index
    %c0_59 = arith.constant 0 : index
    %50 = vector.load %arg4[%c16, %c0_59] : memref<81x376xf32, #tpu.memory_space<vmem>>, vector<1x376xf32>
    tpu.vector_store %arg4[%c16, %c0_59], %49 {strides = array<i32>} : memref<81x376xf32, #tpu.memory_space<vmem>>, vector<1x376xf32>,
    %c0_60 = arith.constant 0 : index
    %c0_61 = arith.constant 0 : index
    %c32 = arith.constant 32 : index
    %51 = vector.load %arg2[%c0_60, %c0_61, %c32] : memref<1x1x576xf32, #tpu.memory_space<vmem>>, vector<1x1x376xf32>
    %52 = vector.shape_cast %51 : vector<1x1x376xf32> to vector<1x376xf32>
    %c17 = arith.constant 17 : index
    %c0_62 = arith.constant 0 : index
    %53 = vector.load %arg4[%c17, %c0_62] : memref<81x376xf32, #tpu.memory_space<vmem>>, vector<1x376xf32>
    tpu.vector_store %arg4[%c17, %c0_62], %52 {strides = array<i32>} : memref<81x376xf32, #tpu.memory_space<vmem>>, vector<1x376xf32>,
    %c0_63 = arith.constant 0 : index
    %c0_64 = arith.constant 0 : index
    %c48 = arith.constant 48 : index
    %54 = vector.load %arg2[%c0_63, %c0_64, %c48] : memref<1x1x576xf32, #tpu.memory_space<vmem>>, vector<1x1x376xf32>
    %55 = vector.shape_cast %54 : vector<1x1x376xf32> to vector<1x376xf32>
    %c18 = arith.constant 18 : index
    %c0_65 = arith.constant 0 : index
    %56 = vector.load %arg4[%c18, %c0_65] : memref<81x376xf32, #tpu.memory_space<vmem>>, vector<1x376xf32>
    tpu.vector_store %arg4[%c18, %c0_65], %55 {strides = array<i32>} : memref<81x376xf32, #tpu.memory_space<vmem>>, vector<1x376xf32>,
    %c0_66 = arith.constant 0 : index
    %c0_67 = arith.constant 0 : index
    %c49 = arith.constant 49 : index
    %57 = vector.load %arg2[%c0_66, %c0_67, %c49] : memref<1x1x576xf32, #tpu.memory_space<vmem>>, vector<1x1x376xf32>
    %58 = vector.shape_cast %57 : vector<1x1x376xf32> to vector<1x376xf32>
    %c19 = arith.constant 19 : index
    %c0_68 = arith.constant 0 : index
    %59 = vector.load %arg4[%c19, %c0_68] : memref<81x376xf32, #tpu.memory_space<vmem>>, vector<1x376xf32>
    tpu.vector_store %arg4[%c19, %c0_68], %58 {strides = array<i32>} : memref<81x376xf32, #tpu.memory_space<vmem>>, vector<1x376xf32>,
    %c0_69 = arith.constant 0 : index
    %c0_70 = arith.constant 0 : index
    %c50 = arith.constant 50 : index
    %60 = vector.load %arg2[%c0_69, %c0_70, %c50] : memref<1x1x576xf32, #tpu.memory_space<vmem>>, vector<1x1x376xf32>
    %61 = vector.shape_cast %60 : vector<1x1x376xf32> to vector<1x376xf32>
    %c20 = arith.constant 20 : index
    %c0_71 = arith.constant 0 : index
    %62 = vector.load %arg4[%c20, %c0_71] : memref<81x376xf32, #tpu.memory_space<vmem>>, vector<1x376xf32>
    tpu.vector_store %arg4[%c20, %c0_71], %61 {strides = array<i32>} : memref<81x376xf32, #tpu.memory_space<vmem>>, vector<1x376xf32>,
    %c0_72 = arith.constant 0 : index
    %c0_73 = arith.constant 0 : index
    %c51 = arith.constant 51 : index
    %63 = vector.load %arg2[%c0_72, %c0_73, %c51] : memref<1x1x576xf32, #tpu.memory_space<vmem>>, vector<1x1x376xf32>
    %64 = vector.shape_cast %63 : vector<1x1x376xf32> to vector<1x376xf32>
    %c21 = arith.constant 21 : index
    %c0_74 = arith.constant 0 : index
    %65 = vector.load %arg4[%c21, %c0_74] : memref<81x376xf32, #tpu.memory_space<vmem>>, vector<1x376xf32>
    tpu.vector_store %arg4[%c21, %c0_74], %64 {strides = array<i32>} : memref<81x376xf32, #tpu.memory_space<vmem>>, vector<1x376xf32>,
    %c0_75 = arith.constant 0 : index
    %c0_76 = arith.constant 0 : index
    %c52 = arith.constant 52 : index
    %66 = vector.load %arg2[%c0_75, %c0_76, %c52] : memref<1x1x576xf32, #tpu.memory_space<vmem>>, vector<1x1x376xf32>
    %67 = vector.shape_cast %66 : vector<1x1x376xf32> to vector<1x376xf32>
    %c22 = arith.constant 22 : index
    %c0_77 = arith.constant 0 : index
    %68 = vector.load %arg4[%c22, %c0_77] : memref<81x376xf32, #tpu.memory_space<vmem>>, vector<1x376xf32>
    tpu.vector_store %arg4[%c22, %c0_77], %67 {strides = array<i32>} : memref<81x376xf32, #tpu.memory_space<vmem>>, vector<1x376xf32>,
    %c0_78 = arith.constant 0 : index
    %c0_79 = arith.constant 0 : index
    %c53 = arith.constant 53 : index
    %69 = vector.load %arg2[%c0_78, %c0_79, %c53] : memref<1x1x576xf32, #tpu.memory_space<vmem>>, vector<1x1x376xf32>
    %70 = vector.shape_cast %69 : vector<1x1x376xf32> to vector<1x376xf32>
    %c23 = arith.constant 23 : index
    %c0_80 = arith.constant 0 : index
    %71 = vector.load %arg4[%c23, %c0_80] : memref<81x376xf32, #tpu.memory_space<vmem>>, vector<1x376xf32>
    tpu.vector_store %arg4[%c23, %c0_80], %70 {strides = array<i32>} : memref<81x376xf32, #tpu.memory_space<vmem>>, vector<1x376xf32>,
    %c0_81 = arith.constant 0 : index
    %c0_82 = arith.constant 0 : index
    %c54 = arith.constant 54 : index
    %72 = vector.load %arg2[%c0_81, %c0_82, %c54] : memref<1x1x576xf32, #tpu.memory_space<vmem>>, vector<1x1x376xf32>
    %73 = vector.shape_cast %72 : vector<1x1x376xf32> to vector<1x376xf32>
    %c24_83 = arith.constant 24 : index
    %c0_84 = arith.constant 0 : index
    %74 = vector.load %arg4[%c24_83, %c0_84] : memref<81x376xf32, #tpu.memory_space<vmem>>, vector<1x376xf32>
    tpu.vector_store %arg4[%c24_83, %c0_84], %73 {strides = array<i32>} : memref<81x376xf32, #tpu.memory_space<vmem>>, vector<1x376xf32>,
    %c0_85 = arith.constant 0 : index
    %c0_86 = arith.constant 0 : index
    %c55 = arith.constant 55 : index
    %75 = vector.load %arg2[%c0_85, %c0_86, %c55] : memref<1x1x576xf32, #tpu.memory_space<vmem>>, vector<1x1x376xf32>
    %76 = vector.shape_cast %75 : vector<1x1x376xf32> to vector<1x376xf32>
    %c25_87 = arith.constant 25 : index
    %c0_88 = arith.constant 0 : index
    %77 = vector.load %arg4[%c25_87, %c0_88] : memref<81x376xf32, #tpu.memory_space<vmem>>, vector<1x376xf32>
    tpu.vector_store %arg4[%c25_87, %c0_88], %76 {strides = array<i32>} : memref<81x376xf32, #tpu.memory_space<vmem>>, vector<1x376xf32>,
    %c0_89 = arith.constant 0 : index
    %c0_90 = arith.constant 0 : index
    %c56 = arith.constant 56 : index
    %78 = vector.load %arg2[%c0_89, %c0_90, %c56] : memref<1x1x576xf32, #tpu.memory_space<vmem>>, vector<1x1x376xf32>
    %79 = vector.shape_cast %78 : vector<1x1x376xf32> to vector<1x376xf32>
    %c26_91 = arith.constant 26 : index
    %c0_92 = arith.constant 0 : index
    %80 = vector.load %arg4[%c26_91, %c0_92] : memref<81x376xf32, #tpu.memory_space<vmem>>, vector<1x376xf32>
    tpu.vector_store %arg4[%c26_91, %c0_92], %79 {strides = array<i32>} : memref<81x376xf32, #tpu.memory_space<vmem>>, vector<1x376xf32>,
    %c0_93 = arith.constant 0 : index
    %c0_94 = arith.constant 0 : index
    %c72 = arith.constant 72 : index
    %81 = vector.load %arg2[%c0_93, %c0_94, %c72] : memref<1x1x576xf32, #tpu.memory_space<vmem>>, vector<1x1x376xf32>
    %82 = vector.shape_cast %81 : vector<1x1x376xf32> to vector<1x376xf32>
    %c27_95 = arith.constant 27 : index
    %c0_96 = arith.constant 0 : index
    %83 = vector.load %arg4[%c27_95, %c0_96] : memref<81x376xf32, #tpu.memory_space<vmem>>, vector<1x376xf32>
    tpu.vector_store %arg4[%c27_95, %c0_96], %82 {strides = array<i32>} : memref<81x376xf32, #tpu.memory_space<vmem>>, vector<1x376xf32>,
    %c0_97 = arith.constant 0 : index
    %c0_98 = arith.constant 0 : index
    %c73 = arith.constant 73 : index
    %84 = vector.load %arg2[%c0_97, %c0_98, %c73] : memref<1x1x576xf32, #tpu.memory_space<vmem>>, vector<1x1x376xf32>
    %85 = vector.shape_cast %84 : vector<1x1x376xf32> to vector<1x376xf32>
    %c28_99 = arith.constant 28 : index
    %c0_100 = arith.constant 0 : index
    %86 = vector.load %arg4[%c28_99, %c0_100] : memref<81x376xf32, #tpu.memory_space<vmem>>, vector<1x376xf32>
    tpu.vector_store %arg4[%c28_99, %c0_100], %85 {strides = array<i32>} : memref<81x376xf32, #tpu.memory_space<vmem>>, vector<1x376xf32>,
    %c0_101 = arith.constant 0 : index
    %c0_102 = arith.constant 0 : index
    %c74 = arith.constant 74 : index
    %87 = vector.load %arg2[%c0_101, %c0_102, %c74] : memref<1x1x576xf32, #tpu.memory_space<vmem>>, vector<1x1x376xf32>
    %88 = vector.shape_cast %87 : vector<1x1x376xf32> to vector<1x376xf32>
    %c29_103 = arith.constant 29 : index
    %c0_104 = arith.constant 0 : index
    %89 = vector.load %arg4[%c29_103, %c0_104] : memref<81x376xf32, #tpu.memory_space<vmem>>, vector<1x376xf32>
    tpu.vector_store %arg4[%c29_103, %c0_104], %88 {strides = array<i32>} : memref<81x376xf32, #tpu.memory_space<vmem>>, vector<1x376xf32>,
    %c0_105 = arith.constant 0 : index
    %c0_106 = arith.constant 0 : index
    %c75 = arith.constant 75 : index
    %90 = vector.load %arg2[%c0_105, %c0_106, %c75] : memref<1x1x576xf32, #tpu.memory_space<vmem>>, vector<1x1x376xf32>
    %91 = vector.shape_cast %90 : vector<1x1x376xf32> to vector<1x376xf32>
    %c30_107 = arith.constant 30 : index
    %c0_108 = arith.constant 0 : index
    %92 = vector.load %arg4[%c30_107, %c0_108] : memref<81x376xf32, #tpu.memory_space<vmem>>, vector<1x376xf32>
    tpu.vector_store %arg4[%c30_107, %c0_108], %91 {strides = array<i32>} : memref<81x376xf32, #tpu.memory_space<vmem>>, vector<1x376xf32>,
    %c0_109 = arith.constant 0 : index
    %c0_110 = arith.constant 0 : index
    %c76 = arith.constant 76 : index
    %93 = vector.load %arg2[%c0_109, %c0_110, %c76] : memref<1x1x576xf32, #tpu.memory_space<vmem>>, vector<1x1x376xf32>
    %94 = vector.shape_cast %93 : vector<1x1x376xf32> to vector<1x376xf32>
    %c31_111 = arith.constant 31 : index
    %c0_112 = arith.constant 0 : index
    %95 = vector.load %arg4[%c31_111, %c0_112] : memref<81x376xf32, #tpu.memory_space<vmem>>, vector<1x376xf32>
    tpu.vector_store %arg4[%c31_111, %c0_112], %94 {strides = array<i32>} : memref<81x376xf32, #tpu.memory_space<vmem>>, vector<1x376xf32>,
    %c0_113 = arith.constant 0 : index
    %c0_114 = arith.constant 0 : index
    %c77 = arith.constant 77 : index
    %96 = vector.load %arg2[%c0_113, %c0_114, %c77] : memref<1x1x576xf32, #tpu.memory_space<vmem>>, vector<1x1x376xf32>
    %97 = vector.shape_cast %96 : vector<1x1x376xf32> to vector<1x376xf32>
    %c32_115 = arith.constant 32 : index
    %c0_116 = arith.constant 0 : index
    %98 = vector.load %arg4[%c32_115, %c0_116] : memref<81x376xf32, #tpu.memory_space<vmem>>, vector<1x376xf32>
    tpu.vector_store %arg4[%c32_115, %c0_116], %97 {strides = array<i32>} : memref<81x376xf32, #tpu.memory_space<vmem>>, vector<1x376xf32>,
    %c0_117 = arith.constant 0 : index
    %c0_118 = arith.constant 0 : index
    %c78 = arith.constant 78 : index
    %99 = vector.load %arg2[%c0_117, %c0_118, %c78] : memref<1x1x576xf32, #tpu.memory_space<vmem>>, vector<1x1x376xf32>
    %100 = vector.shape_cast %99 : vector<1x1x376xf32> to vector<1x376xf32>
    %c33 = arith.constant 33 : index
    %c0_119 = arith.constant 0 : index
    %101 = vector.load %arg4[%c33, %c0_119] : memref<81x376xf32, #tpu.memory_space<vmem>>, vector<1x376xf32>
    tpu.vector_store %arg4[%c33, %c0_119], %100 {strides = array<i32>} : memref<81x376xf32, #tpu.memory_space<vmem>>, vector<1x376xf32>,
    %c0_120 = arith.constant 0 : index
    %c0_121 = arith.constant 0 : index
    %c79 = arith.constant 79 : index
    %102 = vector.load %arg2[%c0_120, %c0_121, %c79] : memref<1x1x576xf32, #tpu.memory_space<vmem>>, vector<1x1x376xf32>
    %103 = vector.shape_cast %102 : vector<1x1x376xf32> to vector<1x376xf32>
    %c34 = arith.constant 34 : index
    %c0_122 = arith.constant 0 : index
    %104 = vector.load %arg4[%c34, %c0_122] : memref<81x376xf32, #tpu.memory_space<vmem>>, vector<1x376xf32>
    tpu.vector_store %arg4[%c34, %c0_122], %103 {strides = array<i32>} : memref<81x376xf32, #tpu.memory_space<vmem>>, vector<1x376xf32>,
    %c0_123 = arith.constant 0 : index
    %c0_124 = arith.constant 0 : index
    %c80 = arith.constant 80 : index
    %105 = vector.load %arg2[%c0_123, %c0_124, %c80] : memref<1x1x576xf32, #tpu.memory_space<vmem>>, vector<1x1x376xf32>
    %106 = vector.shape_cast %105 : vector<1x1x376xf32> to vector<1x376xf32>
    %c35 = arith.constant 35 : index
    %c0_125 = arith.constant 0 : index
    %107 = vector.load %arg4[%c35, %c0_125] : memref<81x376xf32, #tpu.memory_space<vmem>>, vector<1x376xf32>
    tpu.vector_store %arg4[%c35, %c0_125], %106 {strides = array<i32>} : memref<81x376xf32, #tpu.memory_space<vmem>>, vector<1x376xf32>,
    %c0_126 = arith.constant 0 : index
    %c0_127 = arith.constant 0 : index
    %c96 = arith.constant 96 : index
    %108 = vector.load %arg2[%c0_126, %c0_127, %c96] : memref<1x1x576xf32, #tpu.memory_space<vmem>>, vector<1x1x376xf32>
    %109 = vector.shape_cast %108 : vector<1x1x376xf32> to vector<1x376xf32>
    %c36 = arith.constant 36 : index
    %c0_128 = arith.constant 0 : index
    %110 = vector.load %arg4[%c36, %c0_128] : memref<81x376xf32, #tpu.memory_space<vmem>>, vector<1x376xf32>
    tpu.vector_store %arg4[%c36, %c0_128], %109 {strides = array<i32>} : memref<81x376xf32, #tpu.memory_space<vmem>>, vector<1x376xf32>,
    %c0_129 = arith.constant 0 : index
    %c0_130 = arith.constant 0 : index
    %c97 = arith.constant 97 : index
    %111 = vector.load %arg2[%c0_129, %c0_130, %c97] : memref<1x1x576xf32, #tpu.memory_space<vmem>>, vector<1x1x376xf32>
    %112 = vector.shape_cast %111 : vector<1x1x376xf32> to vector<1x376xf32>
    %c37 = arith.constant 37 : index
    %c0_131 = arith.constant 0 : index
    %113 = vector.load %arg4[%c37, %c0_131] : memref<81x376xf32, #tpu.memory_space<vmem>>, vector<1x376xf32>
    tpu.vector_store %arg4[%c37, %c0_131], %112 {strides = array<i32>} : memref<81x376xf32, #tpu.memory_space<vmem>>, vector<1x376xf32>,
    %c0_132 = arith.constant 0 : index
    %c0_133 = arith.constant 0 : index
    %c98 = arith.constant 98 : index
    %114 = vector.load %arg2[%c0_132, %c0_133, %c98] : memref<1x1x576xf32, #tpu.memory_space<vmem>>, vector<1x1x376xf32>
    %115 = vector.shape_cast %114 : vector<1x1x376xf32> to vector<1x376xf32>
    %c38 = arith.constant 38 : index
    %c0_134 = arith.constant 0 : index
    %116 = vector.load %arg4[%c38, %c0_134] : memref<81x376xf32, #tpu.memory_space<vmem>>, vector<1x376xf32>
    tpu.vector_store %arg4[%c38, %c0_134], %115 {strides = array<i32>} : memref<81x376xf32, #tpu.memory_space<vmem>>, vector<1x376xf32>,
    %c0_135 = arith.constant 0 : index
    %c0_136 = arith.constant 0 : index
    %c99 = arith.constant 99 : index
    %117 = vector.load %arg2[%c0_135, %c0_136, %c99] : memref<1x1x576xf32, #tpu.memory_space<vmem>>, vector<1x1x376xf32>
    %118 = vector.shape_cast %117 : vector<1x1x376xf32> to vector<1x376xf32>
    %c39 = arith.constant 39 : index
    %c0_137 = arith.constant 0 : index
    %119 = vector.load %arg4[%c39, %c0_137] : memref<81x376xf32, #tpu.memory_space<vmem>>, vector<1x376xf32>
    tpu.vector_store %arg4[%c39, %c0_137], %118 {strides = array<i32>} : memref<81x376xf32, #tpu.memory_space<vmem>>, vector<1x376xf32>,
    %c0_138 = arith.constant 0 : index
    %c0_139 = arith.constant 0 : index
    %c100 = arith.constant 100 : index
    %120 = vector.load %arg2[%c0_138, %c0_139, %c100] : memref<1x1x576xf32, #tpu.memory_space<vmem>>, vector<1x1x376xf32>
    %121 = vector.shape_cast %120 : vector<1x1x376xf32> to vector<1x376xf32>
    %c40 = arith.constant 40 : index
    %c0_140 = arith.constant 0 : index
    %122 = vector.load %arg4[%c40, %c0_140] : memref<81x376xf32, #tpu.memory_space<vmem>>, vector<1x376xf32>
    tpu.vector_store %arg4[%c40, %c0_140], %121 {strides = array<i32>} : memref<81x376xf32, #tpu.memory_space<vmem>>, vector<1x376xf32>,
    %c0_141 = arith.constant 0 : index
    %c0_142 = arith.constant 0 : index
    %c101 = arith.constant 101 : index
    %123 = vector.load %arg2[%c0_141, %c0_142, %c101] : memref<1x1x576xf32, #tpu.memory_space<vmem>>, vector<1x1x376xf32>
    %124 = vector.shape_cast %123 : vector<1x1x376xf32> to vector<1x376xf32>
    %c41 = arith.constant 41 : index
    %c0_143 = arith.constant 0 : index
    %125 = vector.load %arg4[%c41, %c0_143] : memref<81x376xf32, #tpu.memory_space<vmem>>, vector<1x376xf32>
    tpu.vector_store %arg4[%c41, %c0_143], %124 {strides = array<i32>} : memref<81x376xf32, #tpu.memory_space<vmem>>, vector<1x376xf32>,
    %c0_144 = arith.constant 0 : index
    %c0_145 = arith.constant 0 : index
    %c102 = arith.constant 102 : index
    %126 = vector.load %arg2[%c0_144, %c0_145, %c102] : memref<1x1x576xf32, #tpu.memory_space<vmem>>, vector<1x1x376xf32>
    %127 = vector.shape_cast %126 : vector<1x1x376xf32> to vector<1x376xf32>
    %c42 = arith.constant 42 : index
    %c0_146 = arith.constant 0 : index
    %128 = vector.load %arg4[%c42, %c0_146] : memref<81x376xf32, #tpu.memory_space<vmem>>, vector<1x376xf32>
    tpu.vector_store %arg4[%c42, %c0_146], %127 {strides = array<i32>} : memref<81x376xf32, #tpu.memory_space<vmem>>, vector<1x376xf32>,
    %c0_147 = arith.constant 0 : index
    %c0_148 = arith.constant 0 : index
    %c103 = arith.constant 103 : index
    %129 = vector.load %arg2[%c0_147, %c0_148, %c103] : memref<1x1x576xf32, #tpu.memory_space<vmem>>, vector<1x1x376xf32>
    %130 = vector.shape_cast %129 : vector<1x1x376xf32> to vector<1x376xf32>
    %c43 = arith.constant 43 : index
    %c0_149 = arith.constant 0 : index
    %131 = vector.load %arg4[%c43, %c0_149] : memref<81x376xf32, #tpu.memory_space<vmem>>, vector<1x376xf32>
    tpu.vector_store %arg4[%c43, %c0_149], %130 {strides = array<i32>} : memref<81x376xf32, #tpu.memory_space<vmem>>, vector<1x376xf32>,
    %c0_150 = arith.constant 0 : index
    %c0_151 = arith.constant 0 : index
    %c104 = arith.constant 104 : index
    %132 = vector.load %arg2[%c0_150, %c0_151, %c104] : memref<1x1x576xf32, #tpu.memory_space<vmem>>, vector<1x1x376xf32>
    %133 = vector.shape_cast %132 : vector<1x1x376xf32> to vector<1x376xf32>
    %c44 = arith.constant 44 : index
    %c0_152 = arith.constant 0 : index
    %134 = vector.load %arg4[%c44, %c0_152] : memref<81x376xf32, #tpu.memory_space<vmem>>, vector<1x376xf32>
    tpu.vector_store %arg4[%c44, %c0_152], %133 {strides = array<i32>} : memref<81x376xf32, #tpu.memory_space<vmem>>, vector<1x376xf32>,
    %c0_153 = arith.constant 0 : index
    %c0_154 = arith.constant 0 : index
    %c120 = arith.constant 120 : index
    %135 = vector.load %arg2[%c0_153, %c0_154, %c120] : memref<1x1x576xf32, #tpu.memory_space<vmem>>, vector<1x1x376xf32>
    %136 = vector.shape_cast %135 : vector<1x1x376xf32> to vector<1x376xf32>
    %c45 = arith.constant 45 : index
    %c0_155 = arith.constant 0 : index
    %137 = vector.load %arg4[%c45, %c0_155] : memref<81x376xf32, #tpu.memory_space<vmem>>, vector<1x376xf32>
    tpu.vector_store %arg4[%c45, %c0_155], %136 {strides = array<i32>} : memref<81x376xf32, #tpu.memory_space<vmem>>, vector<1x376xf32>,
    %c0_156 = arith.constant 0 : index
    %c0_157 = arith.constant 0 : index
    %c121 = arith.constant 121 : index
    %138 = vector.load %arg2[%c0_156, %c0_157, %c121] : memref<1x1x576xf32, #tpu.memory_space<vmem>>, vector<1x1x376xf32>
    %139 = vector.shape_cast %138 : vector<1x1x376xf32> to vector<1x376xf32>
    %c46 = arith.constant 46 : index
    %c0_158 = arith.constant 0 : index
    %140 = vector.load %arg4[%c46, %c0_158] : memref<81x376xf32, #tpu.memory_space<vmem>>, vector<1x376xf32>
    tpu.vector_store %arg4[%c46, %c0_158], %139 {strides = array<i32>} : memref<81x376xf32, #tpu.memory_space<vmem>>, vector<1x376xf32>,
    %c0_159 = arith.constant 0 : index
    %c0_160 = arith.constant 0 : index
    %c122 = arith.constant 122 : index
    %141 = vector.load %arg2[%c0_159, %c0_160, %c122] : memref<1x1x576xf32, #tpu.memory_space<vmem>>, vector<1x1x376xf32>
    %142 = vector.shape_cast %141 : vector<1x1x376xf32> to vector<1x376xf32>
    %c47 = arith.constant 47 : index
    %c0_161 = arith.constant 0 : index
    %143 = vector.load %arg4[%c47, %c0_161] : memref<81x376xf32, #tpu.memory_space<vmem>>, vector<1x376xf32>
    tpu.vector_store %arg4[%c47, %c0_161], %142 {strides = array<i32>} : memref<81x376xf32, #tpu.memory_space<vmem>>, vector<1x376xf32>,
    %c0_162 = arith.constant 0 : index
    %c0_163 = arith.constant 0 : index
    %c123 = arith.constant 123 : index
    %144 = vector.load %arg2[%c0_162, %c0_163, %c123] : memref<1x1x576xf32, #tpu.memory_space<vmem>>, vector<1x1x376xf32>
    %145 = vector.shape_cast %144 : vector<1x1x376xf32> to vector<1x376xf32>
    %c48_164 = arith.constant 48 : index
    %c0_165 = arith.constant 0 : index
    %146 = vector.load %arg4[%c48_164, %c0_165] : memref<81x376xf32, #tpu.memory_space<vmem>>, vector<1x376xf32>
    tpu.vector_store %arg4[%c48_164, %c0_165], %145 {strides = array<i32>} : memref<81x376xf32, #tpu.memory_space<vmem>>, vector<1x376xf32>,
    %c0_166 = arith.constant 0 : index
    %c0_167 = arith.constant 0 : index
    %c124 = arith.constant 124 : index
    %147 = vector.load %arg2[%c0_166, %c0_167, %c124] : memref<1x1x576xf32, #tpu.memory_space<vmem>>, vector<1x1x376xf32>
    %148 = vector.shape_cast %147 : vector<1x1x376xf32> to vector<1x376xf32>
    %c49_168 = arith.constant 49 : index
    %c0_169 = arith.constant 0 : index
    %149 = vector.load %arg4[%c49_168, %c0_169] : memref<81x376xf32, #tpu.memory_space<vmem>>, vector<1x376xf32>
    tpu.vector_store %arg4[%c49_168, %c0_169], %148 {strides = array<i32>} : memref<81x376xf32, #tpu.memory_space<vmem>>, vector<1x376xf32>,
    %c0_170 = arith.constant 0 : index
    %c0_171 = arith.constant 0 : index
    %c125 = arith.constant 125 : index
    %150 = vector.load %arg2[%c0_170, %c0_171, %c125] : memref<1x1x576xf32, #tpu.memory_space<vmem>>, vector<1x1x376xf32>
    %151 = vector.shape_cast %150 : vector<1x1x376xf32> to vector<1x376xf32>
    %c50_172 = arith.constant 50 : index
    %c0_173 = arith.constant 0 : index
    %152 = vector.load %arg4[%c50_172, %c0_173] : memref<81x376xf32, #tpu.memory_space<vmem>>, vector<1x376xf32>
    tpu.vector_store %arg4[%c50_172, %c0_173], %151 {strides = array<i32>} : memref<81x376xf32, #tpu.memory_space<vmem>>, vector<1x376xf32>,
    %c0_174 = arith.constant 0 : index
    %c0_175 = arith.constant 0 : index
    %c126 = arith.constant 126 : index
    %153 = vector.load %arg2[%c0_174, %c0_175, %c126] : memref<1x1x576xf32, #tpu.memory_space<vmem>>, vector<1x1x376xf32>
    %154 = vector.shape_cast %153 : vector<1x1x376xf32> to vector<1x376xf32>
    %c51_176 = arith.constant 51 : index
    %c0_177 = arith.constant 0 : index
    %155 = vector.load %arg4[%c51_176, %c0_177] : memref<81x376xf32, #tpu.memory_space<vmem>>, vector<1x376xf32>
    tpu.vector_store %arg4[%c51_176, %c0_177], %154 {strides = array<i32>} : memref<81x376xf32, #tpu.memory_space<vmem>>, vector<1x376xf32>,
    %c0_178 = arith.constant 0 : index
    %c0_179 = arith.constant 0 : index
    %c127 = arith.constant 127 : index
    %156 = vector.load %arg2[%c0_178, %c0_179, %c127] : memref<1x1x576xf32, #tpu.memory_space<vmem>>, vector<1x1x376xf32>
    %157 = vector.shape_cast %156 : vector<1x1x376xf32> to vector<1x376xf32>
    %c52_180 = arith.constant 52 : index
    %c0_181 = arith.constant 0 : index
    %158 = vector.load %arg4[%c52_180, %c0_181] : memref<81x376xf32, #tpu.memory_space<vmem>>, vector<1x376xf32>
    tpu.vector_store %arg4[%c52_180, %c0_181], %157 {strides = array<i32>} : memref<81x376xf32, #tpu.memory_space<vmem>>, vector<1x376xf32>,
    %c0_182 = arith.constant 0 : index
    %c0_183 = arith.constant 0 : index
    %c128 = arith.constant 128 : index
    %159 = vector.load %arg2[%c0_182, %c0_183, %c128] : memref<1x1x576xf32, #tpu.memory_space<vmem>>, vector<1x1x376xf32>
    %160 = vector.shape_cast %159 : vector<1x1x376xf32> to vector<1x376xf32>
    %c53_184 = arith.constant 53 : index
    %c0_185 = arith.constant 0 : index
    %161 = vector.load %arg4[%c53_184, %c0_185] : memref<81x376xf32, #tpu.memory_space<vmem>>, vector<1x376xf32>
    tpu.vector_store %arg4[%c53_184, %c0_185], %160 {strides = array<i32>} : memref<81x376xf32, #tpu.memory_space<vmem>>, vector<1x376xf32>,
    %c0_186 = arith.constant 0 : index
    %c0_187 = arith.constant 0 : index
    %c144 = arith.constant 144 : index
    %162 = vector.load %arg2[%c0_186, %c0_187, %c144] : memref<1x1x576xf32, #tpu.memory_space<vmem>>, vector<1x1x376xf32>
    %163 = vector.shape_cast %162 : vector<1x1x376xf32> to vector<1x376xf32>
    %c54_188 = arith.constant 54 : index
    %c0_189 = arith.constant 0 : index
    %164 = vector.load %arg4[%c54_188, %c0_189] : memref<81x376xf32, #tpu.memory_space<vmem>>, vector<1x376xf32>
    tpu.vector_store %arg4[%c54_188, %c0_189], %163 {strides = array<i32>} : memref<81x376xf32, #tpu.memory_space<vmem>>, vector<1x376xf32>,
    %c0_190 = arith.constant 0 : index
    %c0_191 = arith.constant 0 : index
    %c145 = arith.constant 145 : index
    %165 = vector.load %arg2[%c0_190, %c0_191, %c145] : memref<1x1x576xf32, #tpu.memory_space<vmem>>, vector<1x1x376xf32>
    %166 = vector.shape_cast %165 : vector<1x1x376xf32> to vector<1x376xf32>
    %c55_192 = arith.constant 55 : index
    %c0_193 = arith.constant 0 : index
    %167 = vector.load %arg4[%c55_192, %c0_193] : memref<81x376xf32, #tpu.memory_space<vmem>>, vector<1x376xf32>
    tpu.vector_store %arg4[%c55_192, %c0_193], %166 {strides = array<i32>} : memref<81x376xf32, #tpu.memory_space<vmem>>, vector<1x376xf32>,
    %c0_194 = arith.constant 0 : index
    %c0_195 = arith.constant 0 : index
    %c146 = arith.constant 146 : index
    %168 = vector.load %arg2[%c0_194, %c0_195, %c146] : memref<1x1x576xf32, #tpu.memory_space<vmem>>, vector<1x1x376xf32>
    %169 = vector.shape_cast %168 : vector<1x1x376xf32> to vector<1x376xf32>
    %c56_196 = arith.constant 56 : index
    %c0_197 = arith.constant 0 : index
    %170 = vector.load %arg4[%c56_196, %c0_197] : memref<81x376xf32, #tpu.memory_space<vmem>>, vector<1x376xf32>
    tpu.vector_store %arg4[%c56_196, %c0_197], %169 {strides = array<i32>} : memref<81x376xf32, #tpu.memory_space<vmem>>, vector<1x376xf32>,
    %c0_198 = arith.constant 0 : index
    %c0_199 = arith.constant 0 : index
    %c147 = arith.constant 147 : index
    %171 = vector.load %arg2[%c0_198, %c0_199, %c147] : memref<1x1x576xf32, #tpu.memory_space<vmem>>, vector<1x1x376xf32>
    %172 = vector.shape_cast %171 : vector<1x1x376xf32> to vector<1x376xf32>
    %c57 = arith.constant 57 : index
    %c0_200 = arith.constant 0 : index
    %173 = vector.load %arg4[%c57, %c0_200] : memref<81x376xf32, #tpu.memory_space<vmem>>, vector<1x376xf32>
    tpu.vector_store %arg4[%c57, %c0_200], %172 {strides = array<i32>} : memref<81x376xf32, #tpu.memory_space<vmem>>, vector<1x376xf32>,
    %c0_201 = arith.constant 0 : index
    %c0_202 = arith.constant 0 : index
    %c148 = arith.constant 148 : index
    %174 = vector.load %arg2[%c0_201, %c0_202, %c148] : memref<1x1x576xf32, #tpu.memory_space<vmem>>, vector<1x1x376xf32>
    %175 = vector.shape_cast %174 : vector<1x1x376xf32> to vector<1x376xf32>
    %c58 = arith.constant 58 : index
    %c0_203 = arith.constant 0 : index
    %176 = vector.load %arg4[%c58, %c0_203] : memref<81x376xf32, #tpu.memory_space<vmem>>, vector<1x376xf32>
    tpu.vector_store %arg4[%c58, %c0_203], %175 {strides = array<i32>} : memref<81x376xf32, #tpu.memory_space<vmem>>, vector<1x376xf32>,
    %c0_204 = arith.constant 0 : index
    %c0_205 = arith.constant 0 : index
    %c149 = arith.constant 149 : index
    %177 = vector.load %arg2[%c0_204, %c0_205, %c149] : memref<1x1x576xf32, #tpu.memory_space<vmem>>, vector<1x1x376xf32>
    %178 = vector.shape_cast %177 : vector<1x1x376xf32> to vector<1x376xf32>
    %c59 = arith.constant 59 : index
    %c0_206 = arith.constant 0 : index
    %179 = vector.load %arg4[%c59, %c0_206] : memref<81x376xf32, #tpu.memory_space<vmem>>, vector<1x376xf32>
    tpu.vector_store %arg4[%c59, %c0_206], %178 {strides = array<i32>} : memref<81x376xf32, #tpu.memory_space<vmem>>, vector<1x376xf32>,
    %c0_207 = arith.constant 0 : index
    %c0_208 = arith.constant 0 : index
    %c150 = arith.constant 150 : index
    %180 = vector.load %arg2[%c0_207, %c0_208, %c150] : memref<1x1x576xf32, #tpu.memory_space<vmem>>, vector<1x1x376xf32>
    %181 = vector.shape_cast %180 : vector<1x1x376xf32> to vector<1x376xf32>
    %c60 = arith.constant 60 : index
    %c0_209 = arith.constant 0 : index
    %182 = vector.load %arg4[%c60, %c0_209] : memref<81x376xf32, #tpu.memory_space<vmem>>, vector<1x376xf32>
    tpu.vector_store %arg4[%c60, %c0_209], %181 {strides = array<i32>} : memref<81x376xf32, #tpu.memory_space<vmem>>, vector<1x376xf32>,
    %c0_210 = arith.constant 0 : index
    %c0_211 = arith.constant 0 : index
    %c151 = arith.constant 151 : index
    %183 = vector.load %arg2[%c0_210, %c0_211, %c151] : memref<1x1x576xf32, #tpu.memory_space<vmem>>, vector<1x1x376xf32>
    %184 = vector.shape_cast %183 : vector<1x1x376xf32> to vector<1x376xf32>
    %c61 = arith.constant 61 : index
    %c0_212 = arith.constant 0 : index
    %185 = vector.load %arg4[%c61, %c0_212] : memref<81x376xf32, #tpu.memory_space<vmem>>, vector<1x376xf32>
    tpu.vector_store %arg4[%c61, %c0_212], %184 {strides = array<i32>} : memref<81x376xf32, #tpu.memory_space<vmem>>, vector<1x376xf32>,
    %c0_213 = arith.constant 0 : index
    %c0_214 = arith.constant 0 : index
    %c152 = arith.constant 152 : index
    %186 = vector.load %arg2[%c0_213, %c0_214, %c152] : memref<1x1x576xf32, #tpu.memory_space<vmem>>, vector<1x1x376xf32>
    %187 = vector.shape_cast %186 : vector<1x1x376xf32> to vector<1x376xf32>
    %c62 = arith.constant 62 : index
    %c0_215 = arith.constant 0 : index
    %188 = vector.load %arg4[%c62, %c0_215] : memref<81x376xf32, #tpu.memory_space<vmem>>, vector<1x376xf32>
    tpu.vector_store %arg4[%c62, %c0_215], %187 {strides = array<i32>} : memref<81x376xf32, #tpu.memory_space<vmem>>, vector<1x376xf32>,
    %c0_216 = arith.constant 0 : index
    %c0_217 = arith.constant 0 : index
    %c168 = arith.constant 168 : index
    %189 = vector.load %arg2[%c0_216, %c0_217, %c168] : memref<1x1x576xf32, #tpu.memory_space<vmem>>, vector<1x1x376xf32>
    %190 = vector.shape_cast %189 : vector<1x1x376xf32> to vector<1x376xf32>
    %c63 = arith.constant 63 : index
    %c0_218 = arith.constant 0 : index
    %191 = vector.load %arg4[%c63, %c0_218] : memref<81x376xf32, #tpu.memory_space<vmem>>, vector<1x376xf32>
    tpu.vector_store %arg4[%c63, %c0_218], %190 {strides = array<i32>} : memref<81x376xf32, #tpu.memory_space<vmem>>, vector<1x376xf32>,
    %c0_219 = arith.constant 0 : index
    %c0_220 = arith.constant 0 : index
    %c169 = arith.constant 169 : index
    %192 = vector.load %arg2[%c0_219, %c0_220, %c169] : memref<1x1x576xf32, #tpu.memory_space<vmem>>, vector<1x1x376xf32>
    %193 = vector.shape_cast %192 : vector<1x1x376xf32> to vector<1x376xf32>
    %c64 = arith.constant 64 : index
    %c0_221 = arith.constant 0 : index
    %194 = vector.load %arg4[%c64, %c0_221] : memref<81x376xf32, #tpu.memory_space<vmem>>, vector<1x376xf32>
    tpu.vector_store %arg4[%c64, %c0_221], %193 {strides = array<i32>} : memref<81x376xf32, #tpu.memory_space<vmem>>, vector<1x376xf32>,
    %c0_222 = arith.constant 0 : index
    %c0_223 = arith.constant 0 : index
    %c170 = arith.constant 170 : index
    %195 = vector.load %arg2[%c0_222, %c0_223, %c170] : memref<1x1x576xf32, #tpu.memory_space<vmem>>, vector<1x1x376xf32>
    %196 = vector.shape_cast %195 : vector<1x1x376xf32> to vector<1x376xf32>
    %c65 = arith.constant 65 : index
    %c0_224 = arith.constant 0 : index
    %197 = vector.load %arg4[%c65, %c0_224] : memref<81x376xf32, #tpu.memory_space<vmem>>, vector<1x376xf32>
    tpu.vector_store %arg4[%c65, %c0_224], %196 {strides = array<i32>} : memref<81x376xf32, #tpu.memory_space<vmem>>, vector<1x376xf32>,
    %c0_225 = arith.constant 0 : index
    %c0_226 = arith.constant 0 : index
    %c171 = arith.constant 171 : index
    %198 = vector.load %arg2[%c0_225, %c0_226, %c171] : memref<1x1x576xf32, #tpu.memory_space<vmem>>, vector<1x1x376xf32>
    %199 = vector.shape_cast %198 : vector<1x1x376xf32> to vector<1x376xf32>
    %c66 = arith.constant 66 : index
    %c0_227 = arith.constant 0 : index
    %200 = vector.load %arg4[%c66, %c0_227] : memref<81x376xf32, #tpu.memory_space<vmem>>, vector<1x376xf32>
    tpu.vector_store %arg4[%c66, %c0_227], %199 {strides = array<i32>} : memref<81x376xf32, #tpu.memory_space<vmem>>, vector<1x376xf32>,
    %c0_228 = arith.constant 0 : index
    %c0_229 = arith.constant 0 : index
    %c172 = arith.constant 172 : index
    %201 = vector.load %arg2[%c0_228, %c0_229, %c172] : memref<1x1x576xf32, #tpu.memory_space<vmem>>, vector<1x1x376xf32>
    %202 = vector.shape_cast %201 : vector<1x1x376xf32> to vector<1x376xf32>
    %c67 = arith.constant 67 : index
    %c0_230 = arith.constant 0 : index
    %203 = vector.load %arg4[%c67, %c0_230] : memref<81x376xf32, #tpu.memory_space<vmem>>, vector<1x376xf32>
    tpu.vector_store %arg4[%c67, %c0_230], %202 {strides = array<i32>} : memref<81x376xf32, #tpu.memory_space<vmem>>, vector<1x376xf32>,
    %c0_231 = arith.constant 0 : index
    %c0_232 = arith.constant 0 : index
    %c173 = arith.constant 173 : index
    %204 = vector.load %arg2[%c0_231, %c0_232, %c173] : memref<1x1x576xf32, #tpu.memory_space<vmem>>, vector<1x1x376xf32>
    %205 = vector.shape_cast %204 : vector<1x1x376xf32> to vector<1x376xf32>
    %c68 = arith.constant 68 : index
    %c0_233 = arith.constant 0 : index
    %206 = vector.load %arg4[%c68, %c0_233] : memref<81x376xf32, #tpu.memory_space<vmem>>, vector<1x376xf32>
    tpu.vector_store %arg4[%c68, %c0_233], %205 {strides = array<i32>} : memref<81x376xf32, #tpu.memory_space<vmem>>, vector<1x376xf32>,
    %c0_234 = arith.constant 0 : index
    %c0_235 = arith.constant 0 : index
    %c174 = arith.constant 174 : index
    %207 = vector.load %arg2[%c0_234, %c0_235, %c174] : memref<1x1x576xf32, #tpu.memory_space<vmem>>, vector<1x1x376xf32>
    %208 = vector.shape_cast %207 : vector<1x1x376xf32> to vector<1x376xf32>
    %c69 = arith.constant 69 : index
    %c0_236 = arith.constant 0 : index
    %209 = vector.load %arg4[%c69, %c0_236] : memref<81x376xf32, #tpu.memory_space<vmem>>, vector<1x376xf32>
    tpu.vector_store %arg4[%c69, %c0_236], %208 {strides = array<i32>} : memref<81x376xf32, #tpu.memory_space<vmem>>, vector<1x376xf32>,
    %c0_237 = arith.constant 0 : index
    %c0_238 = arith.constant 0 : index
    %c175 = arith.constant 175 : index
    %210 = vector.load %arg2[%c0_237, %c0_238, %c175] : memref<1x1x576xf32, #tpu.memory_space<vmem>>, vector<1x1x376xf32>
    %211 = vector.shape_cast %210 : vector<1x1x376xf32> to vector<1x376xf32>
    %c70 = arith.constant 70 : index
    %c0_239 = arith.constant 0 : index
    %212 = vector.load %arg4[%c70, %c0_239] : memref<81x376xf32, #tpu.memory_space<vmem>>, vector<1x376xf32>
    tpu.vector_store %arg4[%c70, %c0_239], %211 {strides = array<i32>} : memref<81x376xf32, #tpu.memory_space<vmem>>, vector<1x376xf32>,
    %c0_240 = arith.constant 0 : index
    %c0_241 = arith.constant 0 : index
    %c176 = arith.constant 176 : index
    %213 = vector.load %arg2[%c0_240, %c0_241, %c176] : memref<1x1x576xf32, #tpu.memory_space<vmem>>, vector<1x1x376xf32>
    %214 = vector.shape_cast %213 : vector<1x1x376xf32> to vector<1x376xf32>
    %c71 = arith.constant 71 : index
    %c0_242 = arith.constant 0 : index
    %215 = vector.load %arg4[%c71, %c0_242] : memref<81x376xf32, #tpu.memory_space<vmem>>, vector<1x376xf32>
    tpu.vector_store %arg4[%c71, %c0_242], %214 {strides = array<i32>} : memref<81x376xf32, #tpu.memory_space<vmem>>, vector<1x376xf32>,
    %c0_243 = arith.constant 0 : index
    %c0_244 = arith.constant 0 : index
    %c192 = arith.constant 192 : index
    %216 = vector.load %arg2[%c0_243, %c0_244, %c192] : memref<1x1x576xf32, #tpu.memory_space<vmem>>, vector<1x1x376xf32>
    %217 = vector.shape_cast %216 : vector<1x1x376xf32> to vector<1x376xf32>
    %c72_245 = arith.constant 72 : index
    %c0_246 = arith.constant 0 : index
    %218 = vector.load %arg4[%c72_245, %c0_246] : memref<81x376xf32, #tpu.memory_space<vmem>>, vector<1x376xf32>
    tpu.vector_store %arg4[%c72_245, %c0_246], %217 {strides = array<i32>} : memref<81x376xf32, #tpu.memory_space<vmem>>, vector<1x376xf32>,
    %c0_247 = arith.constant 0 : index
    %c0_248 = arith.constant 0 : index
    %c193 = arith.constant 193 : index
    %219 = vector.load %arg2[%c0_247, %c0_248, %c193] : memref<1x1x576xf32, #tpu.memory_space<vmem>>, vector<1x1x376xf32>
    %220 = vector.shape_cast %219 : vector<1x1x376xf32> to vector<1x376xf32>
    %c73_249 = arith.constant 73 : index
    %c0_250 = arith.constant 0 : index
    %221 = vector.load %arg4[%c73_249, %c0_250] : memref<81x376xf32, #tpu.memory_space<vmem>>, vector<1x376xf32>
    tpu.vector_store %arg4[%c73_249, %c0_250], %220 {strides = array<i32>} : memref<81x376xf32, #tpu.memory_space<vmem>>, vector<1x376xf32>,
    %c0_251 = arith.constant 0 : index
    %c0_252 = arith.constant 0 : index
    %c194 = arith.constant 194 : index
    %222 = vector.load %arg2[%c0_251, %c0_252, %c194] : memref<1x1x576xf32, #tpu.memory_space<vmem>>, vector<1x1x376xf32>
    %223 = vector.shape_cast %222 : vector<1x1x376xf32> to vector<1x376xf32>
    %c74_253 = arith.constant 74 : index
    %c0_254 = arith.constant 0 : index
    %224 = vector.load %arg4[%c74_253, %c0_254] : memref<81x376xf32, #tpu.memory_space<vmem>>, vector<1x376xf32>
    tpu.vector_store %arg4[%c74_253, %c0_254], %223 {strides = array<i32>} : memref<81x376xf32, #tpu.memory_space<vmem>>, vector<1x376xf32>,
    %c0_255 = arith.constant 0 : index
    %c0_256 = arith.constant 0 : index
    %c195 = arith.constant 195 : index
    %225 = vector.load %arg2[%c0_255, %c0_256, %c195] : memref<1x1x576xf32, #tpu.memory_space<vmem>>, vector<1x1x376xf32>
    %226 = vector.shape_cast %225 : vector<1x1x376xf32> to vector<1x376xf32>
    %c75_257 = arith.constant 75 : index
    %c0_258 = arith.constant 0 : index
    %227 = vector.load %arg4[%c75_257, %c0_258] : memref<81x376xf32, #tpu.memory_space<vmem>>, vector<1x376xf32>
    tpu.vector_store %arg4[%c75_257, %c0_258], %226 {strides = array<i32>} : memref<81x376xf32, #tpu.memory_space<vmem>>, vector<1x376xf32>,
    %c0_259 = arith.constant 0 : index
    %c0_260 = arith.constant 0 : index
    %c196 = arith.constant 196 : index
    %228 = vector.load %arg2[%c0_259, %c0_260, %c196] : memref<1x1x576xf32, #tpu.memory_space<vmem>>, vector<1x1x376xf32>
    %229 = vector.shape_cast %228 : vector<1x1x376xf32> to vector<1x376xf32>
    %c76_261 = arith.constant 76 : index
    %c0_262 = arith.constant 0 : index
    %230 = vector.load %arg4[%c76_261, %c0_262] : memref<81x376xf32, #tpu.memory_space<vmem>>, vector<1x376xf32>
    tpu.vector_store %arg4[%c76_261, %c0_262], %229 {strides = array<i32>} : memref<81x376xf32, #tpu.memory_space<vmem>>, vector<1x376xf32>,
    %c0_263 = arith.constant 0 : index
    %c0_264 = arith.constant 0 : index
    %c197 = arith.constant 197 : index
    %231 = vector.load %arg2[%c0_263, %c0_264, %c197] : memref<1x1x576xf32, #tpu.memory_space<vmem>>, vector<1x1x376xf32>
    %232 = vector.shape_cast %231 : vector<1x1x376xf32> to vector<1x376xf32>
    %c77_265 = arith.constant 77 : index
    %c0_266 = arith.constant 0 : index
    %233 = vector.load %arg4[%c77_265, %c0_266] : memref<81x376xf32, #tpu.memory_space<vmem>>, vector<1x376xf32>
    tpu.vector_store %arg4[%c77_265, %c0_266], %232 {strides = array<i32>} : memref<81x376xf32, #tpu.memory_space<vmem>>, vector<1x376xf32>,
    %c0_267 = arith.constant 0 : index
    %c0_268 = arith.constant 0 : index
    %c198 = arith.constant 198 : index
    %234 = vector.load %arg2[%c0_267, %c0_268, %c198] : memref<1x1x576xf32, #tpu.memory_space<vmem>>, vector<1x1x376xf32>
    %235 = vector.shape_cast %234 : vector<1x1x376xf32> to vector<1x376xf32>
    %c78_269 = arith.constant 78 : index
    %c0_270 = arith.constant 0 : index
    %236 = vector.load %arg4[%c78_269, %c0_270] : memref<81x376xf32, #tpu.memory_space<vmem>>, vector<1x376xf32>
    tpu.vector_store %arg4[%c78_269, %c0_270], %235 {strides = array<i32>} : memref<81x376xf32, #tpu.memory_space<vmem>>, vector<1x376xf32>,
    %c0_271 = arith.constant 0 : index
    %c0_272 = arith.constant 0 : index
    %c199 = arith.constant 199 : index
    %237 = vector.load %arg2[%c0_271, %c0_272, %c199] : memref<1x1x576xf32, #tpu.memory_space<vmem>>, vector<1x1x376xf32>
    %238 = vector.shape_cast %237 : vector<1x1x376xf32> to vector<1x376xf32>
    %c79_273 = arith.constant 79 : index
    %c0_274 = arith.constant 0 : index
    %239 = vector.load %arg4[%c79_273, %c0_274] : memref<81x376xf32, #tpu.memory_space<vmem>>, vector<1x376xf32>
    tpu.vector_store %arg4[%c79_273, %c0_274], %238 {strides = array<i32>} : memref<81x376xf32, #tpu.memory_space<vmem>>, vector<1x376xf32>,
    %c0_275 = arith.constant 0 : index
    %c0_276 = arith.constant 0 : index
    %c200 = arith.constant 200 : index
    %240 = vector.load %arg2[%c0_275, %c0_276, %c200] : memref<1x1x576xf32, #tpu.memory_space<vmem>>, vector<1x1x376xf32>
    %241 = vector.shape_cast %240 : vector<1x1x376xf32> to vector<1x376xf32>
    %c80_277 = arith.constant 80 : index
    %c0_278 = arith.constant 0 : index
    %242 = vector.load %arg4[%c80_277, %c0_278] : memref<81x376xf32, #tpu.memory_space<vmem>>, vector<1x376xf32>
    tpu.vector_store %arg4[%c80_277, %c0_278], %241 {strides = array<i32>} : memref<81x376xf32, #tpu.memory_space<vmem>>, vector<1x376xf32>,
    %c0_279 = arith.constant 0 : index
    %c0_280 = arith.constant 0 : index
    %243 = vector.load %arg1[%c0_279, %c0_280] : memref<96x81xf32, #tpu.memory_space<vmem>>, vector<96x81xf32>
    %c0_281 = arith.constant 0 : index
    %c0_282 = arith.constant 0 : index
    %244 = vector.load %arg4[%c0_281, %c0_282] : memref<81x376xf32, #tpu.memory_space<vmem>>, vector<81x376xf32>
    %cst = arith.constant dense<0.000000e+00> : vector<96x376xf32>
    %245 = tpu.matmul %243, %244, %cst {dimension_numbers = #tpu.dot_dimension_numbers<[1], [0], [0], [1], [0, 0, 1, 1], [], []>} : vector<96x81xf32>, vector<81x376xf32>, vector<96x376xf32> -> vector<96x376xf32>
    %246 = vector.extract_strided_slice %245 {offsets = [0, 0], sizes = [96, 16], strides = [1, 1]} : vector<96x376xf32> to vector<96x16xf32>
    %c0_283 = arith.constant 0 : index
    %c0_284 = arith.constant 0 : index
    %c0_285 = arith.constant 0 : index
    %247 = vector.load %arg3[%c0_283, %c0_284, %c0_285] : memref<1x96x256xf32, #tpu.memory_space<vmem>>, vector<1x96x16xf32>
    %248 = vector.shape_cast %247 : vector<1x96x16xf32> to vector<96x16xf32>
    %249 = vector.shape_cast %246 : vector<96x16xf32> to vector<1x96x16xf32>
    tpu.vector_store %arg3[%c0_283, %c0_284, %c0_285], %249 {strides = array<i32>} : memref<1x96x256xf32, #tpu.memory_space<vmem>>, vector<1x96x16xf32>,
    %250 = vector.extract_strided_slice %245 {offsets = [0, 24], sizes = [96, 16], strides = [1, 1]} : vector<96x376xf32> to vector<96x16xf32>
    %c0_286 = arith.constant 0 : index
    %c0_287 = arith.constant 0 : index
    %c16_288 = arith.constant 16 : index
    %251 = vector.load %arg3[%c0_286, %c0_287, %c16_288] : memref<1x96x256xf32, #tpu.memory_space<vmem>>, vector<1x96x16xf32>
    %252 = vector.shape_cast %251 : vector<1x96x16xf32> to vector<96x16xf32>
    %253 = vector.shape_cast %250 : vector<96x16xf32> to vector<1x96x16xf32>
    tpu.vector_store %arg3[%c0_286, %c0_287, %c16_288], %253 {strides = array<i32>} : memref<1x96x256xf32, #tpu.memory_space<vmem>>, vector<1x96x16xf32>,
    %254 = vector.extract_strided_slice %245 {offsets = [0, 48], sizes = [96, 16], strides = [1, 1]} : vector<96x376xf32> to vector<96x16xf32>
    %c0_289 = arith.constant 0 : index
    %c0_290 = arith.constant 0 : index
    %c32_291 = arith.constant 32 : index
    %255 = vector.load %arg3[%c0_289, %c0_290, %c32_291] : memref<1x96x256xf32, #tpu.memory_space<vmem>>, vector<1x96x16xf32>
    %256 = vector.shape_cast %255 : vector<1x96x16xf32> to vector<96x16xf32>
    %257 = vector.shape_cast %254 : vector<96x16xf32> to vector<1x96x16xf32>
    tpu.vector_store %arg3[%c0_289, %c0_290, %c32_291], %257 {strides = array<i32>} : memref<1x96x256xf32, #tpu.memory_space<vmem>>, vector<1x96x16xf32>,
    %258 = vector.extract_strided_slice %245 {offsets = [0, 72], sizes = [96, 16], strides = [1, 1]} : vector<96x376xf32> to vector<96x16xf32>
    %c0_292 = arith.constant 0 : index
    %c0_293 = arith.constant 0 : index
    %c48_294 = arith.constant 48 : index
    %259 = vector.load %arg3[%c0_292, %c0_293, %c48_294] : memref<1x96x256xf32, #tpu.memory_space<vmem>>, vector<1x96x16xf32>
    %260 = vector.shape_cast %259 : vector<1x96x16xf32> to vector<96x16xf32>
    %261 = vector.shape_cast %258 : vector<96x16xf32> to vector<1x96x16xf32>
    tpu.vector_store %arg3[%c0_292, %c0_293, %c48_294], %261 {strides = array<i32>} : memref<1x96x256xf32, #tpu.memory_space<vmem>>, vector<1x96x16xf32>,
    %262 = vector.extract_strided_slice %245 {offsets = [0, 96], sizes = [96, 16], strides = [1, 1]} : vector<96x376xf32> to vector<96x16xf32>
    %c0_295 = arith.constant 0 : index
    %c0_296 = arith.constant 0 : index
    %c64_297 = arith.constant 64 : index
    %263 = vector.load %arg3[%c0_295, %c0_296, %c64_297] : memref<1x96x256xf32, #tpu.memory_space<vmem>>, vector<1x96x16xf32>
    %264 = vector.shape_cast %263 : vector<1x96x16xf32> to vector<96x16xf32>
    %265 = vector.shape_cast %262 : vector<96x16xf32> to vector<1x96x16xf32>
    tpu.vector_store %arg3[%c0_295, %c0_296, %c64_297], %265 {strides = array<i32>} : memref<1x96x256xf32, #tpu.memory_space<vmem>>, vector<1x96x16xf32>,
    %266 = vector.extract_strided_slice %245 {offsets = [0, 120], sizes = [96, 16], strides = [1, 1]} : vector<96x376xf32> to vector<96x16xf32>
    %c0_298 = arith.constant 0 : index
    %c0_299 = arith.constant 0 : index
    %c80_300 = arith.constant 80 : index
    %267 = vector.load %arg3[%c0_298, %c0_299, %c80_300] : memref<1x96x256xf32, #tpu.memory_space<vmem>>, vector<1x96x16xf32>
    %268 = vector.shape_cast %267 : vector<1x96x16xf32> to vector<96x16xf32>
    %269 = vector.shape_cast %266 : vector<96x16xf32> to vector<1x96x16xf32>
    tpu.vector_store %arg3[%c0_298, %c0_299, %c80_300], %269 {strides = array<i32>} : memref<1x96x256xf32, #tpu.memory_space<vmem>>, vector<1x96x16xf32>,
    %270 = vector.extract_strided_slice %245 {offsets = [0, 144], sizes = [96, 16], strides = [1, 1]} : vector<96x376xf32> to vector<96x16xf32>
    %c0_301 = arith.constant 0 : index
    %c0_302 = arith.constant 0 : index
    %c96_303 = arith.constant 96 : index
    %271 = vector.load %arg3[%c0_301, %c0_302, %c96_303] : memref<1x96x256xf32, #tpu.memory_space<vmem>>, vector<1x96x16xf32>
    %272 = vector.shape_cast %271 : vector<1x96x16xf32> to vector<96x16xf32>
    %273 = vector.shape_cast %270 : vector<96x16xf32> to vector<1x96x16xf32>
    tpu.vector_store %arg3[%c0_301, %c0_302, %c96_303], %273 {strides = array<i32>} : memref<1x96x256xf32, #tpu.memory_space<vmem>>, vector<1x96x16xf32>,
    %274 = vector.extract_strided_slice %245 {offsets = [0, 168], sizes = [96, 16], strides = [1, 1]} : vector<96x376xf32> to vector<96x16xf32>
    %c0_304 = arith.constant 0 : index
    %c0_305 = arith.constant 0 : index
    %c112 = arith.constant 112 : index
    %275 = vector.load %arg3[%c0_304, %c0_305, %c112] : memref<1x96x256xf32, #tpu.memory_space<vmem>>, vector<1x96x16xf32>
    %276 = vector.shape_cast %275 : vector<1x96x16xf32> to vector<96x16xf32>
    %277 = vector.shape_cast %274 : vector<96x16xf32> to vector<1x96x16xf32>
    tpu.vector_store %arg3[%c0_304, %c0_305, %c112], %277 {strides = array<i32>} : memref<1x96x256xf32, #tpu.memory_space<vmem>>, vector<1x96x16xf32>,
    %278 = vector.extract_strided_slice %245 {offsets = [0, 192], sizes = [96, 16], strides = [1, 1]} : vector<96x376xf32> to vector<96x16xf32>
    %c0_306 = arith.constant 0 : index
    %c0_307 = arith.constant 0 : index
    %c128_308 = arith.constant 128 : index
    %279 = vector.load %arg3[%c0_306, %c0_307, %c128_308] : memref<1x96x256xf32, #tpu.memory_space<vmem>>, vector<1x96x16xf32>
    %280 = vector.shape_cast %279 : vector<1x96x16xf32> to vector<96x16xf32>
    %281 = vector.shape_cast %278 : vector<96x16xf32> to vector<1x96x16xf32>
    tpu.vector_store %arg3[%c0_306, %c0_307, %c128_308], %281 {strides = array<i32>} : memref<1x96x256xf32, #tpu.memory_space<vmem>>, vector<1x96x16xf32>,
    %282 = vector.extract_strided_slice %245 {offsets = [0, 216], sizes = [96, 16], strides = [1, 1]} : vector<96x376xf32> to vector<96x16xf32>
    %c0_309 = arith.constant 0 : index
    %c0_310 = arith.constant 0 : index
    %c144_311 = arith.constant 144 : index
    %283 = vector.load %arg3[%c0_309, %c0_310, %c144_311] : memref<1x96x256xf32, #tpu.memory_space<vmem>>, vector<1x96x16xf32>
    %284 = vector.shape_cast %283 : vector<1x96x16xf32> to vector<96x16xf32>
    %285 = vector.shape_cast %282 : vector<96x16xf32> to vector<1x96x16xf32>
    tpu.vector_store %arg3[%c0_309, %c0_310, %c144_311], %285 {strides = array<i32>} : memref<1x96x256xf32, #tpu.memory_space<vmem>>, vector<1x96x16xf32>,
    %286 = vector.extract_strided_slice %245 {offsets = [0, 240], sizes = [96, 16], strides = [1, 1]} : vector<96x376xf32> to vector<96x16xf32>
    %c0_312 = arith.constant 0 : index
    %c0_313 = arith.constant 0 : index
    %c160 = arith.constant 160 : index
    %287 = vector.load %arg3[%c0_312, %c0_313, %c160] : memref<1x96x256xf32, #tpu.memory_space<vmem>>, vector<1x96x16xf32>
    %288 = vector.shape_cast %287 : vector<1x96x16xf32> to vector<96x16xf32>
    %289 = vector.shape_cast %286 : vector<96x16xf32> to vector<1x96x16xf32>
    tpu.vector_store %arg3[%c0_312, %c0_313, %c160], %289 {strides = array<i32>} : memref<1x96x256xf32, #tpu.memory_space<vmem>>, vector<1x96x16xf32>,
    %290 = vector.extract_strided_slice %245 {offsets = [0, 264], sizes = [96, 16], strides = [1, 1]} : vector<96x376xf32> to vector<96x16xf32>
    %c0_314 = arith.constant 0 : index
    %c0_315 = arith.constant 0 : index
    %c176_316 = arith.constant 176 : index
    %291 = vector.load %arg3[%c0_314, %c0_315, %c176_316] : memref<1x96x256xf32, #tpu.memory_space<vmem>>, vector<1x96x16xf32>
    %292 = vector.shape_cast %291 : vector<1x96x16xf32> to vector<96x16xf32>
    %293 = vector.shape_cast %290 : vector<96x16xf32> to vector<1x96x16xf32>
    tpu.vector_store %arg3[%c0_314, %c0_315, %c176_316], %293 {strides = array<i32>} : memref<1x96x256xf32, #tpu.memory_space<vmem>>, vector<1x96x16xf32>,
    %294 = vector.extract_strided_slice %245 {offsets = [0, 288], sizes = [96, 16], strides = [1, 1]} : vector<96x376xf32> to vector<96x16xf32>
    %c0_317 = arith.constant 0 : index
    %c0_318 = arith.constant 0 : index
    %c192_319 = arith.constant 192 : index
    %295 = vector.load %arg3[%c0_317, %c0_318, %c192_319] : memref<1x96x256xf32, #tpu.memory_space<vmem>>, vector<1x96x16xf32>
    %296 = vector.shape_cast %295 : vector<1x96x16xf32> to vector<96x16xf32>
    %297 = vector.shape_cast %294 : vector<96x16xf32> to vector<1x96x16xf32>
    tpu.vector_store %arg3[%c0_317, %c0_318, %c192_319], %297 {strides = array<i32>} : memref<1x96x256xf32, #tpu.memory_space<vmem>>, vector<1x96x16xf32>,
    %298 = vector.extract_strided_slice %245 {offsets = [0, 312], sizes = [96, 16], strides = [1, 1]} : vector<96x376xf32> to vector<96x16xf32>
    %c0_320 = arith.constant 0 : index
    %c0_321 = arith.constant 0 : index
    %c208 = arith.constant 208 : index
    %299 = vector.load %arg3[%c0_320, %c0_321, %c208] : memref<1x96x256xf32, #tpu.memory_space<vmem>>, vector<1x96x16xf32>
    %300 = vector.shape_cast %299 : vector<1x96x16xf32> to vector<96x16xf32>
    %301 = vector.shape_cast %298 : vector<96x16xf32> to vector<1x96x16xf32>
    tpu.vector_store %arg3[%c0_320, %c0_321, %c208], %301 {strides = array<i32>} : memref<1x96x256xf32, #tpu.memory_space<vmem>>, vector<1x96x16xf32>,
    %302 = vector.extract_strided_slice %245 {offsets = [0, 336], sizes = [96, 16], strides = [1, 1]} : vector<96x376xf32> to vector<96x16xf32>
    %c0_322 = arith.constant 0 : index
    %c0_323 = arith.constant 0 : index
    %c224 = arith.constant 224 : index
    %303 = vector.load %arg3[%c0_322, %c0_323, %c224] : memref<1x96x256xf32, #tpu.memory_space<vmem>>, vector<1x96x16xf32>
    %304 = vector.shape_cast %303 : vector<1x96x16xf32> to vector<96x16xf32>
    %305 = vector.shape_cast %302 : vector<96x16xf32> to vector<1x96x16xf32>
    tpu.vector_store %arg3[%c0_322, %c0_323, %c224], %305 {strides = array<i32>} : memref<1x96x256xf32, #tpu.memory_space<vmem>>, vector<1x96x16xf32>,
    %306 = vector.extract_strided_slice %245 {offsets = [0, 360], sizes = [96, 16], strides = [1, 1]} : vector<96x376xf32> to vector<96x16xf32>
    %c0_324 = arith.constant 0 : index
    %c0_325 = arith.constant 0 : index
    %c240 = arith.constant 240 : index
    %307 = vector.load %arg3[%c0_324, %c0_325, %c240] : memref<1x96x256xf32, #tpu.memory_space<vmem>>, vector<1x96x16xf32>
    %308 = vector.shape_cast %307 : vector<1x96x16xf32> to vector<96x16xf32>
    %309 = vector.shape_cast %306 : vector<96x16xf32> to vector<1x96x16xf32>
    tpu.vector_store %arg3[%c0_324, %c0_325, %c240], %309 {strides = array<i32>} : memref<1x96x256xf32, #tpu.memory_space<vmem>>, vector<1x96x16xf32>,
    return
  }
  func.func @transform_0(%arg0: i32) -> (i32, i32) {
    %c0_i32 = arith.constant 0 : i32
    %c0_i32_0 = arith.constant 0 : i32
    %c0_i32_1 = arith.constant 0 : i32
    return %c0_i32, %c0_i32_0 : i32, i32
  }
  func.func @transform_1(%arg0: i32) -> (i32, i32, i32) {
    %c0_i32 = arith.constant 0 : i32
    %c0_i32_0 = arith.constant 0 : i32
    %c0_i32_1 = arith.constant 0 : i32
    return %arg0, %c0_i32, %c0_i32_0 : i32, i32, i32
  }
  func.func @transform_2(%arg0: i32) -> (i32, i32, i32) {
    %c0_i32 = arith.constant 0 : i32
    %c0_i32_0 = arith.constant 0 : i32
    %c0_i32_1 = arith.constant 0 : i32
    return %arg0, %c0_i32, %c0_i32_0 : i32, i32, i32
  }
}

</mosaic_0001>

<llo_original>
// kernel: tpu_custom_call.1
$region0: #{tpu_custom_call.1}
  #allocation0 [shape = 'u32[]', space=smem, size = 0x4, offset = 0x4, fixed_abs, tag = 'smem constant byte address 0x4 - core index']
  #allocation1 [shape = 'u32[72,128]{1,0:T(1,128)}', space=vmem, size = 0x9000, scoped, tag = 'internal scratch']
  #allocation2 [shape = 'f32[81,376]{1,0:T(8,128)}', space=vmem, size = 0x21000, scoped, tag = 'scratch operand']
  %s0 = inlined_call_operand.vmem [shape: f32[96,81], index: 0, kind: input, shape index: {}]
  %s1 = inlined_call_operand.vmem [shape: f32[8,1,576], index: 1, kind: input, shape index: {}]
  %s2 = inlined_call_operand.hbm [shape: f32[8,96,256], index: 2, kind: output, shape index: {}]
  %s3 = sld [smem:[#allocation0]]
  $region41: #{tpu_custom_call.1} parent=0
    _
  %s5 = ssub.s32 1, %s3
  %s6 = scalar_select 0, %s5, %s3
  $region1: #{tpu_custom_call.1} parent=0
    #allocation3 [shape = 'u8[196608]{0}', space=vmem, size = 0x30000, scoped, tag = 'output window, operand 0']
    #allocation4 [shape = 's32[2]{0}', space=sflag, size = 0x8, scoped, tag = 'scoped memory for tpu_custom_call.1']
    %7 = vsyncpa [#allocation4], 0
    %s8 = scalar_lea.sflag [#allocation4], 1
    %9 = vsyncpa %s8, 0
    loop: start=0, step=1, limit=10
    $region2: #{tpu_custom_call.1} parent=1 // loop_pre_header
      _
    $region3: #{tpu_custom_call.1} parent=1 // loop_header
      %s11 = sphi 0, %s15
      %p12 = scmp.ge.s32.totalorder %s11, 10
      %s19 = sphi 0, %s19
      %s21 = sphi 0, %s19
      %s22 = sphi 0, %s21
      %s36 = sphi 0, %s22
      %s42 = sphi 0, %s44
      %s45 = sphi 0, %s42
      %s46 = sphi 0, %s45
      %s62 = sphi 0, %s46
      %s68 = sphi 0, %s70
      %s71 = sphi 0, %s68
      %s72 = sphi 0, %s71
      %s88 = sphi 0, %s72
    $region4: #{tpu_custom_call.1} parent=1 // loop_header_branch
      %14 = sbr.rel (%p12) target = $region8
    $region5: #{tpu_custom_call.1} parent=1 // loop_body
      %s16 = ssub.s32 %s11, 1
      %s17 = ssub.s32 %s11, 2
      %s18 = sadd.s32 %s11, 1
      %s20 = sadd.s32 %s19, 1
      %p23 = scmp.eq.s32.totalorder %s11, 7
      %p24 = scmp.ne.s32.totalorder %s19, %s21
      %p25 = scmp.eq.s32.totalorder %s11, 0
      %p26 = por %p24, %p25
      %p27 = scmp.ne.s32.totalorder %s19, %s21
      %p28 = scmp.eq.s32.totalorder %s16, 7
      %p29 = por %p27, %p28
      %p30 = scmp.ne.s32.totalorder %s21, %s22
      %p31 = scmp.eq.s32.totalorder %s16, 0
      %p32 = por %p30, %p31
      %p33 = scmp.ne.s32.totalorder %s21, %s22
      %p34 = scmp.eq.s32.totalorder %s17, 7
      %p35 = por %p33, %p34
      %p37 = scmp.ne.s32.totalorder %s22, %s36
      %p38 = scmp.eq.s32.totalorder %s17, 0
      %p39 = por %p37, %p38
      %s40 = ssub.s32 %s11, %s18
      %p41 = scmp.eq.s32.totalorder %s40, 0
      %s43 = sadd.s32 %s42, 1
      %s44 = scalar_select %p41, %s42, %s43
      %p47 = pneg %p41
      %p48 = scmp.eq.s32.totalorder %s11, 7
      %p49 = por %p47, %p48
      %p50 = scmp.ne.s32.totalorder %s42, %s45
      %p51 = scmp.eq.s32.totalorder %s11, 0
      %p52 = por %p50, %p51
      %p53 = scmp.ne.s32.totalorder %s42, %s45
      %p54 = scmp.eq.s32.totalorder %s16, 7
      %p55 = por %p53, %p54
      %p56 = scmp.ne.s32.totalorder %s45, %s46
      %p57 = scmp.eq.s32.totalorder %s16, 0
      %p58 = por %p56, %p57
      %p59 = scmp.ne.s32.totalorder %s45, %s46
      %p60 = scmp.eq.s32.totalorder %s17, 7
      %p61 = por %p59, %p60
      %p63 = scmp.ne.s32.totalorder %s46, %s62
      %p64 = scmp.eq.s32.totalorder %s17, 0
      %p65 = por %p63, %p64
      %s66 = ssub.s32 %s11, %s18
      %p67 = scmp.eq.s32.totalorder %s66, 0
      %s69 = sadd.s32 %s68, 1
      %s70 = scalar_select %p67, %s68, %s69
      %p73 = pneg %p67
      %p74 = scmp.eq.s32.totalorder %s11, 7
      %p75 = por %p73, %p74
      %p76 = scmp.ne.s32.totalorder %s68, %s71
      %p77 = scmp.eq.s32.totalorder %s11, 0
      %p78 = por %p76, %p77
      %p79 = scmp.ne.s32.totalorder %s68, %s71
      %p80 = scmp.eq.s32.totalorder %s16, 7
      %p81 = por %p79, %p80
      %p82 = scmp.ne.s32.totalorder %s71, %s72
      %p83 = scmp.eq.s32.totalorder %s16, 0
      %p84 = por %p82, %p83
      %p85 = scmp.ne.s32.totalorder %s71, %s72
      %p86 = scmp.eq.s32.totalorder %s17, 7
      %p87 = por %p85, %p86
      %p89 = scmp.ne.s32.totalorder %s72, %s88
      %p90 = scmp.eq.s32.totalorder %s17, 0
      %p91 = por %p89, %p90
      %p92 = scmp.le.s32.totalorder 1, %s11
      %p93 = scmp.lt.s32.totalorder %s11, 9
      %p94 = pnand %p92, %p93
      %p95 = pneg %p94
      // Predicated region
      $region9: #{tpu_custom_call.1} parent=5 // pred_check
        _
      $region10: #{tpu_custom_call.1} parent=5 // pred_check_branch
        %97 = sbr.rel (%p94) target = $region12
      $region11: #{tpu_custom_call.1} parent=5 // pred_region
        %s98 = ssub.s32 %s11, 1
        // Predicated region
        $region13: #{tpu_custom_call.1} parent=11 // pred_check
          %p99 = pneg %p32
        $region14: #{tpu_custom_call.1} parent=11 // pred_check_branch
          %101 = sbr.rel (%p99) target = $region16
        $region15: #{tpu_custom_call.1} parent=11 // pred_region
          _
        $region16: #{tpu_custom_call.1} parent=11 // pred_fallthru
          _
      $region12: #{tpu_custom_call.1} parent=5 // pred_fallthru
        _
      %p102 = scmp.lt.s32.totalorder %s11, 8
      // Predicated region
      $region17: #{tpu_custom_call.1} parent=5 // pred_check
        %p103 = pneg %p102
      $region18: #{tpu_custom_call.1} parent=5 // pred_check_branch
        %105 = sbr.rel (%p103) target = $region20
      $region19: #{tpu_custom_call.1} parent=5 // pred_region
        // Predicated region
        $region21: #{tpu_custom_call.1} parent=19 // pred_check
          %p106 = pneg %p52
        $region22: #{tpu_custom_call.1} parent=19 // pred_check_branch
          %108 = sbr.rel (%p106) target = $region24
        $region23: #{tpu_custom_call.1} parent=19 // pred_region
          %p109 = scmp.lt.s32.totalorder %s11, 7
          %s110 = scalar_select %p109, %s11, 7
          %s111 = smul.addr %s110, 5
          %s112 = scalar_lea.vmem %s1, %s111
        $region24: #{tpu_custom_call.1} parent=19 // pred_fallthru
          _
      $region20: #{tpu_custom_call.1} parent=5 // pred_fallthru
        _
      %p113 = scmp.le.s32.totalorder 1, %s11
      %p114 = scmp.lt.s32.totalorder %s11, 9
      %p115 = pnand %p113, %p114
      %p116 = pneg %p115
      // Predicated region
      $region25: #{tpu_custom_call.1} parent=5 // pred_check
        _
      $region26: #{tpu_custom_call.1} parent=5 // pred_check_branch
        %118 = sbr.rel (%p115) target = $region28
      $region27: #{tpu_custom_call.1} parent=5 // pred_region
        %s119 = ssub.s32 %s11, 1
        %p120 = pneg %p32
        %p121 = pneg %p29
        %p122 = scmp.lt.s32.totalorder %s16, 7
        %s123 = scalar_select %p122, %s16, 7
        %s124 = smul.addr %s123, 5
        %s125 = scalar_lea.vmem %s1, %s124
        %p126 = pneg %p58
        %p127 = pneg %p55
        %p128 = pneg %p84
        %p129 = pneg %p81
        %s130 = sand.u32 %s71, 1
        %s131 = scalar_lea.sflag [#allocation4], %s130
        %s132 = sand.u32 %s71, 1
        %s133 = smul.addr %s132, 192
        %s134 = scalar_lea.vmem [#allocation3], %s133
        %p135 = scmp.lt.s32.totalorder %s16, 7
        %s136 = scalar_select %p135, %s16, 7
        %s137 = smul.addr %s136, 5
        %s138 = scalar_lea.vmem %s1, %s137
        %v139 = vld [vmem:[%s138] sm:$0x7]
        %v140 = vlaneseq
        %vm141 = vcmp.ge.s32.totalorder %v140, 0
        %vm142 = vcmp.lt.s32.totalorder %v140, 376
        %vm143 = vmand %vm141, %vm142
        %144 = vst.msk [vmem:[#allocation2] ss:$8 sm:$0x7] %vm143, %v139
        %145 = vst.msk [vmem:[#allocation2] ss:$8 sm:$0x0] %vm143, %v139
        %v146 = vld [vmem:[%s138] sm:$0x7]
        %148 = vrot.lane.b32.xlu0 %v146, 127
        %v149 = vpop.permute.xlu0 %148
        %v150 = vrot.slane %v149, 1
        %vm151 = vcmask 1039360
        %v152 = vsel %vm151, %v149, %v150
        %s154 = scalar_lea.vmem [#allocation2], 1
        %155 = vst.msk [vmem:[%s154] ss:$8 sm:$0x7] %vm143, %v152
        %156 = vst.msk [vmem:[%s154] ss:$8 sm:$0x0] %vm143, %v152
        %v157 = vld [vmem:[%s138] sm:$0x7]
        %159 = vrot.lane.b32.xlu0 %v157, 126
        %v160 = vpop.permute.xlu0 %159
        %v161 = vrot.slane %v160, 1
        %vm162 = vcmask 1031168
        %v163 = vsel %vm162, %v160, %v161
        %s165 = scalar_lea.vmem [#allocation2], 2
        %166 = vst.msk [vmem:[%s165] ss:$8 sm:$0x7] %vm143, %v163
        %167 = vst.msk [vmem:[%s165] ss:$8 sm:$0x0] %vm143, %v163
        %v168 = vld [vmem:[%s138] sm:$0x7]
        %170 = vrot.lane.b32.xlu0 %v168, 125
        %v171 = vpop.permute.xlu0 %170
        %v172 = vrot.slane %v171, 1
        %vm173 = vcmask 1022976
        %v174 = vsel %vm173, %v171, %v172
        %s176 = scalar_lea.vmem [#allocation2], 3
        %177 = vst.msk [vmem:[%s176] ss:$8 sm:$0x7] %vm143, %v174
        %178 = vst.msk [vmem:[%s176] ss:$8 sm:$0x0] %vm143, %v174
        %v179 = vld [vmem:[%s138] sm:$0x7]
        %181 = vrot.lane.b32.xlu0 %v179, 124
        %v182 = vpop.permute.xlu0 %181
        %v183 = vrot.slane %v182, 1
        %vm184 = vcmask 1014784
        %v185 = vsel %vm184, %v182, %v183
        %s187 = scalar_lea.vmem [#allocation2], 4
        %188 = vst.msk [vmem:[%s187] ss:$8 sm:$0x7] %vm143, %v185
        %189 = vst.msk [vmem:[%s187] ss:$8 sm:$0x0] %vm143, %v185
        %v190 = vld [vmem:[%s138] sm:$0x7]
        %192 = vrot.lane.b32.xlu0 %v190, 123
        %v193 = vpop.permute.xlu0 %192
        %v194 = vrot.slane %v193, 1
        %vm195 = vcmask 1006592
        %v196 = vsel %vm195, %v193, %v194
        %s198 = scalar_lea.vmem [#allocation2], 5
        %199 = vst.msk [vmem:[%s198] ss:$8 sm:$0x7] %vm143, %v196
        %200 = vst.msk [vmem:[%s198] ss:$8 sm:$0x0] %vm143, %v196
        %v201 = vld [vmem:[%s138] sm:$0x7]
        %203 = vrot.lane.b32.xlu0 %v201, 122
        %v204 = vpop.permute.xlu0 %203
        %v205 = vrot.slane %v204, 1
        %vm206 = vcmask 998400
        %v207 = vsel %vm206, %v204, %v205
        %s209 = scalar_lea.vmem [#allocation2], 6
        %210 = vst.msk [vmem:[%s209] ss:$8 sm:$0x7] %vm143, %v207
        %211 = vst.msk [vmem:[%s209] ss:$8 sm:$0x0] %vm143, %v207
        %v212 = vld [vmem:[%s138] sm:$0x7]
        %214 = vrot.lane.b32.xlu0 %v212, 121
        %v215 = vpop.permute.xlu0 %214
        %v216 = vrot.slane %v215, 1
        %vm217 = vcmask 990208
        %v218 = vsel %vm217, %v215, %v216
        %s220 = scalar_lea.vmem [#allocation2], 7
        %221 = vst.msk [vmem:[%s220] ss:$8 sm:$0x7] %vm143, %v218
        %222 = vst.msk [vmem:[%s220] ss:$8 sm:$0x0] %vm143, %v218
        %v223 = vld [vmem:[%s138] sm:$0x7]
        %225 = vrot.lane.b32.xlu0 %v223, 120
        %v226 = vpop.permute.xlu0 %225
        %v227 = vrot.slane %v226, 1
        %vm228 = vcmask 982016
        %v229 = vsel %vm228, %v226, %v227
        %s231 = scalar_lea.vmem [#allocation2], 24
        %232 = vst.msk [vmem:[%s231] ss:$8 sm:$0x7] %vm143, %v229
        %233 = vst.msk [vmem:[%s231] ss:$8 sm:$0x0] %vm143, %v229
        %v234 = vld [vmem:[%s138] sm:$0xf]
        %236 = vrot.lane.b32.xlu0 %v234, 104
        %v237 = vpop.permute.xlu0 %236
        %v238 = vrot.slane %v237, 1
        %vm239 = vcmask 850944
        %v240 = vsel %vm239, %v237, %v238
        %s242 = scalar_lea.vmem [#allocation2], 25
        %243 = vst.msk [vmem:[%s242] ss:$8 sm:$0x7] %vm143, %v240
        %244 = vst.msk [vmem:[%s242] ss:$8 sm:$0x0] %vm143, %v240
        %v245 = vld [vmem:[%s138] sm:$0xf]
        %247 = vrot.lane.b32.xlu0 %v245, 103
        %v248 = vpop.permute.xlu0 %247
        %v249 = vrot.slane %v248, 1
        %vm250 = vcmask 842752
        %v251 = vsel %vm250, %v248, %v249
        %s253 = scalar_lea.vmem [#allocation2], 26
        %254 = vst.msk [vmem:[%s253] ss:$8 sm:$0x7] %vm143, %v251
        %255 = vst.msk [vmem:[%s253] ss:$8 sm:$0x0] %vm143, %v251
        %v256 = vld [vmem:[%s138] sm:$0xf]
        %258 = vrot.lane.b32.xlu0 %v256, 102
        %v259 = vpop.permute.xlu0 %258
        %v260 = vrot.slane %v259, 1
        %vm261 = vcmask 834560
        %v262 = vsel %vm261, %v259, %v260
        %s264 = scalar_lea.vmem [#allocation2], 27
        %265 = vst.msk [vmem:[%s264] ss:$8 sm:$0x7] %vm143, %v262
        %266 = vst.msk [vmem:[%s264] ss:$8 sm:$0x0] %vm143, %v262
        %v267 = vld [vmem:[%s138] sm:$0xf]
        %269 = vrot.lane.b32.xlu0 %v267, 101
        %v270 = vpop.permute.xlu0 %269
        %v271 = vrot.slane %v270, 1
        %vm272 = vcmask 826368
        %v273 = vsel %vm272, %v270, %v271
        %s275 = scalar_lea.vmem [#allocation2], 28
        %276 = vst.msk [vmem:[%s275] ss:$8 sm:$0x7] %vm143, %v273
        %277 = vst.msk [vmem:[%s275] ss:$8 sm:$0x0] %vm143, %v273
        %v278 = vld [vmem:[%s138] sm:$0xf]
        %280 = vrot.lane.b32.xlu0 %v278, 100
        %v281 = vpop.permute.xlu0 %280
        %v282 = vrot.slane %v281, 1
        %vm283 = vcmask 818176
        %v284 = vsel %vm283, %v281, %v282
        %s286 = scalar_lea.vmem [#allocation2], 29
        %287 = vst.msk [vmem:[%s286] ss:$8 sm:$0x7] %vm143, %v284
        %288 = vst.msk [vmem:[%s286] ss:$8 sm:$0x0] %vm143, %v284
        %v289 = vld [vmem:[%s138] sm:$0xf]
        %291 = vrot.lane.b32.xlu0 %v289, 99
        %v292 = vpop.permute.xlu0 %291
        %v293 = vrot.slane %v292, 1
        %vm294 = vcmask 809984
        %v295 = vsel %vm294, %v292, %v293
        %s297 = scalar_lea.vmem [#allocation2], 30
        %298 = vst.msk [vmem:[%s297] ss:$8 sm:$0x7] %vm143, %v295
        %299 = vst.msk [vmem:[%s297] ss:$8 sm:$0x0] %vm143, %v295
        %v300 = vld [vmem:[%s138] sm:$0xf]
        %302 = vrot.lane.b32.xlu0 %v300, 98
        %v303 = vpop.permute.xlu0 %302
        %v304 = vrot.slane %v303, 1
        %vm305 = vcmask 801792
        %v306 = vsel %vm305, %v303, %v304
        %s308 = scalar_lea.vmem [#allocation2], 31
        %309 = vst.msk [vmem:[%s308] ss:$8 sm:$0x7] %vm143, %v306
        %310 = vst.msk [vmem:[%s308] ss:$8 sm:$0x0] %vm143, %v306
        %v311 = vld [vmem:[%s138] sm:$0xf]
        %313 = vrot.lane.b32.xlu0 %v311, 97
        %v314 = vpop.permute.xlu0 %313
        %v315 = vrot.slane %v314, 1
        %vm316 = vcmask 793600
        %v317 = vsel %vm316, %v314, %v315
        %s319 = scalar_lea.vmem [#allocation2], 48
        %320 = vst.msk [vmem:[%s319] ss:$8 sm:$0x7] %vm143, %v317
        %321 = vst.msk [vmem:[%s319] ss:$8 sm:$0x0] %vm143, %v317
        %v322 = vld [vmem:[%s138] sm:$0xf]
        %324 = vrot.lane.b32.xlu0 %v322, 96
        %v325 = vpop.permute.xlu0 %324
        %v326 = vrot.slane %v325, 1
        %vm327 = vcmask 785408
        %v328 = vsel %vm327, %v325, %v326
        %s330 = scalar_lea.vmem [#allocation2], 49
        %331 = vst.msk [vmem:[%s330] ss:$8 sm:$0x7] %vm143, %v328
        %332 = vst.msk [vmem:[%s330] ss:$8 sm:$0x0] %vm143, %v328
        %v333 = vld [vmem:[%s138] sm:$0xf]
        %335 = vrot.lane.b32.xlu0 %v333, 80
        %v336 = vpop.permute.xlu0 %335
        %v337 = vrot.slane %v336, 1
        %vm338 = vcmask 654336
        %v339 = vsel %vm338, %v336, %v337
        %s341 = scalar_lea.vmem [#allocation2], 50
        %342 = vst.msk [vmem:[%s341] ss:$8 sm:$0x7] %vm143, %v339
        %343 = vst.msk [vmem:[%s341] ss:$8 sm:$0x0] %vm143, %v339
        %v344 = vld [vmem:[%s138] sm:$0xf]
        %346 = vrot.lane.b32.xlu0 %v344, 79
        %v347 = vpop.permute.xlu0 %346
        %v348 = vrot.slane %v347, 1
        %vm349 = vcmask 646144
        %v350 = vsel %vm349, %v347, %v348
        %s352 = scalar_lea.vmem [#allocation2], 51
        %353 = vst.msk [vmem:[%s352] ss:$8 sm:$0x7] %vm143, %v350
        %354 = vst.msk [vmem:[%s352] ss:$8 sm:$0x0] %vm143, %v350
        %v355 = vld [vmem:[%s138] sm:$0xf]
        %357 = vrot.lane.b32.xlu0 %v355, 78
        %v358 = vpop.permute.xlu0 %357
        %v359 = vrot.slane %v358, 1
        %vm360 = vcmask 637952
        %v361 = vsel %vm360, %v358, %v359
        %s363 = scalar_lea.vmem [#allocation2], 52
        %364 = vst.msk [vmem:[%s363] ss:$8 sm:$0x7] %vm143, %v361
        %365 = vst.msk [vmem:[%s363] ss:$8 sm:$0x0] %vm143, %v361
        %v366 = vld [vmem:[%s138] sm:$0xf]
        %368 = vrot.lane.b32.xlu0 %v366, 77
        %v369 = vpop.permute.xlu0 %368
        %v370 = vrot.slane %v369, 1
        %vm371 = vcmask 629760
        %v372 = vsel %vm371, %v369, %v370
        %s374 = scalar_lea.vmem [#allocation2], 53
        %375 = vst.msk [vmem:[%s374] ss:$8 sm:$0x7] %vm143, %v372
        %376 = vst.msk [vmem:[%s374] ss:$8 sm:$0x0] %vm143, %v372
        %v377 = vld [vmem:[%s138] sm:$0xf]
        %379 = vrot.lane.b32.xlu0 %v377, 76
        %v380 = vpop.permute.xlu0 %379
        %v381 = vrot.slane %v380, 1
        %vm382 = vcmask 621568
        %v383 = vsel %vm382, %v380, %v381
        %s385 = scalar_lea.vmem [#allocation2], 54
        %386 = vst.msk [vmem:[%s385] ss:$8 sm:$0x7] %vm143, %v383
        %387 = vst.msk [vmem:[%s385] ss:$8 sm:$0x0] %vm143, %v383
        %v388 = vld [vmem:[%s138] sm:$0xf]
        %390 = vrot.lane.b32.xlu0 %v388, 75
        %v391 = vpop.permute.xlu0 %390
        %v392 = vrot.slane %v391, 1
        %vm393 = vcmask 613376
        %v394 = vsel %vm393, %v391, %v392
        %s396 = scalar_lea.vmem [#allocation2], 55
        %397 = vst.msk [vmem:[%s396] ss:$8 sm:$0x7] %vm143, %v394
        %398 = vst.msk [vmem:[%s396] ss:$8 sm:$0x0] %vm143, %v394
        %v399 = vld [vmem:[%s138] sm:$0xf]
        %401 = vrot.lane.b32.xlu0 %v399, 74
        %v402 = vpop.permute.xlu0 %401
        %v403 = vrot.slane %v402, 1
        %vm404 = vcmask 605184
        %v405 = vsel %vm404, %v402, %v403
        %s407 = scalar_lea.vmem [#allocation2], 72
        %408 = vst.msk [vmem:[%s407] ss:$8 sm:$0x7] %vm143, %v405
        %409 = vst.msk [vmem:[%s407] ss:$8 sm:$0x0] %vm143, %v405
        %v410 = vld [vmem:[%s138] sm:$0xf]
        %412 = vrot.lane.b32.xlu0 %v410, 73
        %v413 = vpop.permute.xlu0 %412
        %v414 = vrot.slane %v413, 1
        %vm415 = vcmask 596992
        %v416 = vsel %vm415, %v413, %v414
        %s418 = scalar_lea.vmem [#allocation2], 73
        %419 = vst.msk [vmem:[%s418] ss:$8 sm:$0x7] %vm143, %v416
        %420 = vst.msk [vmem:[%s418] ss:$8 sm:$0x0] %vm143, %v416
        %v421 = vld [vmem:[%s138] sm:$0xf]
        %423 = vrot.lane.b32.xlu0 %v421, 72
        %v424 = vpop.permute.xlu0 %423
        %v425 = vrot.slane %v424, 1
        %vm426 = vcmask 588800
        %v427 = vsel %vm426, %v424, %v425
        %s429 = scalar_lea.vmem [#allocation2], 74
        %430 = vst.msk [vmem:[%s429] ss:$8 sm:$0x7] %vm143, %v427
        %431 = vst.msk [vmem:[%s429] ss:$8 sm:$0x0] %vm143, %v427
        %v432 = vld [vmem:[%s138] sm:$0xf]
        %434 = vrot.lane.b32.xlu0 %v432, 56
        %v435 = vpop.permute.xlu0 %434
        %v436 = vrot.slane %v435, 1
        %vm437 = vcmask 457728
        %v438 = vsel %vm437, %v435, %v436
        %s440 = scalar_lea.vmem [#allocation2], 75
        %441 = vst.msk [vmem:[%s440] ss:$8 sm:$0x7] %vm143, %v438
        %442 = vst.msk [vmem:[%s440] ss:$8 sm:$0x0] %vm143, %v438
        %v443 = vld [vmem:[%s138] sm:$0xf]
        %445 = vrot.lane.b32.xlu0 %v443, 55
        %v446 = vpop.permute.xlu0 %445
        %v447 = vrot.slane %v446, 1
        %vm448 = vcmask 449536
        %v449 = vsel %vm448, %v446, %v447
        %s451 = scalar_lea.vmem [#allocation2], 76
        %452 = vst.msk [vmem:[%s451] ss:$8 sm:$0x7] %vm143, %v449
        %453 = vst.msk [vmem:[%s451] ss:$8 sm:$0x0] %vm143, %v449
        %v454 = vld [vmem:[%s138] sm:$0xf]
        %456 = vrot.lane.b32.xlu0 %v454, 54
        %v457 = vpop.permute.xlu0 %456
        %v458 = vrot.slane %v457, 1
        %vm459 = vcmask 441344
        %v460 = vsel %vm459, %v457, %v458
        %s462 = scalar_lea.vmem [#allocation2], 77
        %463 = vst.msk [vmem:[%s462] ss:$8 sm:$0x7] %vm143, %v460
        %464 = vst.msk [vmem:[%s462] ss:$8 sm:$0x0] %vm143, %v460
        %v465 = vld [vmem:[%s138] sm:$0xf]
        %467 = vrot.lane.b32.xlu0 %v465, 53
        %v468 = vpop.permute.xlu0 %467
        %v469 = vrot.slane %v468, 1
        %vm470 = vcmask 433152
        %v471 = vsel %vm470, %v468, %v469
        %s473 = scalar_lea.vmem [#allocation2], 78
        %474 = vst.msk [vmem:[%s473] ss:$8 sm:$0x7] %vm143, %v471
        %475 = vst.msk [vmem:[%s473] ss:$8 sm:$0x0] %vm143, %v471
        %v476 = vld [vmem:[%s138] sm:$0xf]
        %478 = vrot.lane.b32.xlu0 %v476, 52
        %v479 = vpop.permute.xlu0 %478
        %v480 = vrot.slane %v479, 1
        %vm481 = vcmask 424960
        %v482 = vsel %vm481, %v479, %v480
        %s484 = scalar_lea.vmem [#allocation2], 79
        %485 = vst.msk [vmem:[%s484] ss:$8 sm:$0x7] %vm143, %v482
        %486 = vst.msk [vmem:[%s484] ss:$8 sm:$0x0] %vm143, %v482
        %v487 = vld [vmem:[%s138] sm:$0xf]
        %489 = vrot.lane.b32.xlu0 %v487, 51
        %v490 = vpop.permute.xlu0 %489
        %v491 = vrot.slane %v490, 1
        %vm492 = vcmask 416768
        %v493 = vsel %vm492, %v490, %v491
        %s495 = scalar_lea.vmem [#allocation2], 96
        %496 = vst.msk [vmem:[%s495] ss:$8 sm:$0x7] %vm143, %v493
        %497 = vst.msk [vmem:[%s495] ss:$8 sm:$0x0] %vm143, %v493
        %v498 = vld [vmem:[%s138] sm:$0xf]
        %500 = vrot.lane.b32.xlu0 %v498, 50
        %v501 = vpop.permute.xlu0 %500
        %v502 = vrot.slane %v501, 1
        %vm503 = vcmask 408576
        %v504 = vsel %vm503, %v501, %v502
        %s506 = scalar_lea.vmem [#allocation2], 97
        %507 = vst.msk [vmem:[%s506] ss:$8 sm:$0x7] %vm143, %v504
        %508 = vst.msk [vmem:[%s506] ss:$8 sm:$0x0] %vm143, %v504
        %v509 = vld [vmem:[%s138] sm:$0xf]
        %511 = vrot.lane.b32.xlu0 %v509, 49
        %v512 = vpop.permute.xlu0 %511
        %v513 = vrot.slane %v512, 1
        %vm514 = vcmask 400384
        %v515 = vsel %vm514, %v512, %v513
        %s517 = scalar_lea.vmem [#allocation2], 98
        %518 = vst.msk [vmem:[%s517] ss:$8 sm:$0x7] %vm143, %v515
        %519 = vst.msk [vmem:[%s517] ss:$8 sm:$0x0] %vm143, %v515
        %v520 = vld [vmem:[%s138] sm:$0xf]
        %522 = vrot.lane.b32.xlu0 %v520, 48
        %v523 = vpop.permute.xlu0 %522
        %v524 = vrot.slane %v523, 1
        %vm525 = vcmask 392192
        %v526 = vsel %vm525, %v523, %v524
        %s528 = scalar_lea.vmem [#allocation2], 99
        %529 = vst.msk [vmem:[%s528] ss:$8 sm:$0x7] %vm143, %v526
        %530 = vst.msk [vmem:[%s528] ss:$8 sm:$0x0] %vm143, %v526
        %v531 = vld [vmem:[%s138] sm:$0xf]
        %533 = vrot.lane.b32.xlu0 %v531, 32
        %v534 = vpop.permute.xlu0 %533
        %v535 = vrot.slane %v534, 1
        %vm536 = vcmask 261120
        %v537 = vsel %vm536, %v534, %v535
        %s539 = scalar_lea.vmem [#allocation2], 100
        %540 = vst.msk [vmem:[%s539] ss:$8 sm:$0x7] %vm143, %v537
        %541 = vst.msk [vmem:[%s539] ss:$8 sm:$0x0] %vm143, %v537
        %v542 = vld [vmem:[%s138] sm:$0xf]
        %544 = vrot.lane.b32.xlu0 %v542, 31
        %v545 = vpop.permute.xlu0 %544
        %v546 = vrot.slane %v545, 1
        %vm547 = vcmask 252928
        %v548 = vsel %vm547, %v545, %v546
        %s550 = scalar_lea.vmem [#allocation2], 101
        %551 = vst.msk [vmem:[%s550] ss:$8 sm:$0x7] %vm143, %v548
        %552 = vst.msk [vmem:[%s550] ss:$8 sm:$0x0] %vm143, %v548
        %v553 = vld [vmem:[%s138] sm:$0xf]
        %555 = vrot.lane.b32.xlu0 %v553, 30
        %v556 = vpop.permute.xlu0 %555
        %v557 = vrot.slane %v556, 1
        %vm558 = vcmask 244736
        %v559 = vsel %vm558, %v556, %v557
        %s561 = scalar_lea.vmem [#allocation2], 102
        %562 = vst.msk [vmem:[%s561] ss:$8 sm:$0x7] %vm143, %v559
        %563 = vst.msk [vmem:[%s561] ss:$8 sm:$0x0] %vm143, %v559
        %v564 = vld [vmem:[%s138] sm:$0xf]
        %566 = vrot.lane.b32.xlu0 %v564, 29
        %v567 = vpop.permute.xlu0 %566
        %v568 = vrot.slane %v567, 1
        %vm569 = vcmask 236544
        %v570 = vsel %vm569, %v567, %v568
        %s572 = scalar_lea.vmem [#allocation2], 103
        %573 = vst.msk [vmem:[%s572] ss:$8 sm:$0x7] %vm143, %v570
        %574 = vst.msk [vmem:[%s572] ss:$8 sm:$0x0] %vm143, %v570
        %v575 = vld [vmem:[%s138] sm:$0xf]
        %577 = vrot.lane.b32.xlu0 %v575, 28
        %v578 = vpop.permute.xlu0 %577
        %v579 = vrot.slane %v578, 1
        %vm580 = vcmask 228352
        %v581 = vsel %vm580, %v578, %v579
        %s583 = scalar_lea.vmem [#allocation2], 120
        %584 = vst.msk [vmem:[%s583] ss:$8 sm:$0x7] %vm143, %v581
        %585 = vst.msk [vmem:[%s583] ss:$8 sm:$0x0] %vm143, %v581
        %v586 = vld [vmem:[%s138] sm:$0xf]
        %588 = vrot.lane.b32.xlu0 %v586, 27
        %v589 = vpop.permute.xlu0 %588
        %v590 = vrot.slane %v589, 1
        %vm591 = vcmask 220160
        %v592 = vsel %vm591, %v589, %v590
        %s594 = scalar_lea.vmem [#allocation2], 121
        %595 = vst.msk [vmem:[%s594] ss:$8 sm:$0x7] %vm143, %v592
        %596 = vst.msk [vmem:[%s594] ss:$8 sm:$0x0] %vm143, %v592
        %v597 = vld [vmem:[%s138] sm:$0xf]
        %599 = vrot.lane.b32.xlu0 %v597, 26
        %v600 = vpop.permute.xlu0 %599
        %v601 = vrot.slane %v600, 1
        %vm602 = vcmask 211968
        %v603 = vsel %vm602, %v600, %v601
        %s605 = scalar_lea.vmem [#allocation2], 122
        %606 = vst.msk [vmem:[%s605] ss:$8 sm:$0x7] %vm143, %v603
        %607 = vst.msk [vmem:[%s605] ss:$8 sm:$0x0] %vm143, %v603
        %v608 = vld [vmem:[%s138] sm:$0xf]
        %610 = vrot.lane.b32.xlu0 %v608, 25
        %v611 = vpop.permute.xlu0 %610
        %v612 = vrot.slane %v611, 1
        %vm613 = vcmask 203776
        %v614 = vsel %vm613, %v611, %v612
        %s616 = scalar_lea.vmem [#allocation2], 123
        %617 = vst.msk [vmem:[%s616] ss:$8 sm:$0x7] %vm143, %v614
        %618 = vst.msk [vmem:[%s616] ss:$8 sm:$0x0] %vm143, %v614
        %v619 = vld [vmem:[%s138] sm:$0xf]
        %621 = vrot.lane.b32.xlu0 %v619, 24
        %v622 = vpop.permute.xlu0 %621
        %v623 = vrot.slane %v622, 1
        %vm624 = vcmask 195584
        %v625 = vsel %vm624, %v622, %v623
        %s627 = scalar_lea.vmem [#allocation2], 124
        %628 = vst.msk [vmem:[%s627] ss:$8 sm:$0x7] %vm143, %v625
        %629 = vst.msk [vmem:[%s627] ss:$8 sm:$0x0] %vm143, %v625
        %v630 = vld [vmem:[%s138] sm:$0xf]
        %632 = vrot.lane.b32.xlu0 %v630, 8
        %v633 = vpop.permute.xlu0 %632
        %v634 = vrot.slane %v633, 1
        %vm635 = vcmask 64512
        %v636 = vsel %vm635, %v633, %v634
        %s638 = scalar_lea.vmem [#allocation2], 125
        %639 = vst.msk [vmem:[%s638] ss:$8 sm:$0x7] %vm143, %v636
        %640 = vst.msk [vmem:[%s638] ss:$8 sm:$0x0] %vm143, %v636
        %v641 = vld [vmem:[%s138] sm:$0xf]
        %643 = vrot.lane.b32.xlu0 %v641, 7
        %v644 = vpop.permute.xlu0 %643
        %v645 = vrot.slane %v644, 1
        %vm646 = vcmask 56320
        %v647 = vsel %vm646, %v644, %v645
        %s649 = scalar_lea.vmem [#allocation2], 126
        %650 = vst.msk [vmem:[%s649] ss:$8 sm:$0x7] %vm143, %v647
        %651 = vst.msk [vmem:[%s649] ss:$8 sm:$0x0] %vm143, %v647
        %v652 = vld [vmem:[%s138] sm:$0xf]
        %654 = vrot.lane.b32.xlu0 %v652, 6
        %v655 = vpop.permute.xlu0 %654
        %v656 = vrot.slane %v655, 1
        %vm657 = vcmask 48128
        %v658 = vsel %vm657, %v655, %v656
        %s660 = scalar_lea.vmem [#allocation2], 127
        %661 = vst.msk [vmem:[%s660] ss:$8 sm:$0x7] %vm143, %v658
        %662 = vst.msk [vmem:[%s660] ss:$8 sm:$0x0] %vm143, %v658
        %v663 = vld [vmem:[%s138] sm:$0xf]
        %665 = vrot.lane.b32.xlu0 %v663, 5
        %v666 = vpop.permute.xlu0 %665
        %v667 = vrot.slane %v666, 1
        %vm668 = vcmask 39936
        %v669 = vsel %vm668, %v666, %v667
        %s671 = scalar_lea.vmem [#allocation2], 144
        %672 = vst.msk [vmem:[%s671] ss:$8 sm:$0x7] %vm143, %v669
        %673 = vst.msk [vmem:[%s671] ss:$8 sm:$0x0] %vm143, %v669
        %v674 = vld [vmem:[%s138] sm:$0xf]
        %676 = vrot.lane.b32.xlu0 %v674, 4
        %v677 = vpop.permute.xlu0 %676
        %v678 = vrot.slane %v677, 1
        %vm679 = vcmask 31744
        %v680 = vsel %vm679, %v677, %v678
        %s682 = scalar_lea.vmem [#allocation2], 145
        %683 = vst.msk [vmem:[%s682] ss:$8 sm:$0x7] %vm143, %v680
        %684 = vst.msk [vmem:[%s682] ss:$8 sm:$0x0] %vm143, %v680
        %v685 = vld [vmem:[%s138] sm:$0xf]
        %687 = vrot.lane.b32.xlu0 %v685, 3
        %v688 = vpop.permute.xlu0 %687
        %v689 = vrot.slane %v688, 1
        %vm690 = vcmask 23552
        %v691 = vsel %vm690, %v688, %v689
        %s693 = scalar_lea.vmem [#allocation2], 146
        %694 = vst.msk [vmem:[%s693] ss:$8 sm:$0x7] %vm143, %v691
        %695 = vst.msk [vmem:[%s693] ss:$8 sm:$0x0] %vm143, %v691
        %v696 = vld [vmem:[%s138] sm:$0xf]
        %698 = vrot.lane.b32.xlu0 %v696, 2
        %v699 = vpop.permute.xlu0 %698
        %v700 = vrot.slane %v699, 1
        %vm701 = vcmask 15360
        %v702 = vsel %vm701, %v699, %v700
        %s704 = scalar_lea.vmem [#allocation2], 147
        %705 = vst.msk [vmem:[%s704] ss:$8 sm:$0x7] %vm143, %v702
        %706 = vst.msk [vmem:[%s704] ss:$8 sm:$0x0] %vm143, %v702
        %v707 = vld [vmem:[%s138] sm:$0xf]
        %709 = vrot.lane.b32.xlu0 %v707, 1
        %v710 = vpop.permute.xlu0 %709
        %v711 = vrot.slane %v710, 1
        %vm712 = vcmask 7168
        %v713 = vsel %vm712, %v710, %v711
        %s715 = scalar_lea.vmem [#allocation2], 148
        %716 = vst.msk [vmem:[%s715] ss:$8 sm:$0x7] %vm143, %v713
        %717 = vst.msk [vmem:[%s715] ss:$8 sm:$0x0] %vm143, %v713
        %v718 = vld [vmem:[%s138 + $0x1] sm:$0x7]
        %s719 = scalar_lea.vmem [#allocation2], 149
        %720 = vst.msk [vmem:[%s719] ss:$8 sm:$0x7] %vm143, %v718
        %721 = vst.msk [vmem:[%s719] ss:$8 sm:$0x0] %vm143, %v718
        %v722 = vld [vmem:[%s138 + $0x1] sm:$0xf]
        %724 = vrot.lane.b32.xlu0 %v722, 112
        %v725 = vpop.permute.xlu0 %724
        %v726 = vrot.slane %v725, 1
        %vm727 = vcmask 916480
        %v728 = vsel %vm727, %v725, %v726
        %s730 = scalar_lea.vmem [#allocation2], 150
        %731 = vst.msk [vmem:[%s730] ss:$8 sm:$0x7] %vm143, %v728
        %732 = vst.msk [vmem:[%s730] ss:$8 sm:$0x0] %vm143, %v728
        %v733 = vld [vmem:[%s138 + $0x1] sm:$0xf]
        %735 = vrot.lane.b32.xlu0 %v733, 111
        %v736 = vpop.permute.xlu0 %735
        %v737 = vrot.slane %v736, 1
        %vm738 = vcmask 908288
        %v739 = vsel %vm738, %v736, %v737
        %s741 = scalar_lea.vmem [#allocation2], 151
        %742 = vst.msk [vmem:[%s741] ss:$8 sm:$0x7] %vm143, %v739
        %743 = vst.msk [vmem:[%s741] ss:$8 sm:$0x0] %vm143, %v739
        %v744 = vld [vmem:[%s138 + $0x1] sm:$0xf]
        %746 = vrot.lane.b32.xlu0 %v744, 110
        %v747 = vpop.permute.xlu0 %746
        %v748 = vrot.slane %v747, 1
        %vm749 = vcmask 900096
        %v750 = vsel %vm749, %v747, %v748
        %s752 = scalar_lea.vmem [#allocation2], 168
        %753 = vst.msk [vmem:[%s752] ss:$8 sm:$0x7] %vm143, %v750
        %754 = vst.msk [vmem:[%s752] ss:$8 sm:$0x0] %vm143, %v750
        %v755 = vld [vmem:[%s138 + $0x1] sm:$0xf]
        %757 = vrot.lane.b32.xlu0 %v755, 109
        %v758 = vpop.permute.xlu0 %757
        %v759 = vrot.slane %v758, 1
        %vm760 = vcmask 891904
        %v761 = vsel %vm760, %v758, %v759
        %s763 = scalar_lea.vmem [#allocation2], 169
        %764 = vst.msk [vmem:[%s763] ss:$8 sm:$0x7] %vm143, %v761
        %765 = vst.msk [vmem:[%s763] ss:$8 sm:$0x0] %vm143, %v761
        %v766 = vld [vmem:[%s138 + $0x1] sm:$0xf]
        %768 = vrot.lane.b32.xlu0 %v766, 108
        %v769 = vpop.permute.xlu0 %768
        %v770 = vrot.slane %v769, 1
        %vm771 = vcmask 883712
        %v772 = vsel %vm771, %v769, %v770
        %s774 = scalar_lea.vmem [#allocation2], 170
        %775 = vst.msk [vmem:[%s774] ss:$8 sm:$0x7] %vm143, %v772
        %776 = vst.msk [vmem:[%s774] ss:$8 sm:$0x0] %vm143, %v772
        %v777 = vld [vmem:[%s138 + $0x1] sm:$0xf]
        %779 = vrot.lane.b32.xlu0 %v777, 107
        %v780 = vpop.permute.xlu0 %779
        %v781 = vrot.slane %v780, 1
        %vm782 = vcmask 875520
        %v783 = vsel %vm782, %v780, %v781
        %s785 = scalar_lea.vmem [#allocation2], 171
        %786 = vst.msk [vmem:[%s785] ss:$8 sm:$0x7] %vm143, %v783
        %787 = vst.msk [vmem:[%s785] ss:$8 sm:$0x0] %vm143, %v783
        %v788 = vld [vmem:[%s138 + $0x1] sm:$0xf]
        %790 = vrot.lane.b32.xlu0 %v788, 106
        %v791 = vpop.permute.xlu0 %790
        %v792 = vrot.slane %v791, 1
        %vm793 = vcmask 867328
        %v794 = vsel %vm793, %v791, %v792
        %s796 = scalar_lea.vmem [#allocation2], 172
        %797 = vst.msk [vmem:[%s796] ss:$8 sm:$0x7] %vm143, %v794
        %798 = vst.msk [vmem:[%s796] ss:$8 sm:$0x0] %vm143, %v794
        %v799 = vld [vmem:[%s138 + $0x1] sm:$0xf]
        %801 = vrot.lane.b32.xlu0 %v799, 105
        %v802 = vpop.permute.xlu0 %801
        %v803 = vrot.slane %v802, 1
        %vm804 = vcmask 859136
        %v805 = vsel %vm804, %v802, %v803
        %s807 = scalar_lea.vmem [#allocation2], 173
        %808 = vst.msk [vmem:[%s807] ss:$8 sm:$0x7] %vm143, %v805
        %809 = vst.msk [vmem:[%s807] ss:$8 sm:$0x0] %vm143, %v805
        %v810 = vld [vmem:[%s138 + $0x1] sm:$0xf]
        %812 = vrot.lane.b32.xlu0 %v810, 104
        %v813 = vpop.permute.xlu0 %812
        %v814 = vrot.slane %v813, 1
        %v815 = vsel %vm239, %v813, %v814
        %s817 = scalar_lea.vmem [#allocation2], 174
        %818 = vst.msk [vmem:[%s817] ss:$8 sm:$0x7] %vm143, %v815
        %819 = vst.msk [vmem:[%s817] ss:$8 sm:$0x0] %vm143, %v815
        %v820 = vld [vmem:[%s138 + $0x1] sm:$0xf]
        %822 = vrot.lane.b32.xlu0 %v820, 88
        %v823 = vpop.permute.xlu0 %822
        %v824 = vrot.slane %v823, 1
        %vm825 = vcmask 719872
        %v826 = vsel %vm825, %v823, %v824
        %s828 = scalar_lea.vmem [#allocation2], 175
        %829 = vst.msk [vmem:[%s828] ss:$8 sm:$0x7] %vm143, %v826
        %830 = vst.msk [vmem:[%s828] ss:$8 sm:$0x0] %vm143, %v826
        %v831 = vld [vmem:[%s138 + $0x1] sm:$0xf]
        %833 = vrot.lane.b32.xlu0 %v831, 87
        %v834 = vpop.permute.xlu0 %833
        %v835 = vrot.slane %v834, 1
        %vm836 = vcmask 711680
        %v837 = vsel %vm836, %v834, %v835
        %s839 = scalar_lea.vmem [#allocation2], 192
        %840 = vst.msk [vmem:[%s839] ss:$8 sm:$0x7] %vm143, %v837
        %841 = vst.msk [vmem:[%s839] ss:$8 sm:$0x0] %vm143, %v837
        %v842 = vld [vmem:[%s138 + $0x1] sm:$0xf]
        %844 = vrot.lane.b32.xlu0 %v842, 86
        %v845 = vpop.permute.xlu0 %844
        %v846 = vrot.slane %v845, 1
        %vm847 = vcmask 703488
        %v848 = vsel %vm847, %v845, %v846
        %s850 = scalar_lea.vmem [#allocation2], 193
        %851 = vst.msk [vmem:[%s850] ss:$8 sm:$0x7] %vm143, %v848
        %852 = vst.msk [vmem:[%s850] ss:$8 sm:$0x0] %vm143, %v848
        %v853 = vld [vmem:[%s138 + $0x1] sm:$0xf]
        %855 = vrot.lane.b32.xlu0 %v853, 85
        %v856 = vpop.permute.xlu0 %855
        %v857 = vrot.slane %v856, 1
        %vm858 = vcmask 695296
        %v859 = vsel %vm858, %v856, %v857
        %s861 = scalar_lea.vmem [#allocation2], 194
        %862 = vst.msk [vmem:[%s861] ss:$8 sm:$0x7] %vm143, %v859
        %863 = vst.msk [vmem:[%s861] ss:$8 sm:$0x0] %vm143, %v859
        %v864 = vld [vmem:[%s138 + $0x1] sm:$0xf]
        %866 = vrot.lane.b32.xlu0 %v864, 84
        %v867 = vpop.permute.xlu0 %866
        %v868 = vrot.slane %v867, 1
        %vm869 = vcmask 687104
        %v870 = vsel %vm869, %v867, %v868
        %s872 = scalar_lea.vmem [#allocation2], 195
        %873 = vst.msk [vmem:[%s872] ss:$8 sm:$0x7] %vm143, %v870
        %874 = vst.msk [vmem:[%s872] ss:$8 sm:$0x0] %vm143, %v870
        %v875 = vld [vmem:[%s138 + $0x1] sm:$0xf]
        %877 = vrot.lane.b32.xlu0 %v875, 83
        %v878 = vpop.permute.xlu0 %877
        %v879 = vrot.slane %v878, 1
        %vm880 = vcmask 678912
        %v881 = vsel %vm880, %v878, %v879
        %s883 = scalar_lea.vmem [#allocation2], 196
        %884 = vst.msk [vmem:[%s883] ss:$8 sm:$0x7] %vm143, %v881
        %885 = vst.msk [vmem:[%s883] ss:$8 sm:$0x0] %vm143, %v881
        %v886 = vld [vmem:[%s138 + $0x1] sm:$0xf]
        %888 = vrot.lane.b32.xlu0 %v886, 82
        %v889 = vpop.permute.xlu0 %888
        %v890 = vrot.slane %v889, 1
        %vm891 = vcmask 670720
        %v892 = vsel %vm891, %v889, %v890
        %s894 = scalar_lea.vmem [#allocation2], 197
        %895 = vst.msk [vmem:[%s894] ss:$8 sm:$0x7] %vm143, %v892
        %896 = vst.msk [vmem:[%s894] ss:$8 sm:$0x0] %vm143, %v892
        %v897 = vld [vmem:[%s138 + $0x1] sm:$0xf]
        %899 = vrot.lane.b32.xlu0 %v897, 81
        %v900 = vpop.permute.xlu0 %899
        %v901 = vrot.slane %v900, 1
        %vm902 = vcmask 662528
        %v903 = vsel %vm902, %v900, %v901
        %s905 = scalar_lea.vmem [#allocation2], 198
        %906 = vst.msk [vmem:[%s905] ss:$8 sm:$0x7] %vm143, %v903
        %907 = vst.msk [vmem:[%s905] ss:$8 sm:$0x0] %vm143, %v903
        %v908 = vld [vmem:[%s138 + $0x1] sm:$0xf]
        %910 = vrot.lane.b32.xlu0 %v908, 80
        %v911 = vpop.permute.xlu0 %910
        %v912 = vrot.slane %v911, 1
        %v913 = vsel %vm338, %v911, %v912
        %s915 = scalar_lea.vmem [#allocation2], 199
        %916 = vst.msk [vmem:[%s915] ss:$8 sm:$0x7] %vm143, %v913
        %917 = vst.msk [vmem:[%s915] ss:$8 sm:$0x0] %vm143, %v913
        %v918 = vld [vmem:[%s138 + $0x1] sm:$0xf]
        %920 = vrot.lane.b32.xlu0 %v918, 64
        %v921 = vpop.permute.xlu0 %920
        %v922 = vrot.slane %v921, 1
        %vm923 = vcmask 523264
        %v924 = vsel %vm923, %v921, %v922
        %s926 = scalar_lea.vmem [#allocation2], 216
        %927 = vst.msk [vmem:[%s926] ss:$8 sm:$0x7] %vm143, %v924
        %928 = vst.msk [vmem:[%s926] ss:$8 sm:$0x0] %vm143, %v924
        %v929 = vld [vmem:[%s138 + $0x1] sm:$0xf]
        %931 = vrot.lane.b32.xlu0 %v929, 63
        %v932 = vpop.permute.xlu0 %931
        %v933 = vrot.slane %v932, 1
        %vm934 = vcmask 515072
        %v935 = vsel %vm934, %v932, %v933
        %s937 = scalar_lea.vmem [#allocation2], 217
        %938 = vst.msk [vmem:[%s937] ss:$8 sm:$0x7] %vm143, %v935
        %939 = vst.msk [vmem:[%s937] ss:$8 sm:$0x0] %vm143, %v935
        %v940 = vld [vmem:[%s138 + $0x1] sm:$0xf]
        %942 = vrot.lane.b32.xlu0 %v940, 62
        %v943 = vpop.permute.xlu0 %942
        %v944 = vrot.slane %v943, 1
        %vm945 = vcmask 506880
        %v946 = vsel %vm945, %v943, %v944
        %s948 = scalar_lea.vmem [#allocation2], 218
        %949 = vst.msk [vmem:[%s948] ss:$8 sm:$0x7] %vm143, %v946
        %950 = vst.msk [vmem:[%s948] ss:$8 sm:$0x0] %vm143, %v946
        %v951 = vld [vmem:[%s138 + $0x1] sm:$0xf]
        %953 = vrot.lane.b32.xlu0 %v951, 61
        %v954 = vpop.permute.xlu0 %953
        %v955 = vrot.slane %v954, 1
        %vm956 = vcmask 498688
        %v957 = vsel %vm956, %v954, %v955
        %s959 = scalar_lea.vmem [#allocation2], 219
        %960 = vst.msk [vmem:[%s959] ss:$8 sm:$0x7] %vm143, %v957
        %961 = vst.msk [vmem:[%s959] ss:$8 sm:$0x0] %vm143, %v957
        %v962 = vld [vmem:[%s138 + $0x1] sm:$0xf]
        %964 = vrot.lane.b32.xlu0 %v962, 60
        %v965 = vpop.permute.xlu0 %964
        %v966 = vrot.slane %v965, 1
        %vm967 = vcmask 490496
        %v968 = vsel %vm967, %v965, %v966
        %s970 = scalar_lea.vmem [#allocation2], 220
        %971 = vst.msk [vmem:[%s970] ss:$8 sm:$0x7] %vm143, %v968
        %972 = vst.msk [vmem:[%s970] ss:$8 sm:$0x0] %vm143, %v968
        %v973 = vld [vmem:[%s138 + $0x1] sm:$0xf]
        %975 = vrot.lane.b32.xlu0 %v973, 59
        %v976 = vpop.permute.xlu0 %975
        %v977 = vrot.slane %v976, 1
        %vm978 = vcmask 482304
        %v979 = vsel %vm978, %v976, %v977
        %s981 = scalar_lea.vmem [#allocation2], 221
        %982 = vst.msk [vmem:[%s981] ss:$8 sm:$0x7] %vm143, %v979
        %983 = vst.msk [vmem:[%s981] ss:$8 sm:$0x0] %vm143, %v979
        %v984 = vld [vmem:[%s138 + $0x1] sm:$0xf]
        %986 = vrot.lane.b32.xlu0 %v984, 58
        %v987 = vpop.permute.xlu0 %986
        %v988 = vrot.slane %v987, 1
        %vm989 = vcmask 474112
        %v990 = vsel %vm989, %v987, %v988
        %s992 = scalar_lea.vmem [#allocation2], 222
        %993 = vst.msk [vmem:[%s992] ss:$8 sm:$0x7] %vm143, %v990
        %994 = vst.msk [vmem:[%s992] ss:$8 sm:$0x0] %vm143, %v990
        %v995 = vld [vmem:[%s138 + $0x1] sm:$0xf]
        %997 = vrot.lane.b32.xlu0 %v995, 57
        %v998 = vpop.permute.xlu0 %997
        %v999 = vrot.slane %v998, 1
        %vm1000 = vcmask 465920
        %v1001 = vsel %vm1000, %v998, %v999
        %s1003 = scalar_lea.vmem [#allocation2], 223
        %1004 = vst.msk [vmem:[%s1003] ss:$8 sm:$0x7] %vm143, %v1001
        %1005 = vst.msk [vmem:[%s1003] ss:$8 sm:$0x0] %vm143, %v1001
        %v1006 = vld [vmem:[%s138 + $0x1] sm:$0xf]
        %1008 = vrot.lane.b32.xlu0 %v1006, 56
        %v1009 = vpop.permute.xlu0 %1008
        %v1010 = vrot.slane %v1009, 1
        %v1011 = vsel %vm437, %v1009, %v1010
        %s1013 = scalar_lea.vmem [#allocation2], 240
        %1014 = vst.msk [vmem:[%s1013] ss:$8 sm:$0x7] %vm143, %v1011
        %1015 = vst.msk [vmem:[%s1013] ss:$8 sm:$0x0] %vm143, %v1011
        %v1016 = vld [vmem:[%s0] sm:$0xff]
        %v1017 = vld [vmem:[%s0 + $0x8] sm:$0xff]
        %v1018 = vld [vmem:[%s0 + $0x10] sm:$0xff]
        %v1019 = vld [vmem:[%s0 + $0x18] sm:$0xff]
        %v1020 = vld [vmem:[%s0 + $0x20] sm:$0xff]
        %v1021 = vld [vmem:[%s0 + $0x28] sm:$0xff]
        %v1022 = vld [vmem:[%s0 + $0x30] sm:$0xff]
        %v1023 = vld [vmem:[%s0 + $0x38] sm:$0xff]
        %v1024 = vld [vmem:[%s0 + $0x40] sm:$0xff]
        %v1025 = vld [vmem:[%s0 + $0x48] sm:$0xff]
        %v1026 = vld [vmem:[%s0 + $0x50] sm:$0xff]
        %v1027 = vld [vmem:[%s0 + $0x58] sm:$0xff]
        %v1028 = vld [vmem:[#allocation2] sm:$0xff]
        %v1029 = vld [vmem:[#allocation2 + $0x8] sm:$0xff]
        %v1030 = vld [vmem:[#allocation2 + $0x10] sm:$0xff]
        %v1031 = vld [vmem:[#allocation2 + $0x18] sm:$0xff]
        %v1032 = vld [vmem:[#allocation2 + $0x20] sm:$0xff]
        %v1033 = vld [vmem:[#allocation2 + $0x28] sm:$0xff]
        %v1034 = vld [vmem:[#allocation2 + $0x30] sm:$0xff]
        %v1035 = vld [vmem:[#allocation2 + $0x38] sm:$0xff]
        %v1036 = vld [vmem:[#allocation2 + $0x40] sm:$0xff]
        %v1037 = vld [vmem:[#allocation2 + $0x48] sm:$0xff]
        %v1038 = vld [vmem:[#allocation2 + $0x50] sm:$0xff]
        %v1039 = vld [vmem:[#allocation2 + $0x58] sm:$0xff]
        %v1040 = vld [vmem:[#allocation2 + $0x60] sm:$0xff]
        %v1041 = vld [vmem:[#allocation2 + $0x68] sm:$0xff]
        %v1042 = vld [vmem:[#allocation2 + $0x70] sm:$0xff]
        %v1043 = vld [vmem:[#allocation2 + $0x78] sm:$0xff]
        %v1044 = vld [vmem:[#allocation2 + $0x80] sm:$0xff]
        %v1045 = vld [vmem:[#allocation2 + $0x88] sm:$0xff]
        %v1046 = vld [vmem:[#allocation2 + $0x90] sm:$0xff]
        %v1047 = vld [vmem:[#allocation2 + $0x98] sm:$0xff]
        %v1048 = vld [vmem:[#allocation2 + $0xa0] sm:$0xff]
        %v1049 = vld [vmem:[#allocation2 + $0xa8] sm:$0xff]
        %v1050 = vld [vmem:[#allocation2 + $0xb0] sm:$0xff]
        %v1051 = vld [vmem:[#allocation2 + $0xb8] sm:$0xff]
        %v1052 = vld [vmem:[#allocation2 + $0xc0] sm:$0xff]
        %v1053 = vld [vmem:[#allocation2 + $0xc8] sm:$0xff]
        %v1054 = vld [vmem:[#allocation2 + $0xd0] sm:$0xff]
        %v1055 = vld [vmem:[#allocation2 + $0xd8] sm:$0xff]
        %v1056 = vld [vmem:[#allocation2 + $0xe0] sm:$0xff]
        %v1057 = vld [vmem:[#allocation2 + $0xe8] sm:$0xff]
        %v1058 = vld [vmem:[#allocation2 + $0xf0] sm:$0x1]
        %v1059 = vld [vmem:[#allocation2 + $0xf8] sm:$0x1]
        %v1060 = vld [vmem:[#allocation2 + $0x100] sm:$0x1]
        %v1062 = vsel %vm902, %v1016, 0
        %v1065 = vsel %vm902, %v1017, 0
        %v1068 = vsel %vm902, %v1018, 0
        %v1071 = vsel %vm902, %v1019, 0
        %v1074 = vsel %vm902, %v1020, 0
        %v1077 = vsel %vm902, %v1021, 0
        %v1080 = vsel %vm902, %v1022, 0
        %v1083 = vsel %vm902, %v1023, 0
        %v1086 = vsel %vm902, %v1024, 0
        %v1089 = vsel %vm902, %v1025, 0
        %v1092 = vsel %vm902, %v1026, 0
        %v1095 = vsel %vm902, %v1027, 0
        %vm1097 = vcmask 1040384
        %v1099 = vsel %vm1097, %v1058, 0
        %v1102 = vsel %vm1097, %v1059, 0
        %v1105 = vsel %vm1097, %v1060, 0
        %1107 = vmatpush.msra.mxu0 0.0
        %1108 = vmatpush.msra.mxu0 0.0
        %1109 = vmatpush.msra.mxu0 0.0
        %1110 = vmatpush.msra.mxu0 0.0
        %1111 = vmatpush.msra.mxu0 0.0
        %1112 = vmatpush.msra.mxu0 %v1099
        %1113 = vmatpush.msra.mxu0 %v1055
        %1114 = vmatpush.msra.mxu0 %v1052
        %1115 = vmatpush.msra.mxu0 %v1049
        %1116 = vmatpush.msra.mxu0 %v1046
        %1117 = vmatpush.msra.mxu0 %v1043
        %1118 = vmatpush.msra.mxu0 %v1040
        %1119 = vmatpush.msra.mxu0 %v1037
        %1120 = vmatpush.msra.mxu0 %v1034
        %1121 = vmatpush.msra.mxu0 %v1031
        %1122 = vmatpush.msra.mxu0 %v1028
        %1123 = vmatmul.f32.gmra.mxu0 %v1062
        %v1124 = vpop.f32.mrf.mxu0
        %v1125 = vadd.f32 0.0, %v1124
        %1126 = vmatmul.f32.gmra.mxu0 %v1065
        %v1127 = vpop.f32.mrf.mxu0
        %v1128 = vadd.f32 0.0, %v1127
        %1129 = vmatmul.f32.gmra.mxu0 %v1068
        %v1130 = vpop.f32.mrf.mxu0
        %v1131 = vadd.f32 0.0, %v1130
        %1132 = vmatmul.f32.gmra.mxu0 %v1071
        %v1133 = vpop.f32.mrf.mxu0
        %v1134 = vadd.f32 0.0, %v1133
        %1135 = vmatmul.f32.gmra.mxu0 %v1074
        %v1136 = vpop.f32.mrf.mxu0
        %v1137 = vadd.f32 0.0, %v1136
        %1138 = vmatmul.f32.gmra.mxu0 %v1077
        %v1139 = vpop.f32.mrf.mxu0
        %v1140 = vadd.f32 0.0, %v1139
        %1141 = vmatmul.f32.gmra.mxu0 %v1080
        %v1142 = vpop.f32.mrf.mxu0
        %v1143 = vadd.f32 0.0, %v1142
        %1144 = vmatmul.f32.gmra.mxu0 %v1083
        %v1145 = vpop.f32.mrf.mxu0
        %v1146 = vadd.f32 0.0, %v1145
        %1147 = vmatmul.f32.gmra.mxu0 %v1086
        %v1148 = vpop.f32.mrf.mxu0
        %v1149 = vadd.f32 0.0, %v1148
        %1150 = vmatmul.f32.gmra.mxu0 %v1089
        %v1151 = vpop.f32.mrf.mxu0
        %v1152 = vadd.f32 0.0, %v1151
        %1153 = vmatmul.f32.gmra.mxu0 %v1092
        %v1154 = vpop.f32.mrf.mxu0
        %v1155 = vadd.f32 0.0, %v1154
        %1156 = vmatmul.f32.gmra.mxu0 %v1095
        %v1157 = vpop.f32.mrf.mxu0
        %v1158 = vadd.f32 0.0, %v1157
        %1159 = vdwg.mxu0
        %1160 = vmatpush.msra.mxu0 0.0
        %1161 = vmatpush.msra.mxu0 0.0
        %1162 = vmatpush.msra.mxu0 0.0
        %1163 = vmatpush.msra.mxu0 0.0
        %1164 = vmatpush.msra.mxu0 0.0
        %1165 = vmatpush.msra.mxu0 %v1102
        %1166 = vmatpush.msra.mxu0 %v1056
        %1167 = vmatpush.msra.mxu0 %v1053
        %1168 = vmatpush.msra.mxu0 %v1050
        %1169 = vmatpush.msra.mxu0 %v1047
        %1170 = vmatpush.msra.mxu0 %v1044
        %1171 = vmatpush.msra.mxu0 %v1041
        %1172 = vmatpush.msra.mxu0 %v1038
        %1173 = vmatpush.msra.mxu0 %v1035
        %1174 = vmatpush.msra.mxu0 %v1032
        %1175 = vmatpush.msra.mxu0 %v1029
        %1176 = vmatmul.f32.gmra.mxu0 %v1062
        %v1177 = vpop.f32.mrf.mxu0
        %v1178 = vadd.f32 0.0, %v1177
        %1179 = vmatmul.f32.gmra.mxu0 %v1065
        %v1180 = vpop.f32.mrf.mxu0
        %v1181 = vadd.f32 0.0, %v1180
        %1182 = vmatmul.f32.gmra.mxu0 %v1068
        %v1183 = vpop.f32.mrf.mxu0
        %v1184 = vadd.f32 0.0, %v1183
        %1185 = vmatmul.f32.gmra.mxu0 %v1071
        %v1186 = vpop.f32.mrf.mxu0
        %v1187 = vadd.f32 0.0, %v1186
        %1188 = vmatmul.f32.gmra.mxu0 %v1074
        %v1189 = vpop.f32.mrf.mxu0
        %v1190 = vadd.f32 0.0, %v1189
        %1191 = vmatmul.f32.gmra.mxu0 %v1077
        %v1192 = vpop.f32.mrf.mxu0
        %v1193 = vadd.f32 0.0, %v1192
        %1194 = vmatmul.f32.gmra.mxu0 %v1080
        %v1195 = vpop.f32.mrf.mxu0
        %v1196 = vadd.f32 0.0, %v1195
        %1197 = vmatmul.f32.gmra.mxu0 %v1083
        %v1198 = vpop.f32.mrf.mxu0
        %v1199 = vadd.f32 0.0, %v1198
        %1200 = vmatmul.f32.gmra.mxu0 %v1086
        %v1201 = vpop.f32.mrf.mxu0
        %v1202 = vadd.f32 0.0, %v1201
        %1203 = vmatmul.f32.gmra.mxu0 %v1089
        %v1204 = vpop.f32.mrf.mxu0
        %v1205 = vadd.f32 0.0, %v1204
        %1206 = vmatmul.f32.gmra.mxu0 %v1092
        %v1207 = vpop.f32.mrf.mxu0
        %v1208 = vadd.f32 0.0, %v1207
        %1209 = vmatmul.f32.gmra.mxu0 %v1095
        %v1210 = vpop.f32.mrf.mxu0
        %v1211 = vadd.f32 0.0, %v1210
        %1212 = vdwg.mxu0
        %1213 = vmatpush.msra.mxu0 0.0
        %1214 = vmatpush.msra.mxu0 0.0
        %1215 = vmatpush.msra.mxu0 0.0
        %1216 = vmatpush.msra.mxu0 0.0
        %1217 = vmatpush.msra.mxu0 0.0
        %1218 = vmatpush.msra.mxu0 %v1105
        %1219 = vmatpush.msra.mxu0 %v1057
        %1220 = vmatpush.msra.mxu0 %v1054
        %1221 = vmatpush.msra.mxu0 %v1051
        %1222 = vmatpush.msra.mxu0 %v1048
        %1223 = vmatpush.msra.mxu0 %v1045
        %1224 = vmatpush.msra.mxu0 %v1042
        %1225 = vmatpush.msra.mxu0 %v1039
        %1226 = vmatpush.msra.mxu0 %v1036
        %1227 = vmatpush.msra.mxu0 %v1033
        %1228 = vmatpush.msra.mxu0 %v1030
        %1229 = vmatmul.f32.gmra.mxu0 %v1062
        %v1230 = vpop.f32.mrf.mxu0
        %v1231 = vadd.f32 0.0, %v1230
        %1232 = vmatmul.f32.gmra.mxu0 %v1065
        %v1233 = vpop.f32.mrf.mxu0
        %v1234 = vadd.f32 0.0, %v1233
        %1235 = vmatmul.f32.gmra.mxu0 %v1068
        %v1236 = vpop.f32.mrf.mxu0
        %v1237 = vadd.f32 0.0, %v1236
        %1238 = vmatmul.f32.gmra.mxu0 %v1071
        %v1239 = vpop.f32.mrf.mxu0
        %v1240 = vadd.f32 0.0, %v1239
        %1241 = vmatmul.f32.gmra.mxu0 %v1074
        %v1242 = vpop.f32.mrf.mxu0
        %v1243 = vadd.f32 0.0, %v1242
        %1244 = vmatmul.f32.gmra.mxu0 %v1077
        %v1245 = vpop.f32.mrf.mxu0
        %v1246 = vadd.f32 0.0, %v1245
        %1247 = vmatmul.f32.gmra.mxu0 %v1080
        %v1248 = vpop.f32.mrf.mxu0
        %v1249 = vadd.f32 0.0, %v1248
        %1250 = vmatmul.f32.gmra.mxu0 %v1083
        %v1251 = vpop.f32.mrf.mxu0
        %v1252 = vadd.f32 0.0, %v1251
        %1253 = vmatmul.f32.gmra.mxu0 %v1086
        %v1254 = vpop.f32.mrf.mxu0
        %v1255 = vadd.f32 0.0, %v1254
        %1256 = vmatmul.f32.gmra.mxu0 %v1089
        %v1257 = vpop.f32.mrf.mxu0
        %v1258 = vadd.f32 0.0, %v1257
        %1259 = vmatmul.f32.gmra.mxu0 %v1092
        %v1260 = vpop.f32.mrf.mxu0
        %v1261 = vadd.f32 0.0, %v1260
        %1262 = vmatmul.f32.gmra.mxu0 %v1095
        %v1263 = vpop.f32.mrf.mxu0
        %v1264 = vadd.f32 0.0, %v1263
        %1265 = vdwg.mxu0
        %vm1266 = vcmask 130048
        %1267 = vst.msk [vmem:[%s134] sm:$0xff] %vm1266, %v1125
        %1268 = vst.msk [vmem:[%s134 + $0x10] sm:$0xff] %vm1266, %v1128
        %1269 = vst.msk [vmem:[%s134 + $0x20] sm:$0xff] %vm1266, %v1131
        %1270 = vst.msk [vmem:[%s134 + $0x30] sm:$0xff] %vm1266, %v1134
        %1271 = vst.msk [vmem:[%s134 + $0x40] sm:$0xff] %vm1266, %v1137
        %1272 = vst.msk [vmem:[%s134 + $0x50] sm:$0xff] %vm1266, %v1140
        %1273 = vst.msk [vmem:[%s134 + $0x60] sm:$0xff] %vm1266, %v1143
        %1274 = vst.msk [vmem:[%s134 + $0x70] sm:$0xff] %vm1266, %v1146
        %1275 = vst.msk [vmem:[%s134 + $0x80] sm:$0xff] %vm1266, %v1149
        %1276 = vst.msk [vmem:[%s134 + $0x90] sm:$0xff] %vm1266, %v1152
        %1277 = vst.msk [vmem:[%s134 + $0xa0] sm:$0xff] %vm1266, %v1155
        %1278 = vst.msk [vmem:[%s134 + $0xb0] sm:$0xff] %vm1266, %v1158
        %1291 = vrot.lane.b32.xlu0 %v1125, 120
        %v1292 = vpop.permute.xlu0 %1291
        %1293 = vrot.lane.b32.xlu0 %v1128, 120
        %v1294 = vpop.permute.xlu0 %1293
        %1295 = vrot.lane.b32.xlu0 %v1131, 120
        %v1296 = vpop.permute.xlu0 %1295
        %1297 = vrot.lane.b32.xlu0 %v1134, 120
        %v1298 = vpop.permute.xlu0 %1297
        %1299 = vrot.lane.b32.xlu0 %v1137, 120
        %v1300 = vpop.permute.xlu0 %1299
        %1301 = vrot.lane.b32.xlu0 %v1140, 120
        %v1302 = vpop.permute.xlu0 %1301
        %1303 = vrot.lane.b32.xlu0 %v1143, 120
        %v1304 = vpop.permute.xlu0 %1303
        %1305 = vrot.lane.b32.xlu0 %v1146, 120
        %v1306 = vpop.permute.xlu0 %1305
        %1307 = vrot.lane.b32.xlu0 %v1149, 120
        %v1308 = vpop.permute.xlu0 %1307
        %1309 = vrot.lane.b32.xlu0 %v1152, 120
        %v1310 = vpop.permute.xlu0 %1309
        %1311 = vrot.lane.b32.xlu0 %v1155, 120
        %v1312 = vpop.permute.xlu0 %1311
        %1313 = vrot.lane.b32.xlu0 %v1158, 120
        %v1314 = vpop.permute.xlu0 %1313
        %vm1327 = vcmask 261248
        %1328 = vst.msk [vmem:[%s134] sm:$0xff] %vm1327, %v1292
        %1329 = vst.msk [vmem:[%s134 + $0x10] sm:$0xff] %vm1327, %v1294
        %1330 = vst.msk [vmem:[%s134 + $0x20] sm:$0xff] %vm1327, %v1296
        %1331 = vst.msk [vmem:[%s134 + $0x30] sm:$0xff] %vm1327, %v1298
        %1332 = vst.msk [vmem:[%s134 + $0x40] sm:$0xff] %vm1327, %v1300
        %1333 = vst.msk [vmem:[%s134 + $0x50] sm:$0xff] %vm1327, %v1302
        %1334 = vst.msk [vmem:[%s134 + $0x60] sm:$0xff] %vm1327, %v1304
        %1335 = vst.msk [vmem:[%s134 + $0x70] sm:$0xff] %vm1327, %v1306
        %1336 = vst.msk [vmem:[%s134 + $0x80] sm:$0xff] %vm1327, %v1308
        %1337 = vst.msk [vmem:[%s134 + $0x90] sm:$0xff] %vm1327, %v1310
        %1338 = vst.msk [vmem:[%s134 + $0xa0] sm:$0xff] %vm1327, %v1312
        %1339 = vst.msk [vmem:[%s134 + $0xb0] sm:$0xff] %vm1327, %v1314
        %1340 = vrot.lane.b32.xlu0 %v1125, 112
        %v1341 = vpop.permute.xlu0 %1340
        %1342 = vrot.lane.b32.xlu0 %v1128, 112
        %v1343 = vpop.permute.xlu0 %1342
        %1344 = vrot.lane.b32.xlu0 %v1131, 112
        %v1345 = vpop.permute.xlu0 %1344
        %1346 = vrot.lane.b32.xlu0 %v1134, 112
        %v1347 = vpop.permute.xlu0 %1346
        %1348 = vrot.lane.b32.xlu0 %v1137, 112
        %v1349 = vpop.permute.xlu0 %1348
        %1350 = vrot.lane.b32.xlu0 %v1140, 112
        %v1351 = vpop.permute.xlu0 %1350
        %1352 = vrot.lane.b32.xlu0 %v1143, 112
        %v1353 = vpop.permute.xlu0 %1352
        %1354 = vrot.lane.b32.xlu0 %v1146, 112
        %v1355 = vpop.permute.xlu0 %1354
        %1356 = vrot.lane.b32.xlu0 %v1149, 112
        %v1357 = vpop.permute.xlu0 %1356
        %1358 = vrot.lane.b32.xlu0 %v1152, 112
        %v1359 = vpop.permute.xlu0 %1358
        %1360 = vrot.lane.b32.xlu0 %v1155, 112
        %v1361 = vpop.permute.xlu0 %1360
        %1362 = vrot.lane.b32.xlu0 %v1158, 112
        %v1363 = vpop.permute.xlu0 %1362
        %vm1376 = vcmask 392448
        %1377 = vst.msk [vmem:[%s134] sm:$0xff] %vm1376, %v1341
        %1378 = vst.msk [vmem:[%s134 + $0x10] sm:$0xff] %vm1376, %v1343
        %1379 = vst.msk [vmem:[%s134 + $0x20] sm:$0xff] %vm1376, %v1345
        %1380 = vst.msk [vmem:[%s134 + $0x30] sm:$0xff] %vm1376, %v1347
        %1381 = vst.msk [vmem:[%s134 + $0x40] sm:$0xff] %vm1376, %v1349
        %1382 = vst.msk [vmem:[%s134 + $0x50] sm:$0xff] %vm1376, %v1351
        %1383 = vst.msk [vmem:[%s134 + $0x60] sm:$0xff] %vm1376, %v1353
        %1384 = vst.msk [vmem:[%s134 + $0x70] sm:$0xff] %vm1376, %v1355
        %1385 = vst.msk [vmem:[%s134 + $0x80] sm:$0xff] %vm1376, %v1357
        %1386 = vst.msk [vmem:[%s134 + $0x90] sm:$0xff] %vm1376, %v1359
        %1387 = vst.msk [vmem:[%s134 + $0xa0] sm:$0xff] %vm1376, %v1361
        %1388 = vst.msk [vmem:[%s134 + $0xb0] sm:$0xff] %vm1376, %v1363
        %1389 = vrot.lane.b32.xlu0 %v1125, 104
        %v1390 = vpop.permute.xlu0 %1389
        %1391 = vrot.lane.b32.xlu0 %v1128, 104
        %v1392 = vpop.permute.xlu0 %1391
        %1393 = vrot.lane.b32.xlu0 %v1131, 104
        %v1394 = vpop.permute.xlu0 %1393
        %1395 = vrot.lane.b32.xlu0 %v1134, 104
        %v1396 = vpop.permute.xlu0 %1395
        %1397 = vrot.lane.b32.xlu0 %v1137, 104
        %v1398 = vpop.permute.xlu0 %1397
        %1399 = vrot.lane.b32.xlu0 %v1140, 104
        %v1400 = vpop.permute.xlu0 %1399
        %1401 = vrot.lane.b32.xlu0 %v1143, 104
        %v1402 = vpop.permute.xlu0 %1401
        %1403 = vrot.lane.b32.xlu0 %v1146, 104
        %v1404 = vpop.permute.xlu0 %1403
        %1405 = vrot.lane.b32.xlu0 %v1149, 104
        %v1406 = vpop.permute.xlu0 %1405
        %1407 = vrot.lane.b32.xlu0 %v1152, 104
        %v1408 = vpop.permute.xlu0 %1407
        %1409 = vrot.lane.b32.xlu0 %v1155, 104
        %v1410 = vpop.permute.xlu0 %1409
        %1411 = vrot.lane.b32.xlu0 %v1158, 104
        %v1412 = vpop.permute.xlu0 %1411
        %vm1425 = vcmask 523648
        %1426 = vst.msk [vmem:[%s134] sm:$0xff] %vm1425, %v1390
        %1427 = vst.msk [vmem:[%s134 + $0x10] sm:$0xff] %vm1425, %v1392
        %1428 = vst.msk [vmem:[%s134 + $0x20] sm:$0xff] %vm1425, %v1394
        %1429 = vst.msk [vmem:[%s134 + $0x30] sm:$0xff] %vm1425, %v1396
        %1430 = vst.msk [vmem:[%s134 + $0x40] sm:$0xff] %vm1425, %v1398
        %1431 = vst.msk [vmem:[%s134 + $0x50] sm:$0xff] %vm1425, %v1400
        %1432 = vst.msk [vmem:[%s134 + $0x60] sm:$0xff] %vm1425, %v1402
        %1433 = vst.msk [vmem:[%s134 + $0x70] sm:$0xff] %vm1425, %v1404
        %1434 = vst.msk [vmem:[%s134 + $0x80] sm:$0xff] %vm1425, %v1406
        %1435 = vst.msk [vmem:[%s134 + $0x90] sm:$0xff] %vm1425, %v1408
        %1436 = vst.msk [vmem:[%s134 + $0xa0] sm:$0xff] %vm1425, %v1410
        %1437 = vst.msk [vmem:[%s134 + $0xb0] sm:$0xff] %vm1425, %v1412
        %1438 = vrot.lane.b32.xlu0 %v1125, 96
        %v1439 = vpop.permute.xlu0 %1438
        %1440 = vrot.lane.b32.xlu0 %v1128, 96
        %v1441 = vpop.permute.xlu0 %1440
        %1442 = vrot.lane.b32.xlu0 %v1131, 96
        %v1443 = vpop.permute.xlu0 %1442
        %1444 = vrot.lane.b32.xlu0 %v1134, 96
        %v1445 = vpop.permute.xlu0 %1444
        %1446 = vrot.lane.b32.xlu0 %v1137, 96
        %v1447 = vpop.permute.xlu0 %1446
        %1448 = vrot.lane.b32.xlu0 %v1140, 96
        %v1449 = vpop.permute.xlu0 %1448
        %1450 = vrot.lane.b32.xlu0 %v1143, 96
        %v1451 = vpop.permute.xlu0 %1450
        %1452 = vrot.lane.b32.xlu0 %v1146, 96
        %v1453 = vpop.permute.xlu0 %1452
        %1454 = vrot.lane.b32.xlu0 %v1149, 96
        %v1455 = vpop.permute.xlu0 %1454
        %1456 = vrot.lane.b32.xlu0 %v1152, 96
        %v1457 = vpop.permute.xlu0 %1456
        %1458 = vrot.lane.b32.xlu0 %v1155, 96
        %v1459 = vpop.permute.xlu0 %1458
        %1460 = vrot.lane.b32.xlu0 %v1158, 96
        %v1461 = vpop.permute.xlu0 %1460
        %vm1474 = vcmask 654848
        %1475 = vst.msk [vmem:[%s134] sm:$0xff] %vm1474, %v1439
        %1476 = vst.msk [vmem:[%s134 + $0x10] sm:$0xff] %vm1474, %v1441
        %1477 = vst.msk [vmem:[%s134 + $0x20] sm:$0xff] %vm1474, %v1443
        %1478 = vst.msk [vmem:[%s134 + $0x30] sm:$0xff] %vm1474, %v1445
        %1479 = vst.msk [vmem:[%s134 + $0x40] sm:$0xff] %vm1474, %v1447
        %1480 = vst.msk [vmem:[%s134 + $0x50] sm:$0xff] %vm1474, %v1449
        %1481 = vst.msk [vmem:[%s134 + $0x60] sm:$0xff] %vm1474, %v1451
        %1482 = vst.msk [vmem:[%s134 + $0x70] sm:$0xff] %vm1474, %v1453
        %1483 = vst.msk [vmem:[%s134 + $0x80] sm:$0xff] %vm1474, %v1455
        %1484 = vst.msk [vmem:[%s134 + $0x90] sm:$0xff] %vm1474, %v1457
        %1485 = vst.msk [vmem:[%s134 + $0xa0] sm:$0xff] %vm1474, %v1459
        %1486 = vst.msk [vmem:[%s134 + $0xb0] sm:$0xff] %vm1474, %v1461
        %1499 = vrot.lane.b32.xlu0 %v1125, 88
        %v1500 = vpop.permute.xlu0 %1499
        %1501 = vrot.lane.b32.xlu0 %v1178, 88
        %v1502 = vpop.permute.xlu0 %1501
        %1503 = vrot.lane.b32.xlu0 %v1128, 88
        %v1504 = vpop.permute.xlu0 %1503
        %1505 = vrot.lane.b32.xlu0 %v1181, 88
        %v1506 = vpop.permute.xlu0 %1505
        %1507 = vrot.lane.b32.xlu0 %v1131, 88
        %v1508 = vpop.permute.xlu0 %1507
        %1509 = vrot.lane.b32.xlu0 %v1184, 88
        %v1510 = vpop.permute.xlu0 %1509
        %1511 = vrot.lane.b32.xlu0 %v1134, 88
        %v1512 = vpop.permute.xlu0 %1511
        %1513 = vrot.lane.b32.xlu0 %v1187, 88
        %v1514 = vpop.permute.xlu0 %1513
        %1515 = vrot.lane.b32.xlu0 %v1137, 88
        %v1516 = vpop.permute.xlu0 %1515
        %1517 = vrot.lane.b32.xlu0 %v1190, 88
        %v1518 = vpop.permute.xlu0 %1517
        %1519 = vrot.lane.b32.xlu0 %v1140, 88
        %v1520 = vpop.permute.xlu0 %1519
        %1521 = vrot.lane.b32.xlu0 %v1193, 88
        %v1522 = vpop.permute.xlu0 %1521
        %1523 = vrot.lane.b32.xlu0 %v1143, 88
        %v1524 = vpop.permute.xlu0 %1523
        %1525 = vrot.lane.b32.xlu0 %v1196, 88
        %v1526 = vpop.permute.xlu0 %1525
        %1527 = vrot.lane.b32.xlu0 %v1146, 88
        %v1528 = vpop.permute.xlu0 %1527
        %1529 = vrot.lane.b32.xlu0 %v1199, 88
        %v1530 = vpop.permute.xlu0 %1529
        %1531 = vrot.lane.b32.xlu0 %v1149, 88
        %v1532 = vpop.permute.xlu0 %1531
        %1533 = vrot.lane.b32.xlu0 %v1202, 88
        %v1534 = vpop.permute.xlu0 %1533
        %1535 = vrot.lane.b32.xlu0 %v1152, 88
        %v1536 = vpop.permute.xlu0 %1535
        %1537 = vrot.lane.b32.xlu0 %v1205, 88
        %v1538 = vpop.permute.xlu0 %1537
        %1539 = vrot.lane.b32.xlu0 %v1155, 88
        %v1540 = vpop.permute.xlu0 %1539
        %1541 = vrot.lane.b32.xlu0 %v1208, 88
        %v1542 = vpop.permute.xlu0 %1541
        %1543 = vrot.lane.b32.xlu0 %v1158, 88
        %v1544 = vpop.permute.xlu0 %1543
        %1545 = vrot.lane.b32.xlu0 %v1211, 88
        %v1546 = vpop.permute.xlu0 %1545
        %v1547 = vsel %vm825, %v1500, %v1502
        %v1548 = vsel %vm825, %v1504, %v1506
        %v1549 = vsel %vm825, %v1508, %v1510
        %v1550 = vsel %vm825, %v1512, %v1514
        %v1551 = vsel %vm825, %v1516, %v1518
        %v1552 = vsel %vm825, %v1520, %v1522
        %v1553 = vsel %vm825, %v1524, %v1526
        %v1554 = vsel %vm825, %v1528, %v1530
        %v1555 = vsel %vm825, %v1532, %v1534
        %v1556 = vsel %vm825, %v1536, %v1538
        %v1557 = vsel %vm825, %v1540, %v1542
        %v1558 = vsel %vm825, %v1544, %v1546
        %vm1571 = vcmask 786048
        %1572 = vst.msk [vmem:[%s134] sm:$0xff] %vm1571, %v1547
        %1573 = vst.msk [vmem:[%s134 + $0x10] sm:$0xff] %vm1571, %v1548
        %1574 = vst.msk [vmem:[%s134 + $0x20] sm:$0xff] %vm1571, %v1549
        %1575 = vst.msk [vmem:[%s134 + $0x30] sm:$0xff] %vm1571, %v1550
        %1576 = vst.msk [vmem:[%s134 + $0x40] sm:$0xff] %vm1571, %v1551
        %1577 = vst.msk [vmem:[%s134 + $0x50] sm:$0xff] %vm1571, %v1552
        %1578 = vst.msk [vmem:[%s134 + $0x60] sm:$0xff] %vm1571, %v1553
        %1579 = vst.msk [vmem:[%s134 + $0x70] sm:$0xff] %vm1571, %v1554
        %1580 = vst.msk [vmem:[%s134 + $0x80] sm:$0xff] %vm1571, %v1555
        %1581 = vst.msk [vmem:[%s134 + $0x90] sm:$0xff] %vm1571, %v1556
        %1582 = vst.msk [vmem:[%s134 + $0xa0] sm:$0xff] %vm1571, %v1557
        %1583 = vst.msk [vmem:[%s134 + $0xb0] sm:$0xff] %vm1571, %v1558
        %1584 = vrot.lane.b32.xlu0 %v1178, 80
        %v1585 = vpop.permute.xlu0 %1584
        %1586 = vrot.lane.b32.xlu0 %v1181, 80
        %v1587 = vpop.permute.xlu0 %1586
        %1588 = vrot.lane.b32.xlu0 %v1184, 80
        %v1589 = vpop.permute.xlu0 %1588
        %1590 = vrot.lane.b32.xlu0 %v1187, 80
        %v1591 = vpop.permute.xlu0 %1590
        %1592 = vrot.lane.b32.xlu0 %v1190, 80
        %v1593 = vpop.permute.xlu0 %1592
        %1594 = vrot.lane.b32.xlu0 %v1193, 80
        %v1595 = vpop.permute.xlu0 %1594
        %1596 = vrot.lane.b32.xlu0 %v1196, 80
        %v1597 = vpop.permute.xlu0 %1596
        %1598 = vrot.lane.b32.xlu0 %v1199, 80
        %v1599 = vpop.permute.xlu0 %1598
        %1600 = vrot.lane.b32.xlu0 %v1202, 80
        %v1601 = vpop.permute.xlu0 %1600
        %1602 = vrot.lane.b32.xlu0 %v1205, 80
        %v1603 = vpop.permute.xlu0 %1602
        %1604 = vrot.lane.b32.xlu0 %v1208, 80
        %v1605 = vpop.permute.xlu0 %1604
        %1606 = vrot.lane.b32.xlu0 %v1211, 80
        %v1607 = vpop.permute.xlu0 %1606
        %vm1620 = vcmask 917248
        %1621 = vst.msk [vmem:[%s134] sm:$0xff] %vm1620, %v1585
        %1622 = vst.msk [vmem:[%s134 + $0x10] sm:$0xff] %vm1620, %v1587
        %1623 = vst.msk [vmem:[%s134 + $0x20] sm:$0xff] %vm1620, %v1589
        %1624 = vst.msk [vmem:[%s134 + $0x30] sm:$0xff] %vm1620, %v1591
        %1625 = vst.msk [vmem:[%s134 + $0x40] sm:$0xff] %vm1620, %v1593
        %1626 = vst.msk [vmem:[%s134 + $0x50] sm:$0xff] %vm1620, %v1595
        %1627 = vst.msk [vmem:[%s134 + $0x60] sm:$0xff] %vm1620, %v1597
        %1628 = vst.msk [vmem:[%s134 + $0x70] sm:$0xff] %vm1620, %v1599
        %1629 = vst.msk [vmem:[%s134 + $0x80] sm:$0xff] %vm1620, %v1601
        %1630 = vst.msk [vmem:[%s134 + $0x90] sm:$0xff] %vm1620, %v1603
        %1631 = vst.msk [vmem:[%s134 + $0xa0] sm:$0xff] %vm1620, %v1605
        %1632 = vst.msk [vmem:[%s134 + $0xb0] sm:$0xff] %vm1620, %v1607
        %1633 = vrot.lane.b32.xlu0 %v1178, 72
        %v1634 = vpop.permute.xlu0 %1633
        %1635 = vrot.lane.b32.xlu0 %v1181, 72
        %v1636 = vpop.permute.xlu0 %1635
        %1637 = vrot.lane.b32.xlu0 %v1184, 72
        %v1638 = vpop.permute.xlu0 %1637
        %1639 = vrot.lane.b32.xlu0 %v1187, 72
        %v1640 = vpop.permute.xlu0 %1639
        %1641 = vrot.lane.b32.xlu0 %v1190, 72
        %v1642 = vpop.permute.xlu0 %1641
        %1643 = vrot.lane.b32.xlu0 %v1193, 72
        %v1644 = vpop.permute.xlu0 %1643
        %1645 = vrot.lane.b32.xlu0 %v1196, 72
        %v1646 = vpop.permute.xlu0 %1645
        %1647 = vrot.lane.b32.xlu0 %v1199, 72
        %v1648 = vpop.permute.xlu0 %1647
        %1649 = vrot.lane.b32.xlu0 %v1202, 72
        %v1650 = vpop.permute.xlu0 %1649
        %1651 = vrot.lane.b32.xlu0 %v1205, 72
        %v1652 = vpop.permute.xlu0 %1651
        %1653 = vrot.lane.b32.xlu0 %v1208, 72
        %v1654 = vpop.permute.xlu0 %1653
        %1655 = vrot.lane.b32.xlu0 %v1211, 72
        %v1656 = vpop.permute.xlu0 %1655
        %vm1669 = vcmask 1048448
        %1670 = vst.msk [vmem:[%s134] sm:$0xff] %vm1669, %v1634
        %1671 = vst.msk [vmem:[%s134 + $0x10] sm:$0xff] %vm1669, %v1636
        %1672 = vst.msk [vmem:[%s134 + $0x20] sm:$0xff] %vm1669, %v1638
        %1673 = vst.msk [vmem:[%s134 + $0x30] sm:$0xff] %vm1669, %v1640
        %1674 = vst.msk [vmem:[%s134 + $0x40] sm:$0xff] %vm1669, %v1642
        %1675 = vst.msk [vmem:[%s134 + $0x50] sm:$0xff] %vm1669, %v1644
        %1676 = vst.msk [vmem:[%s134 + $0x60] sm:$0xff] %vm1669, %v1646
        %1677 = vst.msk [vmem:[%s134 + $0x70] sm:$0xff] %vm1669, %v1648
        %1678 = vst.msk [vmem:[%s134 + $0x80] sm:$0xff] %vm1669, %v1650
        %1679 = vst.msk [vmem:[%s134 + $0x90] sm:$0xff] %vm1669, %v1652
        %1680 = vst.msk [vmem:[%s134 + $0xa0] sm:$0xff] %vm1669, %v1654
        %1681 = vst.msk [vmem:[%s134 + $0xb0] sm:$0xff] %vm1669, %v1656
        %1682 = vrot.lane.b32.xlu0 %v1178, 64
        %v1683 = vpop.permute.xlu0 %1682
        %1684 = vrot.lane.b32.xlu0 %v1181, 64
        %v1685 = vpop.permute.xlu0 %1684
        %1686 = vrot.lane.b32.xlu0 %v1184, 64
        %v1687 = vpop.permute.xlu0 %1686
        %1688 = vrot.lane.b32.xlu0 %v1187, 64
        %v1689 = vpop.permute.xlu0 %1688
        %1690 = vrot.lane.b32.xlu0 %v1190, 64
        %v1691 = vpop.permute.xlu0 %1690
        %1692 = vrot.lane.b32.xlu0 %v1193, 64
        %v1693 = vpop.permute.xlu0 %1692
        %1694 = vrot.lane.b32.xlu0 %v1196, 64
        %v1695 = vpop.permute.xlu0 %1694
        %1696 = vrot.lane.b32.xlu0 %v1199, 64
        %v1697 = vpop.permute.xlu0 %1696
        %1698 = vrot.lane.b32.xlu0 %v1202, 64
        %v1699 = vpop.permute.xlu0 %1698
        %1700 = vrot.lane.b32.xlu0 %v1205, 64
        %v1701 = vpop.permute.xlu0 %1700
        %1702 = vrot.lane.b32.xlu0 %v1208, 64
        %v1703 = vpop.permute.xlu0 %1702
        %1704 = vrot.lane.b32.xlu0 %v1211, 64
        %v1705 = vpop.permute.xlu0 %1704
        %1718 = vst.msk [vmem:[%s134 + $0x8] sm:$0xff] %vm1266, %v1683
        %1719 = vst.msk [vmem:[%s134 + $0x18] sm:$0xff] %vm1266, %v1685
        %1720 = vst.msk [vmem:[%s134 + $0x28] sm:$0xff] %vm1266, %v1687
        %1721 = vst.msk [vmem:[%s134 + $0x38] sm:$0xff] %vm1266, %v1689
        %1722 = vst.msk [vmem:[%s134 + $0x48] sm:$0xff] %vm1266, %v1691
        %1723 = vst.msk [vmem:[%s134 + $0x58] sm:$0xff] %vm1266, %v1693
        %1724 = vst.msk [vmem:[%s134 + $0x68] sm:$0xff] %vm1266, %v1695
        %1725 = vst.msk [vmem:[%s134 + $0x78] sm:$0xff] %vm1266, %v1697
        %1726 = vst.msk [vmem:[%s134 + $0x88] sm:$0xff] %vm1266, %v1699
        %1727 = vst.msk [vmem:[%s134 + $0x98] sm:$0xff] %vm1266, %v1701
        %1728 = vst.msk [vmem:[%s134 + $0xa8] sm:$0xff] %vm1266, %v1703
        %1729 = vst.msk [vmem:[%s134 + $0xb8] sm:$0xff] %vm1266, %v1705
        %1730 = vrot.lane.b32.xlu0 %v1178, 56
        %v1731 = vpop.permute.xlu0 %1730
        %1732 = vrot.lane.b32.xlu0 %v1181, 56
        %v1733 = vpop.permute.xlu0 %1732
        %1734 = vrot.lane.b32.xlu0 %v1184, 56
        %v1735 = vpop.permute.xlu0 %1734
        %1736 = vrot.lane.b32.xlu0 %v1187, 56
        %v1737 = vpop.permute.xlu0 %1736
        %1738 = vrot.lane.b32.xlu0 %v1190, 56
        %v1739 = vpop.permute.xlu0 %1738
        %1740 = vrot.lane.b32.xlu0 %v1193, 56
        %v1741 = vpop.permute.xlu0 %1740
        %1742 = vrot.lane.b32.xlu0 %v1196, 56
        %v1743 = vpop.permute.xlu0 %1742
        %1744 = vrot.lane.b32.xlu0 %v1199, 56
        %v1745 = vpop.permute.xlu0 %1744
        %1746 = vrot.lane.b32.xlu0 %v1202, 56
        %v1747 = vpop.permute.xlu0 %1746
        %1748 = vrot.lane.b32.xlu0 %v1205, 56
        %v1749 = vpop.permute.xlu0 %1748
        %1750 = vrot.lane.b32.xlu0 %v1208, 56
        %v1751 = vpop.permute.xlu0 %1750
        %1752 = vrot.lane.b32.xlu0 %v1211, 56
        %v1753 = vpop.permute.xlu0 %1752
        %1766 = vst.msk [vmem:[%s134 + $0x8] sm:$0xff] %vm1327, %v1731
        %1767 = vst.msk [vmem:[%s134 + $0x18] sm:$0xff] %vm1327, %v1733
        %1768 = vst.msk [vmem:[%s134 + $0x28] sm:$0xff] %vm1327, %v1735
        %1769 = vst.msk [vmem:[%s134 + $0x38] sm:$0xff] %vm1327, %v1737
        %1770 = vst.msk [vmem:[%s134 + $0x48] sm:$0xff] %vm1327, %v1739
        %1771 = vst.msk [vmem:[%s134 + $0x58] sm:$0xff] %vm1327, %v1741
        %1772 = vst.msk [vmem:[%s134 + $0x68] sm:$0xff] %vm1327, %v1743
        %1773 = vst.msk [vmem:[%s134 + $0x78] sm:$0xff] %vm1327, %v1745
        %1774 = vst.msk [vmem:[%s134 + $0x88] sm:$0xff] %vm1327, %v1747
        %1775 = vst.msk [vmem:[%s134 + $0x98] sm:$0xff] %vm1327, %v1749
        %1776 = vst.msk [vmem:[%s134 + $0xa8] sm:$0xff] %vm1327, %v1751
        %1777 = vst.msk [vmem:[%s134 + $0xb8] sm:$0xff] %vm1327, %v1753
        %1778 = vrot.lane.b32.xlu0 %v1178, 48
        %v1779 = vpop.permute.xlu0 %1778
        %1780 = vrot.lane.b32.xlu0 %v1181, 48
        %v1781 = vpop.permute.xlu0 %1780
        %1782 = vrot.lane.b32.xlu0 %v1184, 48
        %v1783 = vpop.permute.xlu0 %1782
        %1784 = vrot.lane.b32.xlu0 %v1187, 48
        %v1785 = vpop.permute.xlu0 %1784
        %1786 = vrot.lane.b32.xlu0 %v1190, 48
        %v1787 = vpop.permute.xlu0 %1786
        %1788 = vrot.lane.b32.xlu0 %v1193, 48
        %v1789 = vpop.permute.xlu0 %1788
        %1790 = vrot.lane.b32.xlu0 %v1196, 48
        %v1791 = vpop.permute.xlu0 %1790
        %1792 = vrot.lane.b32.xlu0 %v1199, 48
        %v1793 = vpop.permute.xlu0 %1792
        %1794 = vrot.lane.b32.xlu0 %v1202, 48
        %v1795 = vpop.permute.xlu0 %1794
        %1796 = vrot.lane.b32.xlu0 %v1205, 48
        %v1797 = vpop.permute.xlu0 %1796
        %1798 = vrot.lane.b32.xlu0 %v1208, 48
        %v1799 = vpop.permute.xlu0 %1798
        %1800 = vrot.lane.b32.xlu0 %v1211, 48
        %v1801 = vpop.permute.xlu0 %1800
        %1814 = vst.msk [vmem:[%s134 + $0x8] sm:$0xff] %vm1376, %v1779
        %1815 = vst.msk [vmem:[%s134 + $0x18] sm:$0xff] %vm1376, %v1781
        %1816 = vst.msk [vmem:[%s134 + $0x28] sm:$0xff] %vm1376, %v1783
        %1817 = vst.msk [vmem:[%s134 + $0x38] sm:$0xff] %vm1376, %v1785
        %1818 = vst.msk [vmem:[%s134 + $0x48] sm:$0xff] %vm1376, %v1787
        %1819 = vst.msk [vmem:[%s134 + $0x58] sm:$0xff] %vm1376, %v1789
        %1820 = vst.msk [vmem:[%s134 + $0x68] sm:$0xff] %vm1376, %v1791
        %1821 = vst.msk [vmem:[%s134 + $0x78] sm:$0xff] %vm1376, %v1793
        %1822 = vst.msk [vmem:[%s134 + $0x88] sm:$0xff] %vm1376, %v1795
        %1823 = vst.msk [vmem:[%s134 + $0x98] sm:$0xff] %vm1376, %v1797
        %1824 = vst.msk [vmem:[%s134 + $0xa8] sm:$0xff] %vm1376, %v1799
        %1825 = vst.msk [vmem:[%s134 + $0xb8] sm:$0xff] %vm1376, %v1801
        %1838 = vrot.lane.b32.xlu0 %v1231, 40
        %v1839 = vpop.permute.xlu0 %1838
        %1840 = vrot.lane.b32.xlu0 %v1234, 40
        %v1841 = vpop.permute.xlu0 %1840
        %1842 = vrot.lane.b32.xlu0 %v1237, 40
        %v1843 = vpop.permute.xlu0 %1842
        %1844 = vrot.lane.b32.xlu0 %v1240, 40
        %v1845 = vpop.permute.xlu0 %1844
        %1846 = vrot.lane.b32.xlu0 %v1243, 40
        %v1847 = vpop.permute.xlu0 %1846
        %1848 = vrot.lane.b32.xlu0 %v1246, 40
        %v1849 = vpop.permute.xlu0 %1848
        %1850 = vrot.lane.b32.xlu0 %v1249, 40
        %v1851 = vpop.permute.xlu0 %1850
        %1852 = vrot.lane.b32.xlu0 %v1252, 40
        %v1853 = vpop.permute.xlu0 %1852
        %1854 = vrot.lane.b32.xlu0 %v1255, 40
        %v1855 = vpop.permute.xlu0 %1854
        %1856 = vrot.lane.b32.xlu0 %v1258, 40
        %v1857 = vpop.permute.xlu0 %1856
        %1858 = vrot.lane.b32.xlu0 %v1261, 40
        %v1859 = vpop.permute.xlu0 %1858
        %1860 = vrot.lane.b32.xlu0 %v1264, 40
        %v1861 = vpop.permute.xlu0 %1860
        %1874 = vst.msk [vmem:[%s134 + $0x8] sm:$0xff] %vm1425, %v1839
        %1875 = vst.msk [vmem:[%s134 + $0x18] sm:$0xff] %vm1425, %v1841
        %1876 = vst.msk [vmem:[%s134 + $0x28] sm:$0xff] %vm1425, %v1843
        %1877 = vst.msk [vmem:[%s134 + $0x38] sm:$0xff] %vm1425, %v1845
        %1878 = vst.msk [vmem:[%s134 + $0x48] sm:$0xff] %vm1425, %v1847
        %1879 = vst.msk [vmem:[%s134 + $0x58] sm:$0xff] %vm1425, %v1849
        %1880 = vst.msk [vmem:[%s134 + $0x68] sm:$0xff] %vm1425, %v1851
        %1881 = vst.msk [vmem:[%s134 + $0x78] sm:$0xff] %vm1425, %v1853
        %1882 = vst.msk [vmem:[%s134 + $0x88] sm:$0xff] %vm1425, %v1855
        %1883 = vst.msk [vmem:[%s134 + $0x98] sm:$0xff] %vm1425, %v1857
        %1884 = vst.msk [vmem:[%s134 + $0xa8] sm:$0xff] %vm1425, %v1859
        %1885 = vst.msk [vmem:[%s134 + $0xb8] sm:$0xff] %vm1425, %v1861
        %1886 = vrot.lane.b32.xlu0 %v1231, 32
        %v1887 = vpop.permute.xlu0 %1886
        %1888 = vrot.lane.b32.xlu0 %v1234, 32
        %v1889 = vpop.permute.xlu0 %1888
        %1890 = vrot.lane.b32.xlu0 %v1237, 32
        %v1891 = vpop.permute.xlu0 %1890
        %1892 = vrot.lane.b32.xlu0 %v1240, 32
        %v1893 = vpop.permute.xlu0 %1892
        %1894 = vrot.lane.b32.xlu0 %v1243, 32
        %v1895 = vpop.permute.xlu0 %1894
        %1896 = vrot.lane.b32.xlu0 %v1246, 32
        %v1897 = vpop.permute.xlu0 %1896
        %1898 = vrot.lane.b32.xlu0 %v1249, 32
        %v1899 = vpop.permute.xlu0 %1898
        %1900 = vrot.lane.b32.xlu0 %v1252, 32
        %v1901 = vpop.permute.xlu0 %1900
        %1902 = vrot.lane.b32.xlu0 %v1255, 32
        %v1903 = vpop.permute.xlu0 %1902
        %1904 = vrot.lane.b32.xlu0 %v1258, 32
        %v1905 = vpop.permute.xlu0 %1904
        %1906 = vrot.lane.b32.xlu0 %v1261, 32
        %v1907 = vpop.permute.xlu0 %1906
        %1908 = vrot.lane.b32.xlu0 %v1264, 32
        %v1909 = vpop.permute.xlu0 %1908
        %1922 = vst.msk [vmem:[%s134 + $0x8] sm:$0xff] %vm1474, %v1887
        %1923 = vst.msk [vmem:[%s134 + $0x18] sm:$0xff] %vm1474, %v1889
        %1924 = vst.msk [vmem:[%s134 + $0x28] sm:$0xff] %vm1474, %v1891
        %1925 = vst.msk [vmem:[%s134 + $0x38] sm:$0xff] %vm1474, %v1893
        %1926 = vst.msk [vmem:[%s134 + $0x48] sm:$0xff] %vm1474, %v1895
        %1927 = vst.msk [vmem:[%s134 + $0x58] sm:$0xff] %vm1474, %v1897
        %1928 = vst.msk [vmem:[%s134 + $0x68] sm:$0xff] %vm1474, %v1899
        %1929 = vst.msk [vmem:[%s134 + $0x78] sm:$0xff] %vm1474, %v1901
        %1930 = vst.msk [vmem:[%s134 + $0x88] sm:$0xff] %vm1474, %v1903
        %1931 = vst.msk [vmem:[%s134 + $0x98] sm:$0xff] %vm1474, %v1905
        %1932 = vst.msk [vmem:[%s134 + $0xa8] sm:$0xff] %vm1474, %v1907
        %1933 = vst.msk [vmem:[%s134 + $0xb8] sm:$0xff] %vm1474, %v1909
        %1934 = vrot.lane.b32.xlu0 %v1231, 24
        %v1935 = vpop.permute.xlu0 %1934
        %1936 = vrot.lane.b32.xlu0 %v1234, 24
        %v1937 = vpop.permute.xlu0 %1936
        %1938 = vrot.lane.b32.xlu0 %v1237, 24
        %v1939 = vpop.permute.xlu0 %1938
        %1940 = vrot.lane.b32.xlu0 %v1240, 24
        %v1941 = vpop.permute.xlu0 %1940
        %1942 = vrot.lane.b32.xlu0 %v1243, 24
        %v1943 = vpop.permute.xlu0 %1942
        %1944 = vrot.lane.b32.xlu0 %v1246, 24
        %v1945 = vpop.permute.xlu0 %1944
        %1946 = vrot.lane.b32.xlu0 %v1249, 24
        %v1947 = vpop.permute.xlu0 %1946
        %1948 = vrot.lane.b32.xlu0 %v1252, 24
        %v1949 = vpop.permute.xlu0 %1948
        %1950 = vrot.lane.b32.xlu0 %v1255, 24
        %v1951 = vpop.permute.xlu0 %1950
        %1952 = vrot.lane.b32.xlu0 %v1258, 24
        %v1953 = vpop.permute.xlu0 %1952
        %1954 = vrot.lane.b32.xlu0 %v1261, 24
        %v1955 = vpop.permute.xlu0 %1954
        %1956 = vrot.lane.b32.xlu0 %v1264, 24
        %v1957 = vpop.permute.xlu0 %1956
        %1970 = vst.msk [vmem:[%s134 + $0x8] sm:$0xff] %vm1571, %v1935
        %1971 = vst.msk [vmem:[%s134 + $0x18] sm:$0xff] %vm1571, %v1937
        %1972 = vst.msk [vmem:[%s134 + $0x28] sm:$0xff] %vm1571, %v1939
        %1973 = vst.msk [vmem:[%s134 + $0x38] sm:$0xff] %vm1571, %v1941
        %1974 = vst.msk [vmem:[%s134 + $0x48] sm:$0xff] %vm1571, %v1943
        %1975 = vst.msk [vmem:[%s134 + $0x58] sm:$0xff] %vm1571, %v1945
        %1976 = vst.msk [vmem:[%s134 + $0x68] sm:$0xff] %vm1571, %v1947
        %1977 = vst.msk [vmem:[%s134 + $0x78] sm:$0xff] %vm1571, %v1949
        %1978 = vst.msk [vmem:[%s134 + $0x88] sm:$0xff] %vm1571, %v1951
        %1979 = vst.msk [vmem:[%s134 + $0x98] sm:$0xff] %vm1571, %v1953
        %1980 = vst.msk [vmem:[%s134 + $0xa8] sm:$0xff] %vm1571, %v1955
        %1981 = vst.msk [vmem:[%s134 + $0xb8] sm:$0xff] %vm1571, %v1957
        %1982 = vrot.lane.b32.xlu0 %v1231, 16
        %v1983 = vpop.permute.xlu0 %1982
        %1984 = vrot.lane.b32.xlu0 %v1234, 16
        %v1985 = vpop.permute.xlu0 %1984
        %1986 = vrot.lane.b32.xlu0 %v1237, 16
        %v1987 = vpop.permute.xlu0 %1986
        %1988 = vrot.lane.b32.xlu0 %v1240, 16
        %v1989 = vpop.permute.xlu0 %1988
        %1990 = vrot.lane.b32.xlu0 %v1243, 16
        %v1991 = vpop.permute.xlu0 %1990
        %1992 = vrot.lane.b32.xlu0 %v1246, 16
        %v1993 = vpop.permute.xlu0 %1992
        %1994 = vrot.lane.b32.xlu0 %v1249, 16
        %v1995 = vpop.permute.xlu0 %1994
        %1996 = vrot.lane.b32.xlu0 %v1252, 16
        %v1997 = vpop.permute.xlu0 %1996
        %1998 = vrot.lane.b32.xlu0 %v1255, 16
        %v1999 = vpop.permute.xlu0 %1998
        %2000 = vrot.lane.b32.xlu0 %v1258, 16
        %v2001 = vpop.permute.xlu0 %2000
        %2002 = vrot.lane.b32.xlu0 %v1261, 16
        %v2003 = vpop.permute.xlu0 %2002
        %2004 = vrot.lane.b32.xlu0 %v1264, 16
        %v2005 = vpop.permute.xlu0 %2004
        %2018 = vst.msk [vmem:[%s134 + $0x8] sm:$0xff] %vm1620, %v1983
        %2019 = vst.msk [vmem:[%s134 + $0x18] sm:$0xff] %vm1620, %v1985
        %2020 = vst.msk [vmem:[%s134 + $0x28] sm:$0xff] %vm1620, %v1987
        %2021 = vst.msk [vmem:[%s134 + $0x38] sm:$0xff] %vm1620, %v1989
        %2022 = vst.msk [vmem:[%s134 + $0x48] sm:$0xff] %vm1620, %v1991
        %2023 = vst.msk [vmem:[%s134 + $0x58] sm:$0xff] %vm1620, %v1993
        %2024 = vst.msk [vmem:[%s134 + $0x68] sm:$0xff] %vm1620, %v1995
        %2025 = vst.msk [vmem:[%s134 + $0x78] sm:$0xff] %vm1620, %v1997
        %2026 = vst.msk [vmem:[%s134 + $0x88] sm:$0xff] %vm1620, %v1999
        %2027 = vst.msk [vmem:[%s134 + $0x98] sm:$0xff] %vm1620, %v2001
        %2028 = vst.msk [vmem:[%s134 + $0xa8] sm:$0xff] %vm1620, %v2003
        %2029 = vst.msk [vmem:[%s134 + $0xb8] sm:$0xff] %vm1620, %v2005
        %2030 = vrot.lane.b32.xlu0 %v1231, 8
        %v2031 = vpop.permute.xlu0 %2030
        %2032 = vrot.lane.b32.xlu0 %v1234, 8
        %v2033 = vpop.permute.xlu0 %2032
        %2034 = vrot.lane.b32.xlu0 %v1237, 8
        %v2035 = vpop.permute.xlu0 %2034
        %2036 = vrot.lane.b32.xlu0 %v1240, 8
        %v2037 = vpop.permute.xlu0 %2036
        %2038 = vrot.lane.b32.xlu0 %v1243, 8
        %v2039 = vpop.permute.xlu0 %2038
        %2040 = vrot.lane.b32.xlu0 %v1246, 8
        %v2041 = vpop.permute.xlu0 %2040
        %2042 = vrot.lane.b32.xlu0 %v1249, 8
        %v2043 = vpop.permute.xlu0 %2042
        %2044 = vrot.lane.b32.xlu0 %v1252, 8
        %v2045 = vpop.permute.xlu0 %2044
        %2046 = vrot.lane.b32.xlu0 %v1255, 8
        %v2047 = vpop.permute.xlu0 %2046
        %2048 = vrot.lane.b32.xlu0 %v1258, 8
        %v2049 = vpop.permute.xlu0 %2048
        %2050 = vrot.lane.b32.xlu0 %v1261, 8
        %v2051 = vpop.permute.xlu0 %2050
        %2052 = vrot.lane.b32.xlu0 %v1264, 8
        %v2053 = vpop.permute.xlu0 %2052
        %2066 = vst.msk [vmem:[%s134 + $0x8] sm:$0xff] %vm1669, %v2031
        %2067 = vst.msk [vmem:[%s134 + $0x18] sm:$0xff] %vm1669, %v2033
        %2068 = vst.msk [vmem:[%s134 + $0x28] sm:$0xff] %vm1669, %v2035
        %2069 = vst.msk [vmem:[%s134 + $0x38] sm:$0xff] %vm1669, %v2037
        %2070 = vst.msk [vmem:[%s134 + $0x48] sm:$0xff] %vm1669, %v2039
        %2071 = vst.msk [vmem:[%s134 + $0x58] sm:$0xff] %vm1669, %v2041
        %2072 = vst.msk [vmem:[%s134 + $0x68] sm:$0xff] %vm1669, %v2043
        %2073 = vst.msk [vmem:[%s134 + $0x78] sm:$0xff] %vm1669, %v2045
        %2074 = vst.msk [vmem:[%s134 + $0x88] sm:$0xff] %vm1669, %v2047
        %2075 = vst.msk [vmem:[%s134 + $0x98] sm:$0xff] %vm1669, %v2049
        %2076 = vst.msk [vmem:[%s134 + $0xa8] sm:$0xff] %vm1669, %v2051
        %2077 = vst.msk [vmem:[%s134 + $0xb8] sm:$0xff] %vm1669, %v2053
        %s2078 = sand.u32 %s71, 1
        %s2079 = scalar_lea.sflag [#allocation4], %s2078
        %s2080 = sand.u32 %s71, 1
        %s2081 = smul.addr %s2080, 192
        %s2082 = scalar_lea.vmem [#allocation3], %s2081
        // Predicated region
        $region29: #{tpu_custom_call.1} parent=27 // pred_check
          %p2083 = pneg %p81
        $region30: #{tpu_custom_call.1} parent=27 // pred_check_branch
          %2085 = sbr.rel (%p2083) target = $region32
        $region31: #{tpu_custom_call.1} parent=27 // pred_region
          %2087 = vsyncadd %s2079, 0
          %s2088 = smul.addr %s16, 24
          %s2089 = smul.addr %s2088, 8
          %s2090 = scalar_lea.hbm %s2, %s2089
          %s2091 = sshll.u32 %s2082, 4
          %s2092 = int_to_ptr.vmem [resolvable:$true] %s2091
          %s2093 = sshll.u32 %s2090, 4
          %s2094 = int_to_ptr.hbm [resolvable:$true] %s2093
          %2099 = dma.vmem_to_hbm [thread:$0]  %s2092, 3072, %s2094, %s2079, 256, 256, 16
        $region32: #{tpu_custom_call.1} parent=27 // pred_fallthru
          _
      $region28: #{tpu_custom_call.1} parent=5 // pred_fallthru
        _
      %p2100 = scmp.le.s32.totalorder 2, %s11
      // Predicated region
      $region33: #{tpu_custom_call.1} parent=5 // pred_check
        %p2101 = pneg %p2100
      $region34: #{tpu_custom_call.1} parent=5 // pred_check_branch
        %2103 = sbr.rel (%p2101) target = $region36
      $region35: #{tpu_custom_call.1} parent=5 // pred_region
        %s2104 = ssub.s32 %s11, 2
        // Predicated region
        $region37: #{tpu_custom_call.1} parent=35 // pred_check
          %p2105 = pneg %p87
        $region38: #{tpu_custom_call.1} parent=35 // pred_check_branch
          %2107 = sbr.rel (%p2105) target = $region40
        $region39: #{tpu_custom_call.1} parent=35 // pred_region
          %s2108 = sand.u32 %s72, 1
          %s2109 = scalar_lea.sflag [#allocation4], %s2108
          %s2110 = sand.u32 %s72, 1
          %s2111 = smul.addr %s2110, 192
          %s2112 = scalar_lea.vmem [#allocation3], %s2111
          %2114 = dma.done %s2109, 3072
        $region40: #{tpu_custom_call.1} parent=35 // pred_fallthru
          _
      $region36: #{tpu_custom_call.1} parent=5 // pred_fallthru
        _
    $region6: #{tpu_custom_call.1} parent=1 // loop_footer
      %s15 = sadd.s32 1, %s11
    $region7: #{tpu_custom_call.1} parent=1 // loop_footer_branch
      %10 = sbr.rel target = $region3
    $region8: #{tpu_custom_call.1} parent=1 // loop_exit
      _
    %2115 = vsyncpa [#allocation4], 1
    %s2116 = scalar_lea.sflag [#allocation4], 1
    %2117 = vsyncpa %s2116, 1

</llo_original>
